<compile_context>
chip_gen: v5e
topology: v5e:2x2
jax: 0.10.0
libtpu: 0.0.40
codegen_flags: <defaults>
</compile_context>

<pallas_src>
import math
import jax
import jax.numpy as jnp
from jax import lax
from jax.experimental import pallas as pl
from jax.experimental.pallas import tpu as pltpu

# ---------------- config (small shapes consistent with the module) ----------
B = 2                                   # batch
SEQ = 2                                 # temporal frames
C_IN = 2                                # image channels
W = H = 16                              # spatial size
DOWN = 4                                # down_ratio -> n_embd = C_IN * DOWN * DOWN
N_EMBD = C_IN * DOWN * DOWN             # 32
N_HEAD = 4
HEAD_DIM = N_EMBD // N_HEAD             # 8
N_LAYER = 2
NUM_POS_FEATS = 96                      # default 288 // 3
TEMPERATURE = 10000.0
LN_EPS = 1e-5

L_TOK = (W // DOWN) * (H // DOWN)       # spatial tokens per frame = 16
T_TOK = SEQ * L_TOK                     # tokens per batch element = 32
BT = B * T_TOK                          # flattened rows = 64
ATT_SCALE = 1.0 / math.sqrt(HEAD_DIM)
INV_SQRT2 = 1.0 / math.sqrt(2.0)


# ---------------- fused Pallas kernel ----------------------------------------
def _layernorm(x, g, b):
    mu = jnp.mean(x, axis=-1, keepdims=True)
    var = jnp.mean(jnp.square(x - mu), axis=-1, keepdims=True)
    return (x - mu) * lax.rsqrt(var + LN_EPS) * g + b


def _split_heads(z, base):
    """z: (BT, 3C) value.  Returns (N_HEAD * B, T_TOK, HEAD_DIM) with batch
    index n = h * B + b, using only static slices + a major-axis stack
    (no lane-dim reshapes)."""
    parts = []
    for h in range(N_HEAD):
        c0 = base + h * HEAD_DIM
        for b in range(B):
            parts.append(z[b * T_TOK:(b + 1) * T_TOK, c0:c0 + HEAD_DIM])
    return jnp.stack(parts, axis=0)


def vit_kernel(x_ref, pos_ref,
               ln1g_ref, ln1b_ref, wqkv_ref, bqkv_ref, wp_ref, bp_ref,
               ln2g_ref, ln2b_ref, w1_ref, b1_ref, w2_ref, b2_ref,
               lnfg_ref, lnfb_ref, o_ref):
    """Whole transformer: x <- x + pos; N_LAYER blocks; final LayerNorm.
    Token slab is (BT, C) = (64, 32); everything resident in VMEM."""
    x = x_ref[...] + pos_ref[...]                               # (BT, C)

    for l in range(N_LAYER):                                    # static unroll (N_LAYER=2)
        # ---- attention branch -------------------------------------------
        hpre = _layernorm(x, ln1g_ref[l], ln1b_ref[l])
        qkv = jnp.dot(hpre, wqkv_ref[l],
                      preferred_element_type=jnp.float32) + bqkv_ref[l]   # (BT, 3C)

        q = _split_heads(qkv, 0)                                # (H*B, T, hd)
        k = _split_heads(qkv, N_EMBD)
        v = _split_heads(qkv, 2 * N_EMBD)

        att = jnp.einsum('ntd,nsd->nts', q, k,
                         preferred_element_type=jnp.float32) * ATT_SCALE  # (H*B, T, T)
        att = att - jnp.max(att, axis=-1, keepdims=True)        # stable softmax (no mask, as in ref)
        p = jnp.exp(att)
        p = p * pl.reciprocal(jnp.sum(p, axis=-1, keepdims=True), approx=True)
        yh = jnp.einsum('nts,nsd->ntd', p, v,
                        preferred_element_type=jnp.float32)     # (H*B, T, hd)

        # head merge folded into the output projection:
        #   concat_h(y_h) @ Wp == sum_h y_h @ Wp[h*hd:(h+1)*hd, :]
        wp_l = wp_ref[l]                                        # (C, C)
        y = bp_ref[l]                                           # (1, C) broadcasts
        for h in range(N_HEAD):
            rows = jnp.concatenate([yh[h * B + b] for b in range(B)], axis=0)  # (BT, hd)
            y = y + jnp.dot(rows, wp_l[h * HEAD_DIM:(h + 1) * HEAD_DIM, :],
                            preferred_element_type=jnp.float32)
        x = x + y

        # ---- MLP branch ---------------------------------------------------
        h2 = _layernorm(x, ln2g_ref[l], ln2b_ref[l])
        m = jnp.dot(h2, w1_ref[l], preferred_element_type=jnp.float32) + b1_ref[l]
        m = 0.5 * m * (1.0 + lax.erf(m * INV_SQRT2))            # exact GELU (torch default)
        m = jnp.dot(m, w2_ref[l], preferred_element_type=jnp.float32) + b2_ref[l]
        x = x + m

    o_ref[...] = _layernorm(x, lnfg_ref[...], lnfb_ref[...])


def transformer_apply(x2d, pos2d, params):
    # Single grid step (grid=()), whole arrays resident in VMEM.
    return pl.pallas_call(
        vit_kernel,
        out_shape=jax.ShapeDtypeStruct(x2d.shape, x2d.dtype),
    )(x2d, pos2d, *params)


# ---------------- JAX glue (reshapes, pos-embedding, unfold/fold) ------------
def unfold(x, d):
    # x: (B', c, w, h) -> (B', c*d*d, (w//d)*(h//d)), same order as nn.Unfold
    Bp, c, w, h = x.shape
    Hd, Wd = w // d, h // d
    x = x.reshape(Bp, c, Hd, d, Wd, d)
    x = jnp.transpose(x, (0, 1, 3, 5, 2, 4))          # (B', c, ki, kj, oh, ow)
    return x.reshape(Bp, c * d * d, Hd * Wd)


def fold(x, d, w, h, c):
    # inverse of unfold (non-overlapping, stride == kernel)
    Bp = x.shape[0]
    Hd, Wd = w // d, h // d
    x = x.reshape(Bp, c, d, d, Hd, Wd)
    x = jnp.transpose(x, (0, 1, 4, 2, 5, 3))          # (B', c, oh, ki, ow, kj)
    return x.reshape(Bp, c, w, h)


def pos_embedding_sine(b, seq, Hd, Wd, num_pos_feats):
    mask = jnp.ones((b, seq, Hd, Wd), jnp.float32)
    t_embed = jnp.cumsum(mask, axis=1)
    y_embed = jnp.cumsum(mask, axis=2)
    x_embed = jnp.cumsum(mask, axis=3)
    dim_t = jnp.arange(num_pos_feats, dtype=jnp.float32)
    dim_t = TEMPERATURE ** (2.0 * jnp.floor(dim_t / 2.0) / num_pos_feats)

    def interleave(p):
        s = jnp.sin(p[..., 0::2])
        c = jnp.cos(p[..., 1::2])
        return jnp.stack((s, c), axis=-1).reshape(p.shape[:-1] + (num_pos_feats,))

    pos_t = interleave(t_embed[..., None] / dim_t)
    pos_y = interleave(y_embed[..., None] / dim_t)
    pos_x = interleave(x_embed[..., None] / dim_t)
    return jnp.concatenate((pos_t, pos_y, pos_x), axis=-1)   # (b, seq, Hd, Wd, 3*npf)


def linear_interp_lastdim(x, out_size):
    # F.interpolate(mode='linear', align_corners=False) along the last dim
    in_size = x.shape[-1]
    scale = in_size / out_size
    j = jnp.arange(out_size, dtype=jnp.float32)
    src = scale * (j + 0.5) - 0.5
    src = jnp.maximum(src, 0.0)
    lo = jnp.floor(src).astype(jnp.int32)
    hi = jnp.minimum(lo + 1, in_size - 1)
    wgt = src - lo.astype(jnp.float32)
    return x[..., lo] * (1.0 - wgt) + x[..., hi] * wgt


def make_pos_embedding():
    """Input-independent for fixed shapes -> precompute once and reuse."""
    Hd, Wd = W // DOWN, H // DOWN
    pos = pos_embedding_sine(B, SEQ, Hd, Wd, NUM_POS_FEATS)       # (B,SEQ,Hd,Wd,3*npf)
    pos = pos.reshape(B, SEQ * Hd * Wd, 3 * NUM_POS_FEATS)
    pos = linear_interp_lastdim(pos, N_EMBD)                      # (B, T, C)
    return pos.reshape(BT, N_EMBD)                                # (BT, C)


@jax.jit
def vit_forward(x, pos2d, params):
    b, seq, c, w, h = x.shape
    d = DOWN
    Hd, Wd = w // d, h // d
    Lp = Hd * Wd
    C = c * d * d

    xu = unfold(x.reshape(b * seq, c, w, h), d)                   # (b*seq, C, Lp)
    xu = xu.reshape(b, seq, C, Lp)
    xu = jnp.transpose(xu, (0, 1, 3, 2)).reshape(b * seq * Lp, C)  # (BT, C), b-major rows

    tok = transformer_apply(xu, pos2d, params)                    # fused transformer

    y = tok.reshape(b, seq, Lp, C)
    y = jnp.transpose(y, (0, 1, 3, 2)).reshape(b * seq, C, Lp)
    y = fold(y, d, w, h, c)
    return y.reshape(b, seq, c, w, h)


# ---------------- deterministic parameter init (matches _init_weights) ------
def init_params(key):
    ks = jax.random.split(key, 4)
    wqkv = 0.02 * jax.random.normal(ks[0], (N_LAYER, N_EMBD, 3 * N_EMBD), jnp.float32)
    bqkv = jnp.zeros((N_LAYER, 1, 3 * N_EMBD), jnp.float32)
    wp = 0.02 * jax.random.normal(ks[1], (N_LAYER, N_EMBD, N_EMBD), jnp.float32)
    bp = jnp.zeros((N_LAYER, 1, N_EMBD), jnp.float32)
    w1 = 0.02 * jax.random.normal(ks[2], (N_LAYER, N_EMBD, 2 * N_EMBD), jnp.float32)
    b1 = jnp.zeros((N_LAYER, 1, 2 * N_EMBD), jnp.float32)
    w2 = 0.02 * jax.random.normal(ks[3], (N_LAYER, 2 * N_EMBD, N_EMBD), jnp.float32)
    b2 = jnp.zeros((N_LAYER, 1, N_EMBD), jnp.float32)
    ln1g = jnp.ones((N_LAYER, 1, N_EMBD), jnp.float32)
    ln1b = jnp.zeros((N_LAYER, 1, N_EMBD), jnp.float32)
    ln2g = jnp.ones((N_LAYER, 1, N_EMBD), jnp.float32)
    ln2b = jnp.zeros((N_LAYER, 1, N_EMBD), jnp.float32)
    lnfg = jnp.ones((1, N_EMBD), jnp.float32)
    lnfb = jnp.zeros((1, N_EMBD), jnp.float32)
    # order must match vit_kernel signature (after x_ref, pos_ref)
    return (ln1g, ln1b, wqkv, bqkv, wp, bp,
            ln2g, ln2b, w1, b1, w2, b2, lnfg, lnfb)


if __name__ == "__main__":
    key = jax.random.PRNGKey(0)
    kx, kp = jax.random.split(key)
    x = jax.random.normal(kx, (B, SEQ, C_IN, W, H), jnp.float32)
    params = init_params(kp)
    pos2d = jax.block_until_ready(make_pos_embedding())   # precomputed once, reused

    out = vit_forward(x, pos2d, params)
    out = jax.block_until_ready(out)
    assert out.shape == (B, SEQ, C_IN, W, H)
    assert bool(jnp.all(jnp.isfinite(out)))
    print("KERNEL_OK")
</pallas_src>

<mosaic_0001>
module attributes {stable_mosaic.version = 11 : i64} {
  func.func @vit_kernel(%arg0: memref<64x32xf32, #tpu.memory_space<vmem>>, %arg1: memref<64x32xf32, #tpu.memory_space<vmem>>, %arg2: memref<2x1x32xf32, #tpu.memory_space<vmem>>, %arg3: memref<2x1x32xf32, #tpu.memory_space<vmem>>, %arg4: memref<2x32x96xf32, #tpu.memory_space<vmem>>, %arg5: memref<2x1x96xf32, #tpu.memory_space<vmem>>, %arg6: memref<2x32x32xf32, #tpu.memory_space<vmem>>, %arg7: memref<2x1x32xf32, #tpu.memory_space<vmem>>, %arg8: memref<2x1x32xf32, #tpu.memory_space<vmem>>, %arg9: memref<2x1x32xf32, #tpu.memory_space<vmem>>, %arg10: memref<2x32x64xf32, #tpu.memory_space<vmem>>, %arg11: memref<2x1x64xf32, #tpu.memory_space<vmem>>, %arg12: memref<2x64x32xf32, #tpu.memory_space<vmem>>, %arg13: memref<2x1x32xf32, #tpu.memory_space<vmem>>, %arg14: memref<1x32xf32, #tpu.memory_space<vmem>>, %arg15: memref<1x32xf32, #tpu.memory_space<vmem>>, %arg16: memref<64x32xf32, #tpu.memory_space<vmem>>) attributes {dimension_semantics = [], scalar_prefetch = 0 : i64, scratch_operands = 0 : i64, tpu.core_type = #tpu.core_type<tc>} {
    %c0 = arith.constant 0 : index
    %c0_0 = arith.constant 0 : index
    %0 = vector.load %arg0[%c0, %c0_0] : memref<64x32xf32, #tpu.memory_space<vmem>>, vector<64x32xf32>
    %c0_1 = arith.constant 0 : index
    %c0_2 = arith.constant 0 : index
    %1 = vector.load %arg1[%c0_1, %c0_2] : memref<64x32xf32, #tpu.memory_space<vmem>>, vector<64x32xf32>
    %2 = arith.addf %0, %1 : vector<64x32xf32>
    %c0_3 = arith.constant 0 : index
    %c0_4 = arith.constant 0 : index
    %c0_5 = arith.constant 0 : index
    %3 = vector.load %arg2[%c0_3, %c0_4, %c0_5] : memref<2x1x32xf32, #tpu.memory_space<vmem>>, vector<1x1x32xf32>
    %4 = vector.shape_cast %3 : vector<1x1x32xf32> to vector<1x32xf32>
    %c0_6 = arith.constant 0 : index
    %c0_7 = arith.constant 0 : index
    %c0_8 = arith.constant 0 : index
    %5 = vector.load %arg3[%c0_6, %c0_7, %c0_8] : memref<2x1x32xf32, #tpu.memory_space<vmem>>, vector<1x1x32xf32>
    %6 = vector.shape_cast %5 : vector<1x1x32xf32> to vector<1x32xf32>
    %cst = arith.constant dense<0.000000e+00> : vector<64xf32>
    %7 = vector.multi_reduction <add>, %2, %cst [1] : vector<64x32xf32> to vector<64xf32>
    %8 = vector.shape_cast %7 : vector<64xf32> to vector<64x1xf32>
    %cst_9 = arith.constant 3.200000e+01 : f32
    %9 = vector.broadcast %cst_9 : f32 to vector<64x1xf32>
    %10 = arith.divf %8, %9 : vector<64x1xf32>
    %11 = vector.broadcast %10 : vector<64x1xf32> to vector<64x32xf32>
    %12 = arith.subf %2, %11 : vector<64x32xf32>
    %13 = arith.mulf %12, %12 : vector<64x32xf32>
    %cst_10 = arith.constant dense<0.000000e+00> : vector<64xf32>
    %14 = vector.multi_reduction <add>, %13, %cst_10 [1] : vector<64x32xf32> to vector<64xf32>
    %15 = vector.shape_cast %14 : vector<64xf32> to vector<64x1xf32>
    %cst_11 = arith.constant 3.200000e+01 : f32
    %16 = vector.broadcast %cst_11 : f32 to vector<64x1xf32>
    %17 = arith.divf %15, %16 : vector<64x1xf32>
    %18 = vector.broadcast %10 : vector<64x1xf32> to vector<64x32xf32>
    %19 = arith.subf %2, %18 : vector<64x32xf32>
    %cst_12 = arith.constant 9.99999974E-6 : f32
    %20 = vector.broadcast %cst_12 : f32 to vector<64x1xf32>
    %21 = arith.addf %17, %20 : vector<64x1xf32>
    %22 = math.rsqrt %21 : vector<64x1xf32>
    %23 = vector.broadcast %22 : vector<64x1xf32> to vector<64x32xf32>
    %24 = arith.mulf %19, %23 : vector<64x32xf32>
    %25 = vector.broadcast %4 : vector<1x32xf32> to vector<64x32xf32>
    %26 = arith.mulf %24, %25 : vector<64x32xf32>
    %27 = vector.broadcast %6 : vector<1x32xf32> to vector<64x32xf32>
    %28 = arith.addf %26, %27 : vector<64x32xf32>
    %c0_13 = arith.constant 0 : index
    %c0_14 = arith.constant 0 : index
    %c0_15 = arith.constant 0 : index
    %29 = vector.load %arg4[%c0_13, %c0_14, %c0_15] : memref<2x32x96xf32, #tpu.memory_space<vmem>>, vector<1x32x96xf32>
    %30 = vector.shape_cast %29 : vector<1x32x96xf32> to vector<32x96xf32>
    %cst_16 = arith.constant dense<0.000000e+00> : vector<64x96xf32>
    %31 = tpu.matmul %28, %30, %cst_16 {dimension_numbers = #tpu.dot_dimension_numbers<[1], [0], [0], [1], [0, 0, 1, 1], [], []>} : vector<64x32xf32>, vector<32x96xf32>, vector<64x96xf32> -> vector<64x96xf32>
    %c0_17 = arith.constant 0 : index
    %c0_18 = arith.constant 0 : index
    %c0_19 = arith.constant 0 : index
    %32 = vector.load %arg5[%c0_17, %c0_18, %c0_19] : memref<2x1x96xf32, #tpu.memory_space<vmem>>, vector<1x1x96xf32>
    %33 = vector.shape_cast %32 : vector<1x1x96xf32> to vector<1x96xf32>
    %34 = vector.broadcast %33 : vector<1x96xf32> to vector<64x96xf32>
    %35 = arith.addf %31, %34 : vector<64x96xf32>
    %36 = vector.extract_strided_slice %35 {offsets = [0, 0], sizes = [32, 8], strides = [1, 1]} : vector<64x96xf32> to vector<32x8xf32>
    %37 = vector.extract_strided_slice %35 {offsets = [32, 0], sizes = [32, 8], strides = [1, 1]} : vector<64x96xf32> to vector<32x8xf32>
    %38 = vector.extract_strided_slice %35 {offsets = [0, 8], sizes = [32, 8], strides = [1, 1]} : vector<64x96xf32> to vector<32x8xf32>
    %39 = vector.extract_strided_slice %35 {offsets = [32, 8], sizes = [32, 8], strides = [1, 1]} : vector<64x96xf32> to vector<32x8xf32>
    %40 = vector.extract_strided_slice %35 {offsets = [0, 16], sizes = [32, 8], strides = [1, 1]} : vector<64x96xf32> to vector<32x8xf32>
    %41 = vector.extract_strided_slice %35 {offsets = [32, 16], sizes = [32, 8], strides = [1, 1]} : vector<64x96xf32> to vector<32x8xf32>
    %42 = vector.extract_strided_slice %35 {offsets = [0, 24], sizes = [32, 8], strides = [1, 1]} : vector<64x96xf32> to vector<32x8xf32>
    %43 = vector.extract_strided_slice %35 {offsets = [32, 24], sizes = [32, 8], strides = [1, 1]} : vector<64x96xf32> to vector<32x8xf32>
    %44 = vector.shape_cast %36 : vector<32x8xf32> to vector<1x32x8xf32>
    %45 = vector.shape_cast %37 : vector<32x8xf32> to vector<1x32x8xf32>
    %46 = vector.shape_cast %38 : vector<32x8xf32> to vector<1x32x8xf32>
    %47 = vector.shape_cast %39 : vector<32x8xf32> to vector<1x32x8xf32>
    %48 = vector.shape_cast %40 : vector<32x8xf32> to vector<1x32x8xf32>
    %49 = vector.shape_cast %41 : vector<32x8xf32> to vector<1x32x8xf32>
    %50 = vector.shape_cast %42 : vector<32x8xf32> to vector<1x32x8xf32>
    %51 = vector.shape_cast %43 : vector<32x8xf32> to vector<1x32x8xf32>
    %52 = tpu.concatenate %44, %45, %46, %47, %48, %49, %50, %51 in 0 : vector<1x32x8xf32>, vector<1x32x8xf32>, vector<1x32x8xf32>, vector<1x32x8xf32>, vector<1x32x8xf32>, vector<1x32x8xf32>, vector<1x32x8xf32>, vector<1x32x8xf32> -> vector<8x32x8xf32>
    %53 = vector.extract_strided_slice %35 {offsets = [0, 32], sizes = [32, 8], strides = [1, 1]} : vector<64x96xf32> to vector<32x8xf32>
    %54 = vector.extract_strided_slice %35 {offsets = [32, 32], sizes = [32, 8], strides = [1, 1]} : vector<64x96xf32> to vector<32x8xf32>
    %55 = vector.extract_strided_slice %35 {offsets = [0, 40], sizes = [32, 8], strides = [1, 1]} : vector<64x96xf32> to vector<32x8xf32>
    %56 = vector.extract_strided_slice %35 {offsets = [32, 40], sizes = [32, 8], strides = [1, 1]} : vector<64x96xf32> to vector<32x8xf32>
    %57 = vector.extract_strided_slice %35 {offsets = [0, 48], sizes = [32, 8], strides = [1, 1]} : vector<64x96xf32> to vector<32x8xf32>
    %58 = vector.extract_strided_slice %35 {offsets = [32, 48], sizes = [32, 8], strides = [1, 1]} : vector<64x96xf32> to vector<32x8xf32>
    %59 = vector.extract_strided_slice %35 {offsets = [0, 56], sizes = [32, 8], strides = [1, 1]} : vector<64x96xf32> to vector<32x8xf32>
    %60 = vector.extract_strided_slice %35 {offsets = [32, 56], sizes = [32, 8], strides = [1, 1]} : vector<64x96xf32> to vector<32x8xf32>
    %61 = vector.shape_cast %53 : vector<32x8xf32> to vector<1x32x8xf32>
    %62 = vector.shape_cast %54 : vector<32x8xf32> to vector<1x32x8xf32>
    %63 = vector.shape_cast %55 : vector<32x8xf32> to vector<1x32x8xf32>
    %64 = vector.shape_cast %56 : vector<32x8xf32> to vector<1x32x8xf32>
    %65 = vector.shape_cast %57 : vector<32x8xf32> to vector<1x32x8xf32>
    %66 = vector.shape_cast %58 : vector<32x8xf32> to vector<1x32x8xf32>
    %67 = vector.shape_cast %59 : vector<32x8xf32> to vector<1x32x8xf32>
    %68 = vector.shape_cast %60 : vector<32x8xf32> to vector<1x32x8xf32>
    %69 = tpu.concatenate %61, %62, %63, %64, %65, %66, %67, %68 in 0 : vector<1x32x8xf32>, vector<1x32x8xf32>, vector<1x32x8xf32>, vector<1x32x8xf32>, vector<1x32x8xf32>, vector<1x32x8xf32>, vector<1x32x8xf32>, vector<1x32x8xf32> -> vector<8x32x8xf32>
    %70 = vector.extract_strided_slice %35 {offsets = [0, 64], sizes = [32, 8], strides = [1, 1]} : vector<64x96xf32> to vector<32x8xf32>
    %71 = vector.extract_strided_slice %35 {offsets = [32, 64], sizes = [32, 8], strides = [1, 1]} : vector<64x96xf32> to vector<32x8xf32>
    %72 = vector.extract_strided_slice %35 {offsets = [0, 72], sizes = [32, 8], strides = [1, 1]} : vector<64x96xf32> to vector<32x8xf32>
    %73 = vector.extract_strided_slice %35 {offsets = [32, 72], sizes = [32, 8], strides = [1, 1]} : vector<64x96xf32> to vector<32x8xf32>
    %74 = vector.extract_strided_slice %35 {offsets = [0, 80], sizes = [32, 8], strides = [1, 1]} : vector<64x96xf32> to vector<32x8xf32>
    %75 = vector.extract_strided_slice %35 {offsets = [32, 80], sizes = [32, 8], strides = [1, 1]} : vector<64x96xf32> to vector<32x8xf32>
    %76 = vector.extract_strided_slice %35 {offsets = [0, 88], sizes = [32, 8], strides = [1, 1]} : vector<64x96xf32> to vector<32x8xf32>
    %77 = vector.extract_strided_slice %35 {offsets = [32, 88], sizes = [32, 8], strides = [1, 1]} : vector<64x96xf32> to vector<32x8xf32>
    %78 = vector.shape_cast %70 : vector<32x8xf32> to vector<1x32x8xf32>
    %79 = vector.shape_cast %71 : vector<32x8xf32> to vector<1x32x8xf32>
    %80 = vector.shape_cast %72 : vector<32x8xf32> to vector<1x32x8xf32>
    %81 = vector.shape_cast %73 : vector<32x8xf32> to vector<1x32x8xf32>
    %82 = vector.shape_cast %74 : vector<32x8xf32> to vector<1x32x8xf32>
    %83 = vector.shape_cast %75 : vector<32x8xf32> to vector<1x32x8xf32>
    %84 = vector.shape_cast %76 : vector<32x8xf32> to vector<1x32x8xf32>
    %85 = vector.shape_cast %77 : vector<32x8xf32> to vector<1x32x8xf32>
    %86 = tpu.concatenate %78, %79, %80, %81, %82, %83, %84, %85 in 0 : vector<1x32x8xf32>, vector<1x32x8xf32>, vector<1x32x8xf32>, vector<1x32x8xf32>, vector<1x32x8xf32>, vector<1x32x8xf32>, vector<1x32x8xf32>, vector<1x32x8xf32> -> vector<8x32x8xf32>
    "tpu.trace_start"() <{level = 10 : i32, message = "ntd,nsd->nts"}> : () -> ()
    %cst_20 = arith.constant dense<0.000000e+00> : vector<8x32x32xf32>
    %87 = tpu.matmul %52, %69, %cst_20 {dimension_numbers = #tpu.dot_dimension_numbers<[2], [2], [1], [1], [0, 0, 0, 1, 1, 1], [0], [0]>} : vector<8x32x8xf32>, vector<8x32x8xf32>, vector<8x32x32xf32> -> vector<8x32x32xf32>
    "tpu.trace_stop"() : () -> ()
    %cst_21 = arith.constant 0.353553385 : f32
    %88 = vector.broadcast %cst_21 : f32 to vector<8x32x32xf32>
    %89 = arith.mulf %87, %88 : vector<8x32x32xf32>
    %cst_22 = arith.constant dense<0xFF800000> : vector<8x32xf32>
    %90 = vector.multi_reduction <maximumf>, %89, %cst_22 [2] : vector<8x32x32xf32> to vector<8x32xf32>
    %91 = vector.shape_cast %90 : vector<8x32xf32> to vector<8x32x1xf32>
    %92 = vector.broadcast %91 : vector<8x32x1xf32> to vector<8x32x32xf32>
    %93 = arith.subf %89, %92 : vector<8x32x32xf32>
    %94 = math.exp %93 : vector<8x32x32xf32>
    %cst_23 = arith.constant dense<0.000000e+00> : vector<8x32xf32>
    %95 = vector.multi_reduction <add>, %94, %cst_23 [2] : vector<8x32x32xf32> to vector<8x32xf32>
    %96 = vector.shape_cast %95 : vector<8x32xf32> to vector<8x32x1xf32>
    %97 = tpu.reciprocal %96 {approx = true} : vector<8x32x1xf32> -> vector<8x32x1xf32>
    %98 = vector.broadcast %97 : vector<8x32x1xf32> to vector<8x32x32xf32>
    %99 = arith.mulf %94, %98 : vector<8x32x32xf32>
    "tpu.trace_start"() <{level = 10 : i32, message = "nts,nsd->ntd"}> : () -> ()
    %cst_24 = arith.constant dense<0.000000e+00> : vector<8x32x8xf32>
    %100 = tpu.matmul %99, %86, %cst_24 {dimension_numbers = #tpu.dot_dimension_numbers<[2], [1], [1], [2], [0, 0, 0, 1, 1, 2], [0], [0]>} : vector<8x32x32xf32>, vector<8x32x8xf32>, vector<8x32x8xf32> -> vector<8x32x8xf32>
    "tpu.trace_stop"() : () -> ()
    %c0_25 = arith.constant 0 : index
    %c0_26 = arith.constant 0 : index
    %c0_27 = arith.constant 0 : index
    %101 = vector.load %arg6[%c0_25, %c0_26, %c0_27] : memref<2x32x32xf32, #tpu.memory_space<vmem>>, vector<1x32x32xf32>
    %102 = vector.shape_cast %101 : vector<1x32x32xf32> to vector<32x32xf32>
    %c0_28 = arith.constant 0 : index
    %c0_29 = arith.constant 0 : index
    %c0_30 = arith.constant 0 : index
    %103 = vector.load %arg7[%c0_28, %c0_29, %c0_30] : memref<2x1x32xf32, #tpu.memory_space<vmem>>, vector<1x1x32xf32>
    %104 = vector.shape_cast %103 : vector<1x1x32xf32> to vector<1x32xf32>
    %105 = vector.extract_strided_slice %100 {offsets = [0, 0, 0], sizes = [1, 32, 8], strides = [1, 1, 1]} : vector<8x32x8xf32> to vector<1x32x8xf32>
    %106 = vector.shape_cast %105 : vector<1x32x8xf32> to vector<32x8xf32>
    %107 = vector.extract_strided_slice %100 {offsets = [1, 0, 0], sizes = [1, 32, 8], strides = [1, 1, 1]} : vector<8x32x8xf32> to vector<1x32x8xf32>
    %108 = vector.shape_cast %107 : vector<1x32x8xf32> to vector<32x8xf32>
    %109 = tpu.concatenate %106, %108 in 0 : vector<32x8xf32>, vector<32x8xf32> -> vector<64x8xf32>
    %110 = vector.extract_strided_slice %102 {offsets = [0, 0], sizes = [8, 32], strides = [1, 1]} : vector<32x32xf32> to vector<8x32xf32>
    %cst_31 = arith.constant dense<0.000000e+00> : vector<64x32xf32>
    %111 = tpu.matmul %109, %110, %cst_31 {dimension_numbers = #tpu.dot_dimension_numbers<[1], [0], [0], [1], [0, 0, 1, 1], [], []>} : vector<64x8xf32>, vector<8x32xf32>, vector<64x32xf32> -> vector<64x32xf32>
    %112 = vector.broadcast %104 : vector<1x32xf32> to vector<64x32xf32>
    %113 = arith.addf %112, %111 : vector<64x32xf32>
    %114 = vector.extract_strided_slice %100 {offsets = [2, 0, 0], sizes = [1, 32, 8], strides = [1, 1, 1]} : vector<8x32x8xf32> to vector<1x32x8xf32>
    %115 = vector.shape_cast %114 : vector<1x32x8xf32> to vector<32x8xf32>
    %116 = vector.extract_strided_slice %100 {offsets = [3, 0, 0], sizes = [1, 32, 8], strides = [1, 1, 1]} : vector<8x32x8xf32> to vector<1x32x8xf32>
    %117 = vector.shape_cast %116 : vector<1x32x8xf32> to vector<32x8xf32>
    %118 = tpu.concatenate %115, %117 in 0 : vector<32x8xf32>, vector<32x8xf32> -> vector<64x8xf32>
    %119 = vector.extract_strided_slice %102 {offsets = [8, 0], sizes = [8, 32], strides = [1, 1]} : vector<32x32xf32> to vector<8x32xf32>
    %cst_32 = arith.constant dense<0.000000e+00> : vector<64x32xf32>
    %120 = tpu.matmul %118, %119, %cst_32 {dimension_numbers = #tpu.dot_dimension_numbers<[1], [0], [0], [1], [0, 0, 1, 1], [], []>} : vector<64x8xf32>, vector<8x32xf32>, vector<64x32xf32> -> vector<64x32xf32>
    %121 = arith.addf %113, %120 : vector<64x32xf32>
    %122 = vector.extract_strided_slice %100 {offsets = [4, 0, 0], sizes = [1, 32, 8], strides = [1, 1, 1]} : vector<8x32x8xf32> to vector<1x32x8xf32>
    %123 = vector.shape_cast %122 : vector<1x32x8xf32> to vector<32x8xf32>
    %124 = vector.extract_strided_slice %100 {offsets = [5, 0, 0], sizes = [1, 32, 8], strides = [1, 1, 1]} : vector<8x32x8xf32> to vector<1x32x8xf32>
    %125 = vector.shape_cast %124 : vector<1x32x8xf32> to vector<32x8xf32>
    %126 = tpu.concatenate %123, %125 in 0 : vector<32x8xf32>, vector<32x8xf32> -> vector<64x8xf32>
    %127 = vector.extract_strided_slice %102 {offsets = [16, 0], sizes = [8, 32], strides = [1, 1]} : vector<32x32xf32> to vector<8x32xf32>
    %cst_33 = arith.constant dense<0.000000e+00> : vector<64x32xf32>
    %128 = tpu.matmul %126, %127, %cst_33 {dimension_numbers = #tpu.dot_dimension_numbers<[1], [0], [0], [1], [0, 0, 1, 1], [], []>} : vector<64x8xf32>, vector<8x32xf32>, vector<64x32xf32> -> vector<64x32xf32>
    %129 = arith.addf %121, %128 : vector<64x32xf32>
    %130 = vector.extract_strided_slice %100 {offsets = [6, 0, 0], sizes = [1, 32, 8], strides = [1, 1, 1]} : vector<8x32x8xf32> to vector<1x32x8xf32>
    %131 = vector.shape_cast %130 : vector<1x32x8xf32> to vector<32x8xf32>
    %132 = vector.extract_strided_slice %100 {offsets = [7, 0, 0], sizes = [1, 32, 8], strides = [1, 1, 1]} : vector<8x32x8xf32> to vector<1x32x8xf32>
    %133 = vector.shape_cast %132 : vector<1x32x8xf32> to vector<32x8xf32>
    %134 = tpu.concatenate %131, %133 in 0 : vector<32x8xf32>, vector<32x8xf32> -> vector<64x8xf32>
    %135 = vector.extract_strided_slice %102 {offsets = [24, 0], sizes = [8, 32], strides = [1, 1]} : vector<32x32xf32> to vector<8x32xf32>
    %cst_34 = arith.constant dense<0.000000e+00> : vector<64x32xf32>
    %136 = tpu.matmul %134, %135, %cst_34 {dimension_numbers = #tpu.dot_dimension_numbers<[1], [0], [0], [1], [0, 0, 1, 1], [], []>} : vector<64x8xf32>, vector<8x32xf32>, vector<64x32xf32> -> vector<64x32xf32>
    %137 = arith.addf %129, %136 : vector<64x32xf32>
    %138 = arith.addf %2, %137 : vector<64x32xf32>
    %c0_35 = arith.constant 0 : index
    %c0_36 = arith.constant 0 : index
    %c0_37 = arith.constant 0 : index
    %139 = vector.load %arg8[%c0_35, %c0_36, %c0_37] : memref<2x1x32xf32, #tpu.memory_space<vmem>>, vector<1x1x32xf32>
    %140 = vector.shape_cast %139 : vector<1x1x32xf32> to vector<1x32xf32>
    %c0_38 = arith.constant 0 : index
    %c0_39 = arith.constant 0 : index
    %c0_40 = arith.constant 0 : index
    %141 = vector.load %arg9[%c0_38, %c0_39, %c0_40] : memref<2x1x32xf32, #tpu.memory_space<vmem>>, vector<1x1x32xf32>
    %142 = vector.shape_cast %141 : vector<1x1x32xf32> to vector<1x32xf32>
    %cst_41 = arith.constant dense<0.000000e+00> : vector<64xf32>
    %143 = vector.multi_reduction <add>, %138, %cst_41 [1] : vector<64x32xf32> to vector<64xf32>
    %144 = vector.shape_cast %143 : vector<64xf32> to vector<64x1xf32>
    %cst_42 = arith.constant 3.200000e+01 : f32
    %145 = vector.broadcast %cst_42 : f32 to vector<64x1xf32>
    %146 = arith.divf %144, %145 : vector<64x1xf32>
    %147 = vector.broadcast %146 : vector<64x1xf32> to vector<64x32xf32>
    %148 = arith.subf %138, %147 : vector<64x32xf32>
    %149 = arith.mulf %148, %148 : vector<64x32xf32>
    %cst_43 = arith.constant dense<0.000000e+00> : vector<64xf32>
    %150 = vector.multi_reduction <add>, %149, %cst_43 [1] : vector<64x32xf32> to vector<64xf32>
    %151 = vector.shape_cast %150 : vector<64xf32> to vector<64x1xf32>
    %cst_44 = arith.constant 3.200000e+01 : f32
    %152 = vector.broadcast %cst_44 : f32 to vector<64x1xf32>
    %153 = arith.divf %151, %152 : vector<64x1xf32>
    %154 = vector.broadcast %146 : vector<64x1xf32> to vector<64x32xf32>
    %155 = arith.subf %138, %154 : vector<64x32xf32>
    %cst_45 = arith.constant 9.99999974E-6 : f32
    %156 = vector.broadcast %cst_45 : f32 to vector<64x1xf32>
    %157 = arith.addf %153, %156 : vector<64x1xf32>
    %158 = math.rsqrt %157 : vector<64x1xf32>
    %159 = vector.broadcast %158 : vector<64x1xf32> to vector<64x32xf32>
    %160 = arith.mulf %155, %159 : vector<64x32xf32>
    %161 = vector.broadcast %140 : vector<1x32xf32> to vector<64x32xf32>
    %162 = arith.mulf %160, %161 : vector<64x32xf32>
    %163 = vector.broadcast %142 : vector<1x32xf32> to vector<64x32xf32>
    %164 = arith.addf %162, %163 : vector<64x32xf32>
    %c0_46 = arith.constant 0 : index
    %c0_47 = arith.constant 0 : index
    %c0_48 = arith.constant 0 : index
    %165 = vector.load %arg10[%c0_46, %c0_47, %c0_48] : memref<2x32x64xf32, #tpu.memory_space<vmem>>, vector<1x32x64xf32>
    %166 = vector.shape_cast %165 : vector<1x32x64xf32> to vector<32x64xf32>
    %cst_49 = arith.constant dense<0.000000e+00> : vector<64x64xf32>
    %167 = tpu.matmul %164, %166, %cst_49 {dimension_numbers = #tpu.dot_dimension_numbers<[1], [0], [0], [1], [0, 0, 1, 1], [], []>} : vector<64x32xf32>, vector<32x64xf32>, vector<64x64xf32> -> vector<64x64xf32>
    %c0_50 = arith.constant 0 : index
    %c0_51 = arith.constant 0 : index
    %c0_52 = arith.constant 0 : index
    %168 = vector.load %arg11[%c0_50, %c0_51, %c0_52] : memref<2x1x64xf32, #tpu.memory_space<vmem>>, vector<1x1x64xf32>
    %169 = vector.shape_cast %168 : vector<1x1x64xf32> to vector<1x64xf32>
    %170 = vector.broadcast %169 : vector<1x64xf32> to vector<64x64xf32>
    %171 = arith.addf %167, %170 : vector<64x64xf32>
    %cst_53 = arith.constant 5.000000e-01 : f32
    %172 = vector.broadcast %cst_53 : f32 to vector<64x64xf32>
    %173 = arith.mulf %172, %171 : vector<64x64xf32>
    %cst_54 = arith.constant 0.707106769 : f32
    %174 = vector.broadcast %cst_54 : f32 to vector<64x64xf32>
    %175 = arith.mulf %171, %174 : vector<64x64xf32>
    %176 = math.erf %175 : vector<64x64xf32>
    %cst_55 = arith.constant 1.000000e+00 : f32
    %177 = vector.broadcast %cst_55 : f32 to vector<64x64xf32>
    %178 = arith.addf %177, %176 : vector<64x64xf32>
    %179 = arith.mulf %173, %178 : vector<64x64xf32>
    %c0_56 = arith.constant 0 : index
    %c0_57 = arith.constant 0 : index
    %c0_58 = arith.constant 0 : index
    %180 = vector.load %arg12[%c0_56, %c0_57, %c0_58] : memref<2x64x32xf32, #tpu.memory_space<vmem>>, vector<1x64x32xf32>
    %181 = vector.shape_cast %180 : vector<1x64x32xf32> to vector<64x32xf32>
    %cst_59 = arith.constant dense<0.000000e+00> : vector<64x32xf32>
    %182 = tpu.matmul %179, %181, %cst_59 {dimension_numbers = #tpu.dot_dimension_numbers<[1], [0], [0], [1], [0, 0, 1, 1], [], []>} : vector<64x64xf32>, vector<64x32xf32>, vector<64x32xf32> -> vector<64x32xf32>
    %c0_60 = arith.constant 0 : index
    %c0_61 = arith.constant 0 : index
    %c0_62 = arith.constant 0 : index
    %183 = vector.load %arg13[%c0_60, %c0_61, %c0_62] : memref<2x1x32xf32, #tpu.memory_space<vmem>>, vector<1x1x32xf32>
    %184 = vector.shape_cast %183 : vector<1x1x32xf32> to vector<1x32xf32>
    %185 = vector.broadcast %184 : vector<1x32xf32> to vector<64x32xf32>
    %186 = arith.addf %182, %185 : vector<64x32xf32>
    %187 = arith.addf %138, %186 : vector<64x32xf32>
    %c1 = arith.constant 1 : index
    %c0_63 = arith.constant 0 : index
    %c0_64 = arith.constant 0 : index
    %188 = vector.load %arg2[%c1, %c0_63, %c0_64] : memref<2x1x32xf32, #tpu.memory_space<vmem>>, vector<1x1x32xf32>
    %189 = vector.shape_cast %188 : vector<1x1x32xf32> to vector<1x32xf32>
    %c1_65 = arith.constant 1 : index
    %c0_66 = arith.constant 0 : index
    %c0_67 = arith.constant 0 : index
    %190 = vector.load %arg3[%c1_65, %c0_66, %c0_67] : memref<2x1x32xf32, #tpu.memory_space<vmem>>, vector<1x1x32xf32>
    %191 = vector.shape_cast %190 : vector<1x1x32xf32> to vector<1x32xf32>
    %cst_68 = arith.constant dense<0.000000e+00> : vector<64xf32>
    %192 = vector.multi_reduction <add>, %187, %cst_68 [1] : vector<64x32xf32> to vector<64xf32>
    %193 = vector.shape_cast %192 : vector<64xf32> to vector<64x1xf32>
    %cst_69 = arith.constant 3.200000e+01 : f32
    %194 = vector.broadcast %cst_69 : f32 to vector<64x1xf32>
    %195 = arith.divf %193, %194 : vector<64x1xf32>
    %196 = vector.broadcast %195 : vector<64x1xf32> to vector<64x32xf32>
    %197 = arith.subf %187, %196 : vector<64x32xf32>
    %198 = arith.mulf %197, %197 : vector<64x32xf32>
    %cst_70 = arith.constant dense<0.000000e+00> : vector<64xf32>
    %199 = vector.multi_reduction <add>, %198, %cst_70 [1] : vector<64x32xf32> to vector<64xf32>
    %200 = vector.shape_cast %199 : vector<64xf32> to vector<64x1xf32>
    %cst_71 = arith.constant 3.200000e+01 : f32
    %201 = vector.broadcast %cst_71 : f32 to vector<64x1xf32>
    %202 = arith.divf %200, %201 : vector<64x1xf32>
    %203 = vector.broadcast %195 : vector<64x1xf32> to vector<64x32xf32>
    %204 = arith.subf %187, %203 : vector<64x32xf32>
    %cst_72 = arith.constant 9.99999974E-6 : f32
    %205 = vector.broadcast %cst_72 : f32 to vector<64x1xf32>
    %206 = arith.addf %202, %205 : vector<64x1xf32>
    %207 = math.rsqrt %206 : vector<64x1xf32>
    %208 = vector.broadcast %207 : vector<64x1xf32> to vector<64x32xf32>
    %209 = arith.mulf %204, %208 : vector<64x32xf32>
    %210 = vector.broadcast %189 : vector<1x32xf32> to vector<64x32xf32>
    %211 = arith.mulf %209, %210 : vector<64x32xf32>
    %212 = vector.broadcast %191 : vector<1x32xf32> to vector<64x32xf32>
    %213 = arith.addf %211, %212 : vector<64x32xf32>
    %c1_73 = arith.constant 1 : index
    %c0_74 = arith.constant 0 : index
    %c0_75 = arith.constant 0 : index
    %214 = vector.load %arg4[%c1_73, %c0_74, %c0_75] : memref<2x32x96xf32, #tpu.memory_space<vmem>>, vector<1x32x96xf32>
    %215 = vector.shape_cast %214 : vector<1x32x96xf32> to vector<32x96xf32>
    %cst_76 = arith.constant dense<0.000000e+00> : vector<64x96xf32>
    %216 = tpu.matmul %213, %215, %cst_76 {dimension_numbers = #tpu.dot_dimension_numbers<[1], [0], [0], [1], [0, 0, 1, 1], [], []>} : vector<64x32xf32>, vector<32x96xf32>, vector<64x96xf32> -> vector<64x96xf32>
    %c1_77 = arith.constant 1 : index
    %c0_78 = arith.constant 0 : index
    %c0_79 = arith.constant 0 : index
    %217 = vector.load %arg5[%c1_77, %c0_78, %c0_79] : memref<2x1x96xf32, #tpu.memory_space<vmem>>, vector<1x1x96xf32>
    %218 = vector.shape_cast %217 : vector<1x1x96xf32> to vector<1x96xf32>
    %219 = vector.broadcast %218 : vector<1x96xf32> to vector<64x96xf32>
    %220 = arith.addf %216, %219 : vector<64x96xf32>
    %221 = vector.extract_strided_slice %220 {offsets = [0, 0], sizes = [32, 8], strides = [1, 1]} : vector<64x96xf32> to vector<32x8xf32>
    %222 = vector.extract_strided_slice %220 {offsets = [32, 0], sizes = [32, 8], strides = [1, 1]} : vector<64x96xf32> to vector<32x8xf32>
    %223 = vector.extract_strided_slice %220 {offsets = [0, 8], sizes = [32, 8], strides = [1, 1]} : vector<64x96xf32> to vector<32x8xf32>
    %224 = vector.extract_strided_slice %220 {offsets = [32, 8], sizes = [32, 8], strides = [1, 1]} : vector<64x96xf32> to vector<32x8xf32>
    %225 = vector.extract_strided_slice %220 {offsets = [0, 16], sizes = [32, 8], strides = [1, 1]} : vector<64x96xf32> to vector<32x8xf32>
    %226 = vector.extract_strided_slice %220 {offsets = [32, 16], sizes = [32, 8], strides = [1, 1]} : vector<64x96xf32> to vector<32x8xf32>
    %227 = vector.extract_strided_slice %220 {offsets = [0, 24], sizes = [32, 8], strides = [1, 1]} : vector<64x96xf32> to vector<32x8xf32>
    %228 = vector.extract_strided_slice %220 {offsets = [32, 24], sizes = [32, 8], strides = [1, 1]} : vector<64x96xf32> to vector<32x8xf32>
    %229 = vector.shape_cast %221 : vector<32x8xf32> to vector<1x32x8xf32>
    %230 = vector.shape_cast %222 : vector<32x8xf32> to vector<1x32x8xf32>
    %231 = vector.shape_cast %223 : vector<32x8xf32> to vector<1x32x8xf32>
    %232 = vector.shape_cast %224 : vector<32x8xf32> to vector<1x32x8xf32>
    %233 = vector.shape_cast %225 : vector<32x8xf32> to vector<1x32x8xf32>
    %234 = vector.shape_cast %226 : vector<32x8xf32> to vector<1x32x8xf32>
    %235 = vector.shape_cast %227 : vector<32x8xf32> to vector<1x32x8xf32>
    %236 = vector.shape_cast %228 : vector<32x8xf32> to vector<1x32x8xf32>
    %237 = tpu.concatenate %229, %230, %231, %232, %233, %234, %235, %236 in 0 : vector<1x32x8xf32>, vector<1x32x8xf32>, vector<1x32x8xf32>, vector<1x32x8xf32>, vector<1x32x8xf32>, vector<1x32x8xf32>, vector<1x32x8xf32>, vector<1x32x8xf32> -> vector<8x32x8xf32>
    %238 = vector.extract_strided_slice %220 {offsets = [0, 32], sizes = [32, 8], strides = [1, 1]} : vector<64x96xf32> to vector<32x8xf32>
    %239 = vector.extract_strided_slice %220 {offsets = [32, 32], sizes = [32, 8], strides = [1, 1]} : vector<64x96xf32> to vector<32x8xf32>
    %240 = vector.extract_strided_slice %220 {offsets = [0, 40], sizes = [32, 8], strides = [1, 1]} : vector<64x96xf32> to vector<32x8xf32>
    %241 = vector.extract_strided_slice %220 {offsets = [32, 40], sizes = [32, 8], strides = [1, 1]} : vector<64x96xf32> to vector<32x8xf32>
    %242 = vector.extract_strided_slice %220 {offsets = [0, 48], sizes = [32, 8], strides = [1, 1]} : vector<64x96xf32> to vector<32x8xf32>
    %243 = vector.extract_strided_slice %220 {offsets = [32, 48], sizes = [32, 8], strides = [1, 1]} : vector<64x96xf32> to vector<32x8xf32>
    %244 = vector.extract_strided_slice %220 {offsets = [0, 56], sizes = [32, 8], strides = [1, 1]} : vector<64x96xf32> to vector<32x8xf32>
    %245 = vector.extract_strided_slice %220 {offsets = [32, 56], sizes = [32, 8], strides = [1, 1]} : vector<64x96xf32> to vector<32x8xf32>
    %246 = vector.shape_cast %238 : vector<32x8xf32> to vector<1x32x8xf32>
    %247 = vector.shape_cast %239 : vector<32x8xf32> to vector<1x32x8xf32>
    %248 = vector.shape_cast %240 : vector<32x8xf32> to vector<1x32x8xf32>
    %249 = vector.shape_cast %241 : vector<32x8xf32> to vector<1x32x8xf32>
    %250 = vector.shape_cast %242 : vector<32x8xf32> to vector<1x32x8xf32>
    %251 = vector.shape_cast %243 : vector<32x8xf32> to vector<1x32x8xf32>
    %252 = vector.shape_cast %244 : vector<32x8xf32> to vector<1x32x8xf32>
    %253 = vector.shape_cast %245 : vector<32x8xf32> to vector<1x32x8xf32>
    %254 = tpu.concatenate %246, %247, %248, %249, %250, %251, %252, %253 in 0 : vector<1x32x8xf32>, vector<1x32x8xf32>, vector<1x32x8xf32>, vector<1x32x8xf32>, vector<1x32x8xf32>, vector<1x32x8xf32>, vector<1x32x8xf32>, vector<1x32x8xf32> -> vector<8x32x8xf32>
    %255 = vector.extract_strided_slice %220 {offsets = [0, 64], sizes = [32, 8], strides = [1, 1]} : vector<64x96xf32> to vector<32x8xf32>
    %256 = vector.extract_strided_slice %220 {offsets = [32, 64], sizes = [32, 8], strides = [1, 1]} : vector<64x96xf32> to vector<32x8xf32>
    %257 = vector.extract_strided_slice %220 {offsets = [0, 72], sizes = [32, 8], strides = [1, 1]} : vector<64x96xf32> to vector<32x8xf32>
    %258 = vector.extract_strided_slice %220 {offsets = [32, 72], sizes = [32, 8], strides = [1, 1]} : vector<64x96xf32> to vector<32x8xf32>
    %259 = vector.extract_strided_slice %220 {offsets = [0, 80], sizes = [32, 8], strides = [1, 1]} : vector<64x96xf32> to vector<32x8xf32>
    %260 = vector.extract_strided_slice %220 {offsets = [32, 80], sizes = [32, 8], strides = [1, 1]} : vector<64x96xf32> to vector<32x8xf32>
    %261 = vector.extract_strided_slice %220 {offsets = [0, 88], sizes = [32, 8], strides = [1, 1]} : vector<64x96xf32> to vector<32x8xf32>
    %262 = vector.extract_strided_slice %220 {offsets = [32, 88], sizes = [32, 8], strides = [1, 1]} : vector<64x96xf32> to vector<32x8xf32>
    %263 = vector.shape_cast %255 : vector<32x8xf32> to vector<1x32x8xf32>
    %264 = vector.shape_cast %256 : vector<32x8xf32> to vector<1x32x8xf32>
    %265 = vector.shape_cast %257 : vector<32x8xf32> to vector<1x32x8xf32>
    %266 = vector.shape_cast %258 : vector<32x8xf32> to vector<1x32x8xf32>
    %267 = vector.shape_cast %259 : vector<32x8xf32> to vector<1x32x8xf32>
    %268 = vector.shape_cast %260 : vector<32x8xf32> to vector<1x32x8xf32>
    %269 = vector.shape_cast %261 : vector<32x8xf32> to vector<1x32x8xf32>
    %270 = vector.shape_cast %262 : vector<32x8xf32> to vector<1x32x8xf32>
    %271 = tpu.concatenate %263, %264, %265, %266, %267, %268, %269, %270 in 0 : vector<1x32x8xf32>, vector<1x32x8xf32>, vector<1x32x8xf32>, vector<1x32x8xf32>, vector<1x32x8xf32>, vector<1x32x8xf32>, vector<1x32x8xf32>, vector<1x32x8xf32> -> vector<8x32x8xf32>
    "tpu.trace_start"() <{level = 10 : i32, message = "ntd,nsd->nts"}> : () -> ()
    %cst_80 = arith.constant dense<0.000000e+00> : vector<8x32x32xf32>
    %272 = tpu.matmul %237, %254, %cst_80 {dimension_numbers = #tpu.dot_dimension_numbers<[2], [2], [1], [1], [0, 0, 0, 1, 1, 1], [0], [0]>} : vector<8x32x8xf32>, vector<8x32x8xf32>, vector<8x32x32xf32> -> vector<8x32x32xf32>
    "tpu.trace_stop"() : () -> ()
    %cst_81 = arith.constant 0.353553385 : f32
    %273 = vector.broadcast %cst_81 : f32 to vector<8x32x32xf32>
    %274 = arith.mulf %272, %273 : vector<8x32x32xf32>
    %cst_82 = arith.constant dense<0xFF800000> : vector<8x32xf32>
    %275 = vector.multi_reduction <maximumf>, %274, %cst_82 [2] : vector<8x32x32xf32> to vector<8x32xf32>
    %276 = vector.shape_cast %275 : vector<8x32xf32> to vector<8x32x1xf32>
    %277 = vector.broadcast %276 : vector<8x32x1xf32> to vector<8x32x32xf32>
    %278 = arith.subf %274, %277 : vector<8x32x32xf32>
    %279 = math.exp %278 : vector<8x32x32xf32>
    %cst_83 = arith.constant dense<0.000000e+00> : vector<8x32xf32>
    %280 = vector.multi_reduction <add>, %279, %cst_83 [2] : vector<8x32x32xf32> to vector<8x32xf32>
    %281 = vector.shape_cast %280 : vector<8x32xf32> to vector<8x32x1xf32>
    %282 = tpu.reciprocal %281 {approx = true} : vector<8x32x1xf32> -> vector<8x32x1xf32>
    %283 = vector.broadcast %282 : vector<8x32x1xf32> to vector<8x32x32xf32>
    %284 = arith.mulf %279, %283 : vector<8x32x32xf32>
    "tpu.trace_start"() <{level = 10 : i32, message = "nts,nsd->ntd"}> : () -> ()
    %cst_84 = arith.constant dense<0.000000e+00> : vector<8x32x8xf32>
    %285 = tpu.matmul %284, %271, %cst_84 {dimension_numbers = #tpu.dot_dimension_numbers<[2], [1], [1], [2], [0, 0, 0, 1, 1, 2], [0], [0]>} : vector<8x32x32xf32>, vector<8x32x8xf32>, vector<8x32x8xf32> -> vector<8x32x8xf32>
    "tpu.trace_stop"() : () -> ()
    %c1_85 = arith.constant 1 : index
    %c0_86 = arith.constant 0 : index
    %c0_87 = arith.constant 0 : index
    %286 = vector.load %arg6[%c1_85, %c0_86, %c0_87] : memref<2x32x32xf32, #tpu.memory_space<vmem>>, vector<1x32x32xf32>
    %287 = vector.shape_cast %286 : vector<1x32x32xf32> to vector<32x32xf32>
    %c1_88 = arith.constant 1 : index
    %c0_89 = arith.constant 0 : index
    %c0_90 = arith.constant 0 : index
    %288 = vector.load %arg7[%c1_88, %c0_89, %c0_90] : memref<2x1x32xf32, #tpu.memory_space<vmem>>, vector<1x1x32xf32>
    %289 = vector.shape_cast %288 : vector<1x1x32xf32> to vector<1x32xf32>
    %290 = vector.extract_strided_slice %285 {offsets = [0, 0, 0], sizes = [1, 32, 8], strides = [1, 1, 1]} : vector<8x32x8xf32> to vector<1x32x8xf32>
    %291 = vector.shape_cast %290 : vector<1x32x8xf32> to vector<32x8xf32>
    %292 = vector.extract_strided_slice %285 {offsets = [1, 0, 0], sizes = [1, 32, 8], strides = [1, 1, 1]} : vector<8x32x8xf32> to vector<1x32x8xf32>
    %293 = vector.shape_cast %292 : vector<1x32x8xf32> to vector<32x8xf32>
    %294 = tpu.concatenate %291, %293 in 0 : vector<32x8xf32>, vector<32x8xf32> -> vector<64x8xf32>
    %295 = vector.extract_strided_slice %287 {offsets = [0, 0], sizes = [8, 32], strides = [1, 1]} : vector<32x32xf32> to vector<8x32xf32>
    %cst_91 = arith.constant dense<0.000000e+00> : vector<64x32xf32>
    %296 = tpu.matmul %294, %295, %cst_91 {dimension_numbers = #tpu.dot_dimension_numbers<[1], [0], [0], [1], [0, 0, 1, 1], [], []>} : vector<64x8xf32>, vector<8x32xf32>, vector<64x32xf32> -> vector<64x32xf32>
    %297 = vector.broadcast %289 : vector<1x32xf32> to vector<64x32xf32>
    %298 = arith.addf %297, %296 : vector<64x32xf32>
    %299 = vector.extract_strided_slice %285 {offsets = [2, 0, 0], sizes = [1, 32, 8], strides = [1, 1, 1]} : vector<8x32x8xf32> to vector<1x32x8xf32>
    %300 = vector.shape_cast %299 : vector<1x32x8xf32> to vector<32x8xf32>
    %301 = vector.extract_strided_slice %285 {offsets = [3, 0, 0], sizes = [1, 32, 8], strides = [1, 1, 1]} : vector<8x32x8xf32> to vector<1x32x8xf32>
    %302 = vector.shape_cast %301 : vector<1x32x8xf32> to vector<32x8xf32>
    %303 = tpu.concatenate %300, %302 in 0 : vector<32x8xf32>, vector<32x8xf32> -> vector<64x8xf32>
    %304 = vector.extract_strided_slice %287 {offsets = [8, 0], sizes = [8, 32], strides = [1, 1]} : vector<32x32xf32> to vector<8x32xf32>
    %cst_92 = arith.constant dense<0.000000e+00> : vector<64x32xf32>
    %305 = tpu.matmul %303, %304, %cst_92 {dimension_numbers = #tpu.dot_dimension_numbers<[1], [0], [0], [1], [0, 0, 1, 1], [], []>} : vector<64x8xf32>, vector<8x32xf32>, vector<64x32xf32> -> vector<64x32xf32>
    %306 = arith.addf %298, %305 : vector<64x32xf32>
    %307 = vector.extract_strided_slice %285 {offsets = [4, 0, 0], sizes = [1, 32, 8], strides = [1, 1, 1]} : vector<8x32x8xf32> to vector<1x32x8xf32>
    %308 = vector.shape_cast %307 : vector<1x32x8xf32> to vector<32x8xf32>
    %309 = vector.extract_strided_slice %285 {offsets = [5, 0, 0], sizes = [1, 32, 8], strides = [1, 1, 1]} : vector<8x32x8xf32> to vector<1x32x8xf32>
    %310 = vector.shape_cast %309 : vector<1x32x8xf32> to vector<32x8xf32>
    %311 = tpu.concatenate %308, %310 in 0 : vector<32x8xf32>, vector<32x8xf32> -> vector<64x8xf32>
    %312 = vector.extract_strided_slice %287 {offsets = [16, 0], sizes = [8, 32], strides = [1, 1]} : vector<32x32xf32> to vector<8x32xf32>
    %cst_93 = arith.constant dense<0.000000e+00> : vector<64x32xf32>
    %313 = tpu.matmul %311, %312, %cst_93 {dimension_numbers = #tpu.dot_dimension_numbers<[1], [0], [0], [1], [0, 0, 1, 1], [], []>} : vector<64x8xf32>, vector<8x32xf32>, vector<64x32xf32> -> vector<64x32xf32>
    %314 = arith.addf %306, %313 : vector<64x32xf32>
    %315 = vector.extract_strided_slice %285 {offsets = [6, 0, 0], sizes = [1, 32, 8], strides = [1, 1, 1]} : vector<8x32x8xf32> to vector<1x32x8xf32>
    %316 = vector.shape_cast %315 : vector<1x32x8xf32> to vector<32x8xf32>
    %317 = vector.extract_strided_slice %285 {offsets = [7, 0, 0], sizes = [1, 32, 8], strides = [1, 1, 1]} : vector<8x32x8xf32> to vector<1x32x8xf32>
    %318 = vector.shape_cast %317 : vector<1x32x8xf32> to vector<32x8xf32>
    %319 = tpu.concatenate %316, %318 in 0 : vector<32x8xf32>, vector<32x8xf32> -> vector<64x8xf32>
    %320 = vector.extract_strided_slice %287 {offsets = [24, 0], sizes = [8, 32], strides = [1, 1]} : vector<32x32xf32> to vector<8x32xf32>
    %cst_94 = arith.constant dense<0.000000e+00> : vector<64x32xf32>
    %321 = tpu.matmul %319, %320, %cst_94 {dimension_numbers = #tpu.dot_dimension_numbers<[1], [0], [0], [1], [0, 0, 1, 1], [], []>} : vector<64x8xf32>, vector<8x32xf32>, vector<64x32xf32> -> vector<64x32xf32>
    %322 = arith.addf %314, %321 : vector<64x32xf32>
    %323 = arith.addf %187, %322 : vector<64x32xf32>
    %c1_95 = arith.constant 1 : index
    %c0_96 = arith.constant 0 : index
    %c0_97 = arith.constant 0 : index
    %324 = vector.load %arg8[%c1_95, %c0_96, %c0_97] : memref<2x1x32xf32, #tpu.memory_space<vmem>>, vector<1x1x32xf32>
    %325 = vector.shape_cast %324 : vector<1x1x32xf32> to vector<1x32xf32>
    %c1_98 = arith.constant 1 : index
    %c0_99 = arith.constant 0 : index
    %c0_100 = arith.constant 0 : index
    %326 = vector.load %arg9[%c1_98, %c0_99, %c0_100] : memref<2x1x32xf32, #tpu.memory_space<vmem>>, vector<1x1x32xf32>
    %327 = vector.shape_cast %326 : vector<1x1x32xf32> to vector<1x32xf32>
    %cst_101 = arith.constant dense<0.000000e+00> : vector<64xf32>
    %328 = vector.multi_reduction <add>, %323, %cst_101 [1] : vector<64x32xf32> to vector<64xf32>
    %329 = vector.shape_cast %328 : vector<64xf32> to vector<64x1xf32>
    %cst_102 = arith.constant 3.200000e+01 : f32
    %330 = vector.broadcast %cst_102 : f32 to vector<64x1xf32>
    %331 = arith.divf %329, %330 : vector<64x1xf32>
    %332 = vector.broadcast %331 : vector<64x1xf32> to vector<64x32xf32>
    %333 = arith.subf %323, %332 : vector<64x32xf32>
    %334 = arith.mulf %333, %333 : vector<64x32xf32>
    %cst_103 = arith.constant dense<0.000000e+00> : vector<64xf32>
    %335 = vector.multi_reduction <add>, %334, %cst_103 [1] : vector<64x32xf32> to vector<64xf32>
    %336 = vector.shape_cast %335 : vector<64xf32> to vector<64x1xf32>
    %cst_104 = arith.constant 3.200000e+01 : f32
    %337 = vector.broadcast %cst_104 : f32 to vector<64x1xf32>
    %338 = arith.divf %336, %337 : vector<64x1xf32>
    %339 = vector.broadcast %331 : vector<64x1xf32> to vector<64x32xf32>
    %340 = arith.subf %323, %339 : vector<64x32xf32>
    %cst_105 = arith.constant 9.99999974E-6 : f32
    %341 = vector.broadcast %cst_105 : f32 to vector<64x1xf32>
    %342 = arith.addf %338, %341 : vector<64x1xf32>
    %343 = math.rsqrt %342 : vector<64x1xf32>
    %344 = vector.broadcast %343 : vector<64x1xf32> to vector<64x32xf32>
    %345 = arith.mulf %340, %344 : vector<64x32xf32>
    %346 = vector.broadcast %325 : vector<1x32xf32> to vector<64x32xf32>
    %347 = arith.mulf %345, %346 : vector<64x32xf32>
    %348 = vector.broadcast %327 : vector<1x32xf32> to vector<64x32xf32>
    %349 = arith.addf %347, %348 : vector<64x32xf32>
    %c1_106 = arith.constant 1 : index
    %c0_107 = arith.constant 0 : index
    %c0_108 = arith.constant 0 : index
    %350 = vector.load %arg10[%c1_106, %c0_107, %c0_108] : memref<2x32x64xf32, #tpu.memory_space<vmem>>, vector<1x32x64xf32>
    %351 = vector.shape_cast %350 : vector<1x32x64xf32> to vector<32x64xf32>
    %cst_109 = arith.constant dense<0.000000e+00> : vector<64x64xf32>
    %352 = tpu.matmul %349, %351, %cst_109 {dimension_numbers = #tpu.dot_dimension_numbers<[1], [0], [0], [1], [0, 0, 1, 1], [], []>} : vector<64x32xf32>, vector<32x64xf32>, vector<64x64xf32> -> vector<64x64xf32>
    %c1_110 = arith.constant 1 : index
    %c0_111 = arith.constant 0 : index
    %c0_112 = arith.constant 0 : index
    %353 = vector.load %arg11[%c1_110, %c0_111, %c0_112] : memref<2x1x64xf32, #tpu.memory_space<vmem>>, vector<1x1x64xf32>
    %354 = vector.shape_cast %353 : vector<1x1x64xf32> to vector<1x64xf32>
    %355 = vector.broadcast %354 : vector<1x64xf32> to vector<64x64xf32>
    %356 = arith.addf %352, %355 : vector<64x64xf32>
    %cst_113 = arith.constant 5.000000e-01 : f32
    %357 = vector.broadcast %cst_113 : f32 to vector<64x64xf32>
    %358 = arith.mulf %357, %356 : vector<64x64xf32>
    %cst_114 = arith.constant 0.707106769 : f32
    %359 = vector.broadcast %cst_114 : f32 to vector<64x64xf32>
    %360 = arith.mulf %356, %359 : vector<64x64xf32>
    %361 = math.erf %360 : vector<64x64xf32>
    %cst_115 = arith.constant 1.000000e+00 : f32
    %362 = vector.broadcast %cst_115 : f32 to vector<64x64xf32>
    %363 = arith.addf %362, %361 : vector<64x64xf32>
    %364 = arith.mulf %358, %363 : vector<64x64xf32>
    %c1_116 = arith.constant 1 : index
    %c0_117 = arith.constant 0 : index
    %c0_118 = arith.constant 0 : index
    %365 = vector.load %arg12[%c1_116, %c0_117, %c0_118] : memref<2x64x32xf32, #tpu.memory_space<vmem>>, vector<1x64x32xf32>
    %366 = vector.shape_cast %365 : vector<1x64x32xf32> to vector<64x32xf32>
    %cst_119 = arith.constant dense<0.000000e+00> : vector<64x32xf32>
    %367 = tpu.matmul %364, %366, %cst_119 {dimension_numbers = #tpu.dot_dimension_numbers<[1], [0], [0], [1], [0, 0, 1, 1], [], []>} : vector<64x64xf32>, vector<64x32xf32>, vector<64x32xf32> -> vector<64x32xf32>
    %c1_120 = arith.constant 1 : index
    %c0_121 = arith.constant 0 : index
    %c0_122 = arith.constant 0 : index
    %368 = vector.load %arg13[%c1_120, %c0_121, %c0_122] : memref<2x1x32xf32, #tpu.memory_space<vmem>>, vector<1x1x32xf32>
    %369 = vector.shape_cast %368 : vector<1x1x32xf32> to vector<1x32xf32>
    %370 = vector.broadcast %369 : vector<1x32xf32> to vector<64x32xf32>
    %371 = arith.addf %367, %370 : vector<64x32xf32>
    %372 = arith.addf %323, %371 : vector<64x32xf32>
    %c0_123 = arith.constant 0 : index
    %c0_124 = arith.constant 0 : index
    %373 = vector.load %arg14[%c0_123, %c0_124] : memref<1x32xf32, #tpu.memory_space<vmem>>, vector<1x32xf32>
    %c0_125 = arith.constant 0 : index
    %c0_126 = arith.constant 0 : index
    %374 = vector.load %arg15[%c0_125, %c0_126] : memref<1x32xf32, #tpu.memory_space<vmem>>, vector<1x32xf32>
    %cst_127 = arith.constant dense<0.000000e+00> : vector<64xf32>
    %375 = vector.multi_reduction <add>, %372, %cst_127 [1] : vector<64x32xf32> to vector<64xf32>
    %376 = vector.shape_cast %375 : vector<64xf32> to vector<64x1xf32>
    %cst_128 = arith.constant 3.200000e+01 : f32
    %377 = vector.broadcast %cst_128 : f32 to vector<64x1xf32>
    %378 = arith.divf %376, %377 : vector<64x1xf32>
    %379 = vector.broadcast %378 : vector<64x1xf32> to vector<64x32xf32>
    %380 = arith.subf %372, %379 : vector<64x32xf32>
    %381 = arith.mulf %380, %380 : vector<64x32xf32>
    %cst_129 = arith.constant dense<0.000000e+00> : vector<64xf32>
    %382 = vector.multi_reduction <add>, %381, %cst_129 [1] : vector<64x32xf32> to vector<64xf32>
    %383 = vector.shape_cast %382 : vector<64xf32> to vector<64x1xf32>
    %cst_130 = arith.constant 3.200000e+01 : f32
    %384 = vector.broadcast %cst_130 : f32 to vector<64x1xf32>
    %385 = arith.divf %383, %384 : vector<64x1xf32>
    %386 = vector.broadcast %378 : vector<64x1xf32> to vector<64x32xf32>
    %387 = arith.subf %372, %386 : vector<64x32xf32>
    %cst_131 = arith.constant 9.99999974E-6 : f32
    %388 = vector.broadcast %cst_131 : f32 to vector<64x1xf32>
    %389 = arith.addf %385, %388 : vector<64x1xf32>
    %390 = math.rsqrt %389 : vector<64x1xf32>
    %391 = vector.broadcast %390 : vector<64x1xf32> to vector<64x32xf32>
    %392 = arith.mulf %387, %391 : vector<64x32xf32>
    %393 = vector.broadcast %373 : vector<1x32xf32> to vector<64x32xf32>
    %394 = arith.mulf %392, %393 : vector<64x32xf32>
    %395 = vector.broadcast %374 : vector<1x32xf32> to vector<64x32xf32>
    %396 = arith.addf %394, %395 : vector<64x32xf32>
    %c0_132 = arith.constant 0 : index
    %c0_133 = arith.constant 0 : index
    %397 = vector.load %arg16[%c0_132, %c0_133] : memref<64x32xf32, #tpu.memory_space<vmem>>, vector<64x32xf32>
    tpu.vector_store %arg16[%c0_132, %c0_133], %396 {strides = array<i32>} : memref<64x32xf32, #tpu.memory_space<vmem>>, vector<64x32xf32>,
    return
  }
}

</mosaic_0001>

<llo_original>
// kernel: vit_forward.1
$region0: #{vit_forward.1}
  #allocation0 [shape = 'u32[]', space=smem, size = 0x4, offset = 0x4, fixed_abs, tag = 'smem constant byte address 0x4 - core index']
  #allocation1 [shape = 'u32[72,128]{1,0:T(1,128)}', space=vmem, size = 0x9000, scoped, tag = 'internal scratch']
  %s0 = inlined_call_operand.vmem [shape: f32[64,32], index: 0, kind: input, shape index: {}]
  %s1 = inlined_call_operand.vmem [shape: f32[64,32], index: 1, kind: input, shape index: {}]
  %s2 = inlined_call_operand.vmem [shape: f32[2,1,32], index: 2, kind: input, shape index: {}]
  %s3 = inlined_call_operand.vmem [shape: f32[2,1,32], index: 3, kind: input, shape index: {}]
  %s4 = inlined_call_operand.vmem [shape: f32[2,32,96], index: 4, kind: input, shape index: {}]
  %s5 = inlined_call_operand.vmem [shape: f32[2,1,96], index: 5, kind: input, shape index: {}]
  %s6 = inlined_call_operand.vmem [shape: f32[2,32,32], index: 6, kind: input, shape index: {}]
  %s7 = inlined_call_operand.vmem [shape: f32[2,1,32], index: 7, kind: input, shape index: {}]
  %s8 = inlined_call_operand.vmem [shape: f32[2,1,32], index: 8, kind: input, shape index: {}]
  %s9 = inlined_call_operand.vmem [shape: f32[2,1,32], index: 9, kind: input, shape index: {}]
  %s10 = inlined_call_operand.vmem [shape: f32[2,32,64], index: 10, kind: input, shape index: {}]
  %s11 = inlined_call_operand.vmem [shape: f32[2,1,64], index: 11, kind: input, shape index: {}]
  %s12 = inlined_call_operand.vmem [shape: f32[2,64,32], index: 12, kind: input, shape index: {}]
  %s13 = inlined_call_operand.vmem [shape: f32[2,1,32], index: 13, kind: input, shape index: {}]
  %s14 = inlined_call_operand.vmem [shape: f32[1,32], index: 14, kind: input, shape index: {}]
  %s15 = inlined_call_operand.vmem [shape: f32[1,32], index: 15, kind: input, shape index: {}]
  %s16 = inlined_call_operand.vmem [shape: f32[64,32], index: 16, kind: output, shape index: {}]
  %s17 = sld [smem:[#allocation0]]
  $region74: #{vit_forward.1} parent=0
    _
  %s19 = ssub.s32 1, %s17
  %s20 = scalar_select 0, %s19, %s17
  // Predicated region
  $region2: #{vit_forward.1} parent=0 // pred_check
    _
  $region3: #{vit_forward.1} parent=0 // pred_check_branch
    %22 = sbr.rel (0) target = $region5
  $region4: #{vit_forward.1} parent=0 // pred_region
    _
  $region5: #{vit_forward.1} parent=0 // pred_fallthru
    _
  // Predicated region
  $region6: #{vit_forward.1} parent=0 // pred_check
    _
  $region7: #{vit_forward.1} parent=0 // pred_check_branch
    %24 = sbr.rel (0) target = $region9
  $region8: #{vit_forward.1} parent=0 // pred_region
    _
  $region9: #{vit_forward.1} parent=0 // pred_fallthru
    _
  // Predicated region
  $region10: #{vit_forward.1} parent=0 // pred_check
    _
  $region11: #{vit_forward.1} parent=0 // pred_check_branch
    %26 = sbr.rel (0) target = $region13
  $region12: #{vit_forward.1} parent=0 // pred_region
    _
  $region13: #{vit_forward.1} parent=0 // pred_fallthru
    _
  // Predicated region
  $region14: #{vit_forward.1} parent=0 // pred_check
    _
  $region15: #{vit_forward.1} parent=0 // pred_check_branch
    %28 = sbr.rel (0) target = $region17
  $region16: #{vit_forward.1} parent=0 // pred_region
    _
  $region17: #{vit_forward.1} parent=0 // pred_fallthru
    _
  // Predicated region
  $region18: #{vit_forward.1} parent=0 // pred_check
    _
  $region19: #{vit_forward.1} parent=0 // pred_check_branch
    %30 = sbr.rel (0) target = $region21
  $region20: #{vit_forward.1} parent=0 // pred_region
    _
  $region21: #{vit_forward.1} parent=0 // pred_fallthru
    _
  // Predicated region
  $region22: #{vit_forward.1} parent=0 // pred_check
    _
  $region23: #{vit_forward.1} parent=0 // pred_check_branch
    %32 = sbr.rel (0) target = $region25
  $region24: #{vit_forward.1} parent=0 // pred_region
    _
  $region25: #{vit_forward.1} parent=0 // pred_fallthru
    _
  // Predicated region
  $region26: #{vit_forward.1} parent=0 // pred_check
    _
  $region27: #{vit_forward.1} parent=0 // pred_check_branch
    %34 = sbr.rel (0) target = $region29
  $region28: #{vit_forward.1} parent=0 // pred_region
    _
  $region29: #{vit_forward.1} parent=0 // pred_fallthru
    _
  // Predicated region
  $region30: #{vit_forward.1} parent=0 // pred_check
    _
  $region31: #{vit_forward.1} parent=0 // pred_check_branch
    %36 = sbr.rel (0) target = $region33
  $region32: #{vit_forward.1} parent=0 // pred_region
    _
  $region33: #{vit_forward.1} parent=0 // pred_fallthru
    _
  // Predicated region
  $region34: #{vit_forward.1} parent=0 // pred_check
    _
  $region35: #{vit_forward.1} parent=0 // pred_check_branch
    %38 = sbr.rel (0) target = $region37
  $region36: #{vit_forward.1} parent=0 // pred_region
    _
  $region37: #{vit_forward.1} parent=0 // pred_fallthru
    _
  // Predicated region
  $region38: #{vit_forward.1} parent=0 // pred_check
    _
  $region39: #{vit_forward.1} parent=0 // pred_check_branch
    %40 = sbr.rel (0) target = $region41
  $region40: #{vit_forward.1} parent=0 // pred_region
    _
  $region41: #{vit_forward.1} parent=0 // pred_fallthru
    _
  // Predicated region
  $region42: #{vit_forward.1} parent=0 // pred_check
    _
  $region43: #{vit_forward.1} parent=0 // pred_check_branch
    %42 = sbr.rel (0) target = $region45
  $region44: #{vit_forward.1} parent=0 // pred_region
    _
  $region45: #{vit_forward.1} parent=0 // pred_fallthru
    _
  // Predicated region
  $region46: #{vit_forward.1} parent=0 // pred_check
    _
  $region47: #{vit_forward.1} parent=0 // pred_check_branch
    %44 = sbr.rel (0) target = $region49
  $region48: #{vit_forward.1} parent=0 // pred_region
    _
  $region49: #{vit_forward.1} parent=0 // pred_fallthru
    _
  // Predicated region
  $region50: #{vit_forward.1} parent=0 // pred_check
    _
  $region51: #{vit_forward.1} parent=0 // pred_check_branch
    %46 = sbr.rel (0) target = $region53
  $region52: #{vit_forward.1} parent=0 // pred_region
    _
  $region53: #{vit_forward.1} parent=0 // pred_fallthru
    _
  // Predicated region
  $region54: #{vit_forward.1} parent=0 // pred_check
    _
  $region55: #{vit_forward.1} parent=0 // pred_check_branch
    %48 = sbr.rel (0) target = $region57
  $region56: #{vit_forward.1} parent=0 // pred_region
    _
  $region57: #{vit_forward.1} parent=0 // pred_fallthru
    _
  // Predicated region
  $region58: #{vit_forward.1} parent=0 // pred_check
    _
  $region59: #{vit_forward.1} parent=0 // pred_check_branch
    %50 = sbr.rel (0) target = $region61
  $region60: #{vit_forward.1} parent=0 // pred_region
    _
  $region61: #{vit_forward.1} parent=0 // pred_fallthru
    _
  // Predicated region
  $region62: #{vit_forward.1} parent=0 // pred_check
    _
  $region63: #{vit_forward.1} parent=0 // pred_check_branch
    %52 = sbr.rel (0) target = $region65
  $region64: #{vit_forward.1} parent=0 // pred_region
    _
  $region65: #{vit_forward.1} parent=0 // pred_fallthru
    _
  %v53 = vld [vmem:[%s0] sm:$0xff]
  %v54 = vld [vmem:[%s0 + $0x8] sm:$0xff]
  %v55 = vld [vmem:[%s0 + $0x10] sm:$0xff]
  %v56 = vld [vmem:[%s0 + $0x18] sm:$0xff]
  %v57 = vld [vmem:[%s0 + $0x20] sm:$0xff]
  %v58 = vld [vmem:[%s0 + $0x28] sm:$0xff]
  %v59 = vld [vmem:[%s0 + $0x30] sm:$0xff]
  %v60 = vld [vmem:[%s0 + $0x38] sm:$0xff]
  %v61 = vld [vmem:[%s1] sm:$0xff]
  %v62 = vld [vmem:[%s1 + $0x8] sm:$0xff]
  %v63 = vld [vmem:[%s1 + $0x10] sm:$0xff]
  %v64 = vld [vmem:[%s1 + $0x18] sm:$0xff]
  %v65 = vld [vmem:[%s1 + $0x20] sm:$0xff]
  %v66 = vld [vmem:[%s1 + $0x28] sm:$0xff]
  %v67 = vld [vmem:[%s1 + $0x30] sm:$0xff]
  %v68 = vld [vmem:[%s1 + $0x38] sm:$0xff]
  %v69 = vadd.f32 %v53, %v61
  %v70 = vadd.f32 %v54, %v62
  %v71 = vadd.f32 %v55, %v63
  %v72 = vadd.f32 %v56, %v64
  %v73 = vadd.f32 %v57, %v65
  %v74 = vadd.f32 %v58, %v66
  %v75 = vadd.f32 %v59, %v67
  %v76 = vadd.f32 %v60, %v68
  %v77 = vld [vmem:[%s2] sm:$0x1]
  %v78 = vld [vmem:[%s3] sm:$0x1]
  %vm79 = vcmask 261120
  %v80 = vsel %vm79, %v69, 0.0
  %81 = vadd.xlane.f32.xlu0 %v80
  %v82 = vpop.xlane.xlu0 %81
  %v83 = vsel %vm79, %v70, 0.0
  %84 = vadd.xlane.f32.xlu0 %v83
  %v85 = vpop.xlane.xlu0 %84
  %v86 = vsel %vm79, %v71, 0.0
  %87 = vadd.xlane.f32.xlu0 %v86
  %v88 = vpop.xlane.xlu0 %87
  %v89 = vsel %vm79, %v72, 0.0
  %90 = vadd.xlane.f32.xlu0 %v89
  %v91 = vpop.xlane.xlu0 %90
  %v92 = vsel %vm79, %v73, 0.0
  %93 = vadd.xlane.f32.xlu0 %v92
  %v94 = vpop.xlane.xlu0 %93
  %v95 = vsel %vm79, %v74, 0.0
  %96 = vadd.xlane.f32.xlu0 %v95
  %v97 = vpop.xlane.xlu0 %96
  %v98 = vsel %vm79, %v75, 0.0
  %99 = vadd.xlane.f32.xlu0 %v98
  %v100 = vpop.xlane.xlu0 %99
  %v101 = vsel %vm79, %v76, 0.0
  %102 = vadd.xlane.f32.xlu0 %v101
  %v103 = vpop.xlane.xlu0 %102
  %v104 = vrcp.pop 32.0
  %v105 = vmul.f32 32.0, %v104
  %v106 = vsub.f32 1.0, %v105
  %v107 = vmul.f32 %v104, %v106
  %v108 = vadd.f32 %v104, %v107
  %vm109 = vweird.f32 %v104
  %v110 = vsel %vm109, %v104, %v108
  %v111 = vmul.f32 %v82, %v110
  %v112 = vmul.f32 %v85, %v110
  %v113 = vmul.f32 %v88, %v110
  %v114 = vmul.f32 %v91, %v110
  %v115 = vmul.f32 %v94, %v110
  %v116 = vmul.f32 %v97, %v110
  %v117 = vmul.f32 %v100, %v110
  %v118 = vmul.f32 %v103, %v110
  %v119 = vsub.f32 %v69, %v111
  %v120 = vsub.f32 %v70, %v112
  %v121 = vsub.f32 %v71, %v113
  %v122 = vsub.f32 %v72, %v114
  %v123 = vsub.f32 %v73, %v115
  %v124 = vsub.f32 %v74, %v116
  %v125 = vsub.f32 %v75, %v117
  %v126 = vsub.f32 %v76, %v118
  %v127 = vmul.f32 %v119, %v119
  %v128 = vmul.f32 %v120, %v120
  %v129 = vmul.f32 %v121, %v121
  %v130 = vmul.f32 %v122, %v122
  %v131 = vmul.f32 %v123, %v123
  %v132 = vmul.f32 %v124, %v124
  %v133 = vmul.f32 %v125, %v125
  %v134 = vmul.f32 %v126, %v126
  %v135 = vsel %vm79, %v127, 0.0
  %136 = vadd.xlane.f32.xlu0 %v135
  %v137 = vpop.xlane.xlu0 %136
  %v138 = vsel %vm79, %v128, 0.0
  %139 = vadd.xlane.f32.xlu0 %v138
  %v140 = vpop.xlane.xlu0 %139
  %v141 = vsel %vm79, %v129, 0.0
  %142 = vadd.xlane.f32.xlu0 %v141
  %v143 = vpop.xlane.xlu0 %142
  %v144 = vsel %vm79, %v130, 0.0
  %145 = vadd.xlane.f32.xlu0 %v144
  %v146 = vpop.xlane.xlu0 %145
  %v147 = vsel %vm79, %v131, 0.0
  %148 = vadd.xlane.f32.xlu0 %v147
  %v149 = vpop.xlane.xlu0 %148
  %v150 = vsel %vm79, %v132, 0.0
  %151 = vadd.xlane.f32.xlu0 %v150
  %v152 = vpop.xlane.xlu0 %151
  %v153 = vsel %vm79, %v133, 0.0
  %154 = vadd.xlane.f32.xlu0 %v153
  %v155 = vpop.xlane.xlu0 %154
  %v156 = vsel %vm79, %v134, 0.0
  %157 = vadd.xlane.f32.xlu0 %v156
  %v158 = vpop.xlane.xlu0 %157
  %v159 = vmul.f32 %v137, %v110
  %v160 = vmul.f32 %v140, %v110
  %v161 = vmul.f32 %v143, %v110
  %v162 = vmul.f32 %v146, %v110
  %v163 = vmul.f32 %v149, %v110
  %v164 = vmul.f32 %v152, %v110
  %v165 = vmul.f32 %v155, %v110
  %v166 = vmul.f32 %v158, %v110
  %v167 = vadd.f32 %v159, 1e-05
  %v168 = vadd.f32 %v160, 1e-05
  %v169 = vadd.f32 %v161, 1e-05
  %v170 = vadd.f32 %v162, 1e-05
  %v171 = vadd.f32 %v163, 1e-05
  %v172 = vadd.f32 %v164, 1e-05
  %v173 = vadd.f32 %v165, 1e-05
  %v174 = vadd.f32 %v166, 1e-05
  %v175 = vrsqrt.pop %v167
  %v176 = vmul.f32 %v175, %v167
  %v177 = vmul.f32 %v176, %v175
  %v178 = vmul.f32 0.5, %v177
  %v179 = vsub.f32 1.5, %v178
  %v180 = vmul.f32 %v175, %v179
  %vm181 = vweird.f32 %v167
  %vm182 = vweird.f32 %v175
  %vm183 = vmor %vm181, %vm182
  %v184 = vsel %vm183, %v175, %v180
  %v185 = vrsqrt.pop %v168
  %v186 = vmul.f32 %v185, %v168
  %v187 = vmul.f32 %v186, %v185
  %v188 = vmul.f32 0.5, %v187
  %v189 = vsub.f32 1.5, %v188
  %v190 = vmul.f32 %v185, %v189
  %vm191 = vweird.f32 %v168
  %vm192 = vweird.f32 %v185
  %vm193 = vmor %vm191, %vm192
  %v194 = vsel %vm193, %v185, %v190
  %v195 = vrsqrt.pop %v169
  %v196 = vmul.f32 %v195, %v169
  %v197 = vmul.f32 %v196, %v195
  %v198 = vmul.f32 0.5, %v197
  %v199 = vsub.f32 1.5, %v198
  %v200 = vmul.f32 %v195, %v199
  %vm201 = vweird.f32 %v169
  %vm202 = vweird.f32 %v195
  %vm203 = vmor %vm201, %vm202
  %v204 = vsel %vm203, %v195, %v200
  %v205 = vrsqrt.pop %v170
  %v206 = vmul.f32 %v205, %v170
  %v207 = vmul.f32 %v206, %v205
  %v208 = vmul.f32 0.5, %v207
  %v209 = vsub.f32 1.5, %v208
  %v210 = vmul.f32 %v205, %v209
  %vm211 = vweird.f32 %v170
  %vm212 = vweird.f32 %v205
  %vm213 = vmor %vm211, %vm212
  %v214 = vsel %vm213, %v205, %v210
  %v215 = vrsqrt.pop %v171
  %v216 = vmul.f32 %v215, %v171
  %v217 = vmul.f32 %v216, %v215
  %v218 = vmul.f32 0.5, %v217
  %v219 = vsub.f32 1.5, %v218
  %v220 = vmul.f32 %v215, %v219
  %vm221 = vweird.f32 %v171
  %vm222 = vweird.f32 %v215
  %vm223 = vmor %vm221, %vm222
  %v224 = vsel %vm223, %v215, %v220
  %v225 = vrsqrt.pop %v172
  %v226 = vmul.f32 %v225, %v172
  %v227 = vmul.f32 %v226, %v225
  %v228 = vmul.f32 0.5, %v227
  %v229 = vsub.f32 1.5, %v228
  %v230 = vmul.f32 %v225, %v229
  %vm231 = vweird.f32 %v172
  %vm232 = vweird.f32 %v225
  %vm233 = vmor %vm231, %vm232
  %v234 = vsel %vm233, %v225, %v230
  %v235 = vrsqrt.pop %v173
  %v236 = vmul.f32 %v235, %v173
  %v237 = vmul.f32 %v236, %v235
  %v238 = vmul.f32 0.5, %v237
  %v239 = vsub.f32 1.5, %v238
  %v240 = vmul.f32 %v235, %v239
  %vm241 = vweird.f32 %v173
  %vm242 = vweird.f32 %v235
  %vm243 = vmor %vm241, %vm242
  %v244 = vsel %vm243, %v235, %v240
  %v245 = vrsqrt.pop %v174
  %v246 = vmul.f32 %v245, %v174
  %v247 = vmul.f32 %v246, %v245
  %v248 = vmul.f32 0.5, %v247
  %v249 = vsub.f32 1.5, %v248
  %v250 = vmul.f32 %v245, %v249
  %vm251 = vweird.f32 %v174
  %vm252 = vweird.f32 %v245
  %vm253 = vmor %vm251, %vm252
  %v254 = vsel %vm253, %v245, %v250
  %v255 = vmul.f32 %v119, %v184
  %v256 = vmul.f32 %v120, %v194
  %v257 = vmul.f32 %v121, %v204
  %v258 = vmul.f32 %v122, %v214
  %v259 = vmul.f32 %v123, %v224
  %v260 = vmul.f32 %v124, %v234
  %v261 = vmul.f32 %v125, %v244
  %v262 = vmul.f32 %v126, %v254
  %v264 = vperm.slane %v77, 0
  %v266 = vmul.f32 %v255, %v264
  %v267 = vmul.f32 %v256, %v264
  %v268 = vmul.f32 %v257, %v264
  %v269 = vmul.f32 %v258, %v264
  %v270 = vmul.f32 %v259, %v264
  %v271 = vmul.f32 %v260, %v264
  %v272 = vmul.f32 %v261, %v264
  %v273 = vmul.f32 %v262, %v264
  %v275 = vperm.slane %v78, 0
  %v277 = vadd.f32 %v266, %v275
  %v278 = vadd.f32 %v267, %v275
  %v279 = vadd.f32 %v268, %v275
  %v280 = vadd.f32 %v269, %v275
  %v281 = vadd.f32 %v270, %v275
  %v282 = vadd.f32 %v271, %v275
  %v283 = vadd.f32 %v272, %v275
  %v284 = vadd.f32 %v273, %v275
  %v285 = vld [vmem:[%s4] sm:$0xff]
  %v286 = vld [vmem:[%s4 + $0x8] sm:$0xff]
  %v287 = vld [vmem:[%s4 + $0x10] sm:$0xff]
  %v288 = vld [vmem:[%s4 + $0x18] sm:$0xff]
  %v289 = vld [vmem:[%s5] sm:$0x1]
  %v291 = vperm.slane %v289, 0
  %v294 = vsel %vm79, %v277, 0
  %v297 = vsel %vm79, %v278, 0
  %v300 = vsel %vm79, %v279, 0
  %v303 = vsel %vm79, %v280, 0
  %v306 = vsel %vm79, %v281, 0
  %v309 = vsel %vm79, %v282, 0
  %v312 = vsel %vm79, %v283, 0
  %v315 = vsel %vm79, %v284, 0
  %317 = vmatpush.msra.mxu0 0.0
  %318 = vmatpush.msra.mxu0 0.0
  %319 = vmatpush.msra.mxu0 0.0
  %320 = vmatpush.msra.mxu0 0.0
  %321 = vmatpush.msra.mxu0 0.0
  %322 = vmatpush.msra.mxu0 0.0
  %323 = vmatpush.msra.mxu0 0.0
  %324 = vmatpush.msra.mxu0 0.0
  %325 = vmatpush.msra.mxu0 0.0
  %326 = vmatpush.msra.mxu0 0.0
  %327 = vmatpush.msra.mxu0 0.0
  %328 = vmatpush.msra.mxu0 0.0
  %329 = vmatpush.msra.mxu0 %v288
  %330 = vmatpush.msra.mxu0 %v287
  %331 = vmatpush.msra.mxu0 %v286
  %332 = vmatpush.msra.mxu0 %v285
  %333 = vmatmul.f32.gmra.mxu0 %v294
  %v334 = vpop.f32.mrf.mxu0
  %v335 = vadd.f32 %v291, %v334
  %336 = vmatmul.f32.gmra.mxu0 %v297
  %v337 = vpop.f32.mrf.mxu0
  %v338 = vadd.f32 %v291, %v337
  %339 = vmatmul.f32.gmra.mxu0 %v300
  %v340 = vpop.f32.mrf.mxu0
  %v341 = vadd.f32 %v291, %v340
  %342 = vmatmul.f32.gmra.mxu0 %v303
  %v343 = vpop.f32.mrf.mxu0
  %v344 = vadd.f32 %v291, %v343
  %345 = vmatmul.f32.gmra.mxu0 %v306
  %v346 = vpop.f32.mrf.mxu0
  %v347 = vadd.f32 %v291, %v346
  %348 = vmatmul.f32.gmra.mxu0 %v309
  %v349 = vpop.f32.mrf.mxu0
  %v350 = vadd.f32 %v291, %v349
  %351 = vmatmul.f32.gmra.mxu0 %v312
  %v352 = vpop.f32.mrf.mxu0
  %v353 = vadd.f32 %v291, %v352
  %354 = vmatmul.f32.gmra.mxu0 %v315
  %v355 = vpop.f32.mrf.mxu0
  %v356 = vadd.f32 %v291, %v355
  %357 = vdwg.mxu0
  %362 = vrot.lane.b32.xlu0 %v335, 120
  %v363 = vpop.permute.xlu0 %362
  %364 = vrot.lane.b32.xlu0 %v338, 120
  %v365 = vpop.permute.xlu0 %364
  %366 = vrot.lane.b32.xlu0 %v341, 120
  %v367 = vpop.permute.xlu0 %366
  %368 = vrot.lane.b32.xlu0 %v344, 120
  %v369 = vpop.permute.xlu0 %368
  %374 = vrot.lane.b32.xlu0 %v347, 120
  %v375 = vpop.permute.xlu0 %374
  %376 = vrot.lane.b32.xlu0 %v350, 120
  %v377 = vpop.permute.xlu0 %376
  %378 = vrot.lane.b32.xlu0 %v353, 120
  %v379 = vpop.permute.xlu0 %378
  %380 = vrot.lane.b32.xlu0 %v356, 120
  %v381 = vpop.permute.xlu0 %380
  %382 = vrot.lane.b32.xlu0 %v335, 112
  %v383 = vpop.permute.xlu0 %382
  %384 = vrot.lane.b32.xlu0 %v338, 112
  %v385 = vpop.permute.xlu0 %384
  %386 = vrot.lane.b32.xlu0 %v341, 112
  %v387 = vpop.permute.xlu0 %386
  %388 = vrot.lane.b32.xlu0 %v344, 112
  %v389 = vpop.permute.xlu0 %388
  %390 = vrot.lane.b32.xlu0 %v347, 112
  %v391 = vpop.permute.xlu0 %390
  %392 = vrot.lane.b32.xlu0 %v350, 112
  %v393 = vpop.permute.xlu0 %392
  %394 = vrot.lane.b32.xlu0 %v353, 112
  %v395 = vpop.permute.xlu0 %394
  %396 = vrot.lane.b32.xlu0 %v356, 112
  %v397 = vpop.permute.xlu0 %396
  %398 = vrot.lane.b32.xlu0 %v335, 104
  %v399 = vpop.permute.xlu0 %398
  %400 = vrot.lane.b32.xlu0 %v338, 104
  %v401 = vpop.permute.xlu0 %400
  %402 = vrot.lane.b32.xlu0 %v341, 104
  %v403 = vpop.permute.xlu0 %402
  %404 = vrot.lane.b32.xlu0 %v344, 104
  %v405 = vpop.permute.xlu0 %404
  %406 = vrot.lane.b32.xlu0 %v347, 104
  %v407 = vpop.permute.xlu0 %406
  %408 = vrot.lane.b32.xlu0 %v350, 104
  %v409 = vpop.permute.xlu0 %408
  %410 = vrot.lane.b32.xlu0 %v353, 104
  %v411 = vpop.permute.xlu0 %410
  %412 = vrot.lane.b32.xlu0 %v356, 104
  %v413 = vpop.permute.xlu0 %412
  %414 = vrot.lane.b32.xlu0 %v335, 96
  %v415 = vpop.permute.xlu0 %414
  %416 = vrot.lane.b32.xlu0 %v338, 96
  %v417 = vpop.permute.xlu0 %416
  %418 = vrot.lane.b32.xlu0 %v341, 96
  %v419 = vpop.permute.xlu0 %418
  %420 = vrot.lane.b32.xlu0 %v344, 96
  %v421 = vpop.permute.xlu0 %420
  %vm422 = vcmask 64512
  %v423 = vsel %vm422, %v335, 0
  %v425 = vsel %vm422, %v338, 0
  %v427 = vsel %vm422, %v341, 0
  %v429 = vsel %vm422, %v344, 0
  %v431 = vsel %vm422, %v415, 0
  %v433 = vsel %vm422, %v417, 0
  %v435 = vsel %vm422, %v419, 0
  %v437 = vsel %vm422, %v421, 0
  %439 = vmatpush.xpose.msra.mxu0 0.0
  %440 = vmatpush.xpose.msra.mxu0 0.0
  %441 = vmatpush.xpose.msra.mxu0 0.0
  %442 = vmatpush.xpose.msra.mxu0 0.0
  %443 = vmatpush.xpose.msra.mxu0 0.0
  %444 = vmatpush.xpose.msra.mxu0 0.0
  %445 = vmatpush.xpose.msra.mxu0 0.0
  %446 = vmatpush.xpose.msra.mxu0 0.0
  %447 = vmatpush.xpose.msra.mxu0 0.0
  %448 = vmatpush.xpose.msra.mxu0 0.0
  %449 = vmatpush.xpose.msra.mxu0 0.0
  %450 = vmatpush.xpose.msra.mxu0 0.0
  %451 = vmatpush.xpose.msra.mxu0 %v437
  %452 = vmatpush.xpose.msra.mxu0 %v435
  %453 = vmatpush.xpose.msra.mxu0 %v433
  %454 = vmatpush.xpose.msra.mxu0 %v431
  %455 = vmatmul.f32.gmra.mxu0 %v423
  %v456 = vpop.f32.mrf.mxu0
  %v457 = vadd.f32 0.0, %v456
  %458 = vmatmul.f32.gmra.mxu0 %v425
  %v459 = vpop.f32.mrf.mxu0
  %v460 = vadd.f32 0.0, %v459
  %461 = vmatmul.f32.gmra.mxu0 %v427
  %v462 = vpop.f32.mrf.mxu0
  %v463 = vadd.f32 0.0, %v462
  %464 = vmatmul.f32.gmra.mxu0 %v429
  %v465 = vpop.f32.mrf.mxu0
  %v466 = vadd.f32 0.0, %v465
  %467 = vdwg.mxu0
  %468 = vrot.lane.b32.xlu0 %v347, 96
  %v469 = vpop.permute.xlu0 %468
  %470 = vrot.lane.b32.xlu0 %v350, 96
  %v471 = vpop.permute.xlu0 %470
  %472 = vrot.lane.b32.xlu0 %v353, 96
  %v473 = vpop.permute.xlu0 %472
  %474 = vrot.lane.b32.xlu0 %v356, 96
  %v475 = vpop.permute.xlu0 %474
  %v476 = vsel %vm422, %v347, 0
  %v478 = vsel %vm422, %v350, 0
  %v480 = vsel %vm422, %v353, 0
  %v482 = vsel %vm422, %v356, 0
  %v484 = vsel %vm422, %v469, 0
  %v486 = vsel %vm422, %v471, 0
  %v488 = vsel %vm422, %v473, 0
  %v490 = vsel %vm422, %v475, 0
  %492 = vmatpush.xpose.msra.mxu0 0.0
  %493 = vmatpush.xpose.msra.mxu0 0.0
  %494 = vmatpush.xpose.msra.mxu0 0.0
  %495 = vmatpush.xpose.msra.mxu0 0.0
  %496 = vmatpush.xpose.msra.mxu0 0.0
  %497 = vmatpush.xpose.msra.mxu0 0.0
  %498 = vmatpush.xpose.msra.mxu0 0.0
  %499 = vmatpush.xpose.msra.mxu0 0.0
  %500 = vmatpush.xpose.msra.mxu0 0.0
  %501 = vmatpush.xpose.msra.mxu0 0.0
  %502 = vmatpush.xpose.msra.mxu0 0.0
  %503 = vmatpush.xpose.msra.mxu0 0.0
  %504 = vmatpush.xpose.msra.mxu0 %v490
  %505 = vmatpush.xpose.msra.mxu0 %v488
  %506 = vmatpush.xpose.msra.mxu0 %v486
  %507 = vmatpush.xpose.msra.mxu0 %v484
  %508 = vmatmul.f32.gmra.mxu0 %v476
  %v509 = vpop.f32.mrf.mxu0
  %v510 = vadd.f32 0.0, %v509
  %511 = vmatmul.f32.gmra.mxu0 %v478
  %v512 = vpop.f32.mrf.mxu0
  %v513 = vadd.f32 0.0, %v512
  %514 = vmatmul.f32.gmra.mxu0 %v480
  %v515 = vpop.f32.mrf.mxu0
  %v516 = vadd.f32 0.0, %v515
  %517 = vmatmul.f32.gmra.mxu0 %v482
  %v518 = vpop.f32.mrf.mxu0
  %v519 = vadd.f32 0.0, %v518
  %520 = vdwg.mxu0
  %521 = vrot.lane.b32.xlu0 %v363, 96
  %v522 = vpop.permute.xlu0 %521
  %523 = vrot.lane.b32.xlu0 %v365, 96
  %v524 = vpop.permute.xlu0 %523
  %525 = vrot.lane.b32.xlu0 %v367, 96
  %v526 = vpop.permute.xlu0 %525
  %527 = vrot.lane.b32.xlu0 %v369, 96
  %v528 = vpop.permute.xlu0 %527
  %v529 = vsel %vm422, %v363, 0
  %v531 = vsel %vm422, %v365, 0
  %v533 = vsel %vm422, %v367, 0
  %v535 = vsel %vm422, %v369, 0
  %v537 = vsel %vm422, %v522, 0
  %v539 = vsel %vm422, %v524, 0
  %v541 = vsel %vm422, %v526, 0
  %v543 = vsel %vm422, %v528, 0
  %545 = vmatpush.xpose.msra.mxu0 0.0
  %546 = vmatpush.xpose.msra.mxu0 0.0
  %547 = vmatpush.xpose.msra.mxu0 0.0
  %548 = vmatpush.xpose.msra.mxu0 0.0
  %549 = vmatpush.xpose.msra.mxu0 0.0
  %550 = vmatpush.xpose.msra.mxu0 0.0
  %551 = vmatpush.xpose.msra.mxu0 0.0
  %552 = vmatpush.xpose.msra.mxu0 0.0
  %553 = vmatpush.xpose.msra.mxu0 0.0
  %554 = vmatpush.xpose.msra.mxu0 0.0
  %555 = vmatpush.xpose.msra.mxu0 0.0
  %556 = vmatpush.xpose.msra.mxu0 0.0
  %557 = vmatpush.xpose.msra.mxu0 %v543
  %558 = vmatpush.xpose.msra.mxu0 %v541
  %559 = vmatpush.xpose.msra.mxu0 %v539
  %560 = vmatpush.xpose.msra.mxu0 %v537
  %561 = vmatmul.f32.gmra.mxu0 %v529
  %v562 = vpop.f32.mrf.mxu0
  %v563 = vadd.f32 0.0, %v562
  %564 = vmatmul.f32.gmra.mxu0 %v531
  %v565 = vpop.f32.mrf.mxu0
  %v566 = vadd.f32 0.0, %v565
  %567 = vmatmul.f32.gmra.mxu0 %v533
  %v568 = vpop.f32.mrf.mxu0
  %v569 = vadd.f32 0.0, %v568
  %570 = vmatmul.f32.gmra.mxu0 %v535
  %v571 = vpop.f32.mrf.mxu0
  %v572 = vadd.f32 0.0, %v571
  %573 = vdwg.mxu0
  %574 = vrot.lane.b32.xlu0 %v375, 96
  %v575 = vpop.permute.xlu0 %574
  %576 = vrot.lane.b32.xlu0 %v377, 96
  %v577 = vpop.permute.xlu0 %576
  %578 = vrot.lane.b32.xlu0 %v379, 96
  %v579 = vpop.permute.xlu0 %578
  %580 = vrot.lane.b32.xlu0 %v381, 96
  %v581 = vpop.permute.xlu0 %580
  %v582 = vsel %vm422, %v375, 0
  %v584 = vsel %vm422, %v377, 0
  %v586 = vsel %vm422, %v379, 0
  %v588 = vsel %vm422, %v381, 0
  %v590 = vsel %vm422, %v575, 0
  %v592 = vsel %vm422, %v577, 0
  %v594 = vsel %vm422, %v579, 0
  %v596 = vsel %vm422, %v581, 0
  %598 = vmatpush.xpose.msra.mxu0 0.0
  %599 = vmatpush.xpose.msra.mxu0 0.0
  %600 = vmatpush.xpose.msra.mxu0 0.0
  %601 = vmatpush.xpose.msra.mxu0 0.0
  %602 = vmatpush.xpose.msra.mxu0 0.0
  %603 = vmatpush.xpose.msra.mxu0 0.0
  %604 = vmatpush.xpose.msra.mxu0 0.0
  %605 = vmatpush.xpose.msra.mxu0 0.0
  %606 = vmatpush.xpose.msra.mxu0 0.0
  %607 = vmatpush.xpose.msra.mxu0 0.0
  %608 = vmatpush.xpose.msra.mxu0 0.0
  %609 = vmatpush.xpose.msra.mxu0 0.0
  %610 = vmatpush.xpose.msra.mxu0 %v596
  %611 = vmatpush.xpose.msra.mxu0 %v594
  %612 = vmatpush.xpose.msra.mxu0 %v592
  %613 = vmatpush.xpose.msra.mxu0 %v590
  %614 = vmatmul.f32.gmra.mxu0 %v582
  %v615 = vpop.f32.mrf.mxu0
  %v616 = vadd.f32 0.0, %v615
  %617 = vmatmul.f32.gmra.mxu0 %v584
  %v618 = vpop.f32.mrf.mxu0
  %v619 = vadd.f32 0.0, %v618
  %620 = vmatmul.f32.gmra.mxu0 %v586
  %v621 = vpop.f32.mrf.mxu0
  %v622 = vadd.f32 0.0, %v621
  %623 = vmatmul.f32.gmra.mxu0 %v588
  %v624 = vpop.f32.mrf.mxu0
  %v625 = vadd.f32 0.0, %v624
  %626 = vdwg.mxu0
  %627 = vrot.lane.b32.xlu0 %v383, 96
  %v628 = vpop.permute.xlu0 %627
  %629 = vrot.lane.b32.xlu0 %v385, 96
  %v630 = vpop.permute.xlu0 %629
  %631 = vrot.lane.b32.xlu0 %v387, 96
  %v632 = vpop.permute.xlu0 %631
  %633 = vrot.lane.b32.xlu0 %v389, 96
  %v634 = vpop.permute.xlu0 %633
  %v635 = vsel %vm422, %v383, 0
  %v637 = vsel %vm422, %v385, 0
  %v639 = vsel %vm422, %v387, 0
  %v641 = vsel %vm422, %v389, 0
  %v643 = vsel %vm422, %v628, 0
  %v645 = vsel %vm422, %v630, 0
  %v647 = vsel %vm422, %v632, 0
  %v649 = vsel %vm422, %v634, 0
  %651 = vmatpush.xpose.msra.mxu0 0.0
  %652 = vmatpush.xpose.msra.mxu0 0.0
  %653 = vmatpush.xpose.msra.mxu0 0.0
  %654 = vmatpush.xpose.msra.mxu0 0.0
  %655 = vmatpush.xpose.msra.mxu0 0.0
  %656 = vmatpush.xpose.msra.mxu0 0.0
  %657 = vmatpush.xpose.msra.mxu0 0.0
  %658 = vmatpush.xpose.msra.mxu0 0.0
  %659 = vmatpush.xpose.msra.mxu0 0.0
  %660 = vmatpush.xpose.msra.mxu0 0.0
  %661 = vmatpush.xpose.msra.mxu0 0.0
  %662 = vmatpush.xpose.msra.mxu0 0.0
  %663 = vmatpush.xpose.msra.mxu0 %v649
  %664 = vmatpush.xpose.msra.mxu0 %v647
  %665 = vmatpush.xpose.msra.mxu0 %v645
  %666 = vmatpush.xpose.msra.mxu0 %v643
  %667 = vmatmul.f32.gmra.mxu0 %v635
  %v668 = vpop.f32.mrf.mxu0
  %v669 = vadd.f32 0.0, %v668
  %670 = vmatmul.f32.gmra.mxu0 %v637
  %v671 = vpop.f32.mrf.mxu0
  %v672 = vadd.f32 0.0, %v671
  %673 = vmatmul.f32.gmra.mxu0 %v639
  %v674 = vpop.f32.mrf.mxu0
  %v675 = vadd.f32 0.0, %v674
  %676 = vmatmul.f32.gmra.mxu0 %v641
  %v677 = vpop.f32.mrf.mxu0
  %v678 = vadd.f32 0.0, %v677
  %679 = vdwg.mxu0
  %680 = vrot.lane.b32.xlu0 %v391, 96
  %v681 = vpop.permute.xlu0 %680
  %682 = vrot.lane.b32.xlu0 %v393, 96
  %v683 = vpop.permute.xlu0 %682
  %684 = vrot.lane.b32.xlu0 %v395, 96
  %v685 = vpop.permute.xlu0 %684
  %686 = vrot.lane.b32.xlu0 %v397, 96
  %v687 = vpop.permute.xlu0 %686
  %v688 = vsel %vm422, %v391, 0
  %v690 = vsel %vm422, %v393, 0
  %v692 = vsel %vm422, %v395, 0
  %v694 = vsel %vm422, %v397, 0
  %v696 = vsel %vm422, %v681, 0
  %v698 = vsel %vm422, %v683, 0
  %v700 = vsel %vm422, %v685, 0
  %v702 = vsel %vm422, %v687, 0
  %704 = vmatpush.xpose.msra.mxu0 0.0
  %705 = vmatpush.xpose.msra.mxu0 0.0
  %706 = vmatpush.xpose.msra.mxu0 0.0
  %707 = vmatpush.xpose.msra.mxu0 0.0
  %708 = vmatpush.xpose.msra.mxu0 0.0
  %709 = vmatpush.xpose.msra.mxu0 0.0
  %710 = vmatpush.xpose.msra.mxu0 0.0
  %711 = vmatpush.xpose.msra.mxu0 0.0
  %712 = vmatpush.xpose.msra.mxu0 0.0
  %713 = vmatpush.xpose.msra.mxu0 0.0
  %714 = vmatpush.xpose.msra.mxu0 0.0
  %715 = vmatpush.xpose.msra.mxu0 0.0
  %716 = vmatpush.xpose.msra.mxu0 %v702
  %717 = vmatpush.xpose.msra.mxu0 %v700
  %718 = vmatpush.xpose.msra.mxu0 %v698
  %719 = vmatpush.xpose.msra.mxu0 %v696
  %720 = vmatmul.f32.gmra.mxu0 %v688
  %v721 = vpop.f32.mrf.mxu0
  %v722 = vadd.f32 0.0, %v721
  %723 = vmatmul.f32.gmra.mxu0 %v690
  %v724 = vpop.f32.mrf.mxu0
  %v725 = vadd.f32 0.0, %v724
  %726 = vmatmul.f32.gmra.mxu0 %v692
  %v727 = vpop.f32.mrf.mxu0
  %v728 = vadd.f32 0.0, %v727
  %729 = vmatmul.f32.gmra.mxu0 %v694
  %v730 = vpop.f32.mrf.mxu0
  %v731 = vadd.f32 0.0, %v730
  %732 = vdwg.mxu0
  %733 = vrot.lane.b32.xlu0 %v399, 96
  %v734 = vpop.permute.xlu0 %733
  %735 = vrot.lane.b32.xlu0 %v401, 96
  %v736 = vpop.permute.xlu0 %735
  %737 = vrot.lane.b32.xlu0 %v403, 96
  %v738 = vpop.permute.xlu0 %737
  %739 = vrot.lane.b32.xlu0 %v405, 96
  %v740 = vpop.permute.xlu0 %739
  %v741 = vsel %vm422, %v399, 0
  %v743 = vsel %vm422, %v401, 0
  %v745 = vsel %vm422, %v403, 0
  %v747 = vsel %vm422, %v405, 0
  %v749 = vsel %vm422, %v734, 0
  %v751 = vsel %vm422, %v736, 0
  %v753 = vsel %vm422, %v738, 0
  %v755 = vsel %vm422, %v740, 0
  %757 = vmatpush.xpose.msra.mxu0 0.0
  %758 = vmatpush.xpose.msra.mxu0 0.0
  %759 = vmatpush.xpose.msra.mxu0 0.0
  %760 = vmatpush.xpose.msra.mxu0 0.0
  %761 = vmatpush.xpose.msra.mxu0 0.0
  %762 = vmatpush.xpose.msra.mxu0 0.0
  %763 = vmatpush.xpose.msra.mxu0 0.0
  %764 = vmatpush.xpose.msra.mxu0 0.0
  %765 = vmatpush.xpose.msra.mxu0 0.0
  %766 = vmatpush.xpose.msra.mxu0 0.0
  %767 = vmatpush.xpose.msra.mxu0 0.0
  %768 = vmatpush.xpose.msra.mxu0 0.0
  %769 = vmatpush.xpose.msra.mxu0 %v755
  %770 = vmatpush.xpose.msra.mxu0 %v753
  %771 = vmatpush.xpose.msra.mxu0 %v751
  %772 = vmatpush.xpose.msra.mxu0 %v749
  %773 = vmatmul.f32.gmra.mxu0 %v741
  %v774 = vpop.f32.mrf.mxu0
  %v775 = vadd.f32 0.0, %v774
  %776 = vmatmul.f32.gmra.mxu0 %v743
  %v777 = vpop.f32.mrf.mxu0
  %v778 = vadd.f32 0.0, %v777
  %779 = vmatmul.f32.gmra.mxu0 %v745
  %v780 = vpop.f32.mrf.mxu0
  %v781 = vadd.f32 0.0, %v780
  %782 = vmatmul.f32.gmra.mxu0 %v747
  %v783 = vpop.f32.mrf.mxu0
  %v784 = vadd.f32 0.0, %v783
  %785 = vdwg.mxu0
  %786 = vrot.lane.b32.xlu0 %v407, 96
  %v787 = vpop.permute.xlu0 %786
  %788 = vrot.lane.b32.xlu0 %v409, 96
  %v789 = vpop.permute.xlu0 %788
  %790 = vrot.lane.b32.xlu0 %v411, 96
  %v791 = vpop.permute.xlu0 %790
  %792 = vrot.lane.b32.xlu0 %v413, 96
  %v793 = vpop.permute.xlu0 %792
  %v794 = vsel %vm422, %v407, 0
  %v796 = vsel %vm422, %v409, 0
  %v798 = vsel %vm422, %v411, 0
  %v800 = vsel %vm422, %v413, 0
  %v802 = vsel %vm422, %v787, 0
  %v804 = vsel %vm422, %v789, 0
  %v806 = vsel %vm422, %v791, 0
  %v808 = vsel %vm422, %v793, 0
  %810 = vmatpush.xpose.msra.mxu0 0.0
  %811 = vmatpush.xpose.msra.mxu0 0.0
  %812 = vmatpush.xpose.msra.mxu0 0.0
  %813 = vmatpush.xpose.msra.mxu0 0.0
  %814 = vmatpush.xpose.msra.mxu0 0.0
  %815 = vmatpush.xpose.msra.mxu0 0.0
  %816 = vmatpush.xpose.msra.mxu0 0.0
  %817 = vmatpush.xpose.msra.mxu0 0.0
  %818 = vmatpush.xpose.msra.mxu0 0.0
  %819 = vmatpush.xpose.msra.mxu0 0.0
  %820 = vmatpush.xpose.msra.mxu0 0.0
  %821 = vmatpush.xpose.msra.mxu0 0.0
  %822 = vmatpush.xpose.msra.mxu0 %v808
  %823 = vmatpush.xpose.msra.mxu0 %v806
  %824 = vmatpush.xpose.msra.mxu0 %v804
  %825 = vmatpush.xpose.msra.mxu0 %v802
  %826 = vmatmul.f32.gmra.mxu0 %v794
  %v827 = vpop.f32.mrf.mxu0
  %v828 = vadd.f32 0.0, %v827
  %829 = vmatmul.f32.gmra.mxu0 %v796
  %v830 = vpop.f32.mrf.mxu0
  %v831 = vadd.f32 0.0, %v830
  %832 = vmatmul.f32.gmra.mxu0 %v798
  %v833 = vpop.f32.mrf.mxu0
  %v834 = vadd.f32 0.0, %v833
  %835 = vmatmul.f32.gmra.mxu0 %v800
  %v836 = vpop.f32.mrf.mxu0
  %v837 = vadd.f32 0.0, %v836
  %838 = vdwg.mxu0
  %v839 = vmul.f32 %v457, 0.35355338
  %v840 = vmul.f32 %v460, 0.35355338
  %v841 = vmul.f32 %v463, 0.35355338
  %v842 = vmul.f32 %v466, 0.35355338
  %v843 = vmul.f32 %v510, 0.35355338
  %v844 = vmul.f32 %v513, 0.35355338
  %v845 = vmul.f32 %v516, 0.35355338
  %v846 = vmul.f32 %v519, 0.35355338
  %v847 = vmul.f32 %v563, 0.35355338
  %v848 = vmul.f32 %v566, 0.35355338
  %v849 = vmul.f32 %v569, 0.35355338
  %v850 = vmul.f32 %v572, 0.35355338
  %v851 = vmul.f32 %v616, 0.35355338
  %v852 = vmul.f32 %v619, 0.35355338
  %v853 = vmul.f32 %v622, 0.35355338
  %v854 = vmul.f32 %v625, 0.35355338
  %v855 = vmul.f32 %v669, 0.35355338
  %v856 = vmul.f32 %v672, 0.35355338
  %v857 = vmul.f32 %v675, 0.35355338
  %v858 = vmul.f32 %v678, 0.35355338
  %v859 = vmul.f32 %v722, 0.35355338
  %v860 = vmul.f32 %v725, 0.35355338
  %v861 = vmul.f32 %v728, 0.35355338
  %v862 = vmul.f32 %v731, 0.35355338
  %v863 = vmul.f32 %v775, 0.35355338
  %v864 = vmul.f32 %v778, 0.35355338
  %v865 = vmul.f32 %v781, 0.35355338
  %v866 = vmul.f32 %v784, 0.35355338
  %v867 = vmul.f32 %v828, 0.35355338
  %v868 = vmul.f32 %v831, 0.35355338
  %v869 = vmul.f32 %v834, 0.35355338
  %v870 = vmul.f32 %v837, 0.35355338
  %v871 = vsel %vm79, %v839, -inf
  %872 = vmax.xlane.f32.xlu0 %v871
  %v873 = vpop.xlane.xlu0 %872
  %v874 = vsel %vm79, %v840, -inf
  %875 = vmax.xlane.f32.xlu0 %v874
  %v876 = vpop.xlane.xlu0 %875
  %v877 = vsel %vm79, %v841, -inf
  %878 = vmax.xlane.f32.xlu0 %v877
  %v879 = vpop.xlane.xlu0 %878
  %v880 = vsel %vm79, %v842, -inf
  %881 = vmax.xlane.f32.xlu0 %v880
  %v882 = vpop.xlane.xlu0 %881
  %v883 = vsel %vm79, %v843, -inf
  %884 = vmax.xlane.f32.xlu0 %v883
  %v885 = vpop.xlane.xlu0 %884
  %v886 = vsel %vm79, %v844, -inf
  %887 = vmax.xlane.f32.xlu0 %v886
  %v888 = vpop.xlane.xlu0 %887
  %v889 = vsel %vm79, %v845, -inf
  %890 = vmax.xlane.f32.xlu0 %v889
  %v891 = vpop.xlane.xlu0 %890
  %v892 = vsel %vm79, %v846, -inf
  %893 = vmax.xlane.f32.xlu0 %v892
  %v894 = vpop.xlane.xlu0 %893
  %v895 = vsel %vm79, %v847, -inf
  %896 = vmax.xlane.f32.xlu0 %v895
  %v897 = vpop.xlane.xlu0 %896
  %v898 = vsel %vm79, %v848, -inf
  %899 = vmax.xlane.f32.xlu0 %v898
  %v900 = vpop.xlane.xlu0 %899
  %v901 = vsel %vm79, %v849, -inf
  %902 = vmax.xlane.f32.xlu0 %v901
  %v903 = vpop.xlane.xlu0 %902
  %v904 = vsel %vm79, %v850, -inf
  %905 = vmax.xlane.f32.xlu0 %v904
  %v906 = vpop.xlane.xlu0 %905
  %v907 = vsel %vm79, %v851, -inf
  %908 = vmax.xlane.f32.xlu0 %v907
  %v909 = vpop.xlane.xlu0 %908
  %v910 = vsel %vm79, %v852, -inf
  %911 = vmax.xlane.f32.xlu0 %v910
  %v912 = vpop.xlane.xlu0 %911
  %v913 = vsel %vm79, %v853, -inf
  %914 = vmax.xlane.f32.xlu0 %v913
  %v915 = vpop.xlane.xlu0 %914
  %v916 = vsel %vm79, %v854, -inf
  %917 = vmax.xlane.f32.xlu0 %v916
  %v918 = vpop.xlane.xlu0 %917
  %v919 = vsel %vm79, %v855, -inf
  %920 = vmax.xlane.f32.xlu0 %v919
  %v921 = vpop.xlane.xlu0 %920
  %v922 = vsel %vm79, %v856, -inf
  %923 = vmax.xlane.f32.xlu0 %v922
  %v924 = vpop.xlane.xlu0 %923
  %v925 = vsel %vm79, %v857, -inf
  %926 = vmax.xlane.f32.xlu0 %v925
  %v927 = vpop.xlane.xlu0 %926
  %v928 = vsel %vm79, %v858, -inf
  %929 = vmax.xlane.f32.xlu0 %v928
  %v930 = vpop.xlane.xlu0 %929
  %v931 = vsel %vm79, %v859, -inf
  %932 = vmax.xlane.f32.xlu0 %v931
  %v933 = vpop.xlane.xlu0 %932
  %v934 = vsel %vm79, %v860, -inf
  %935 = vmax.xlane.f32.xlu0 %v934
  %v936 = vpop.xlane.xlu0 %935
  %v937 = vsel %vm79, %v861, -inf
  %938 = vmax.xlane.f32.xlu0 %v937
  %v939 = vpop.xlane.xlu0 %938
  %v940 = vsel %vm79, %v862, -inf
  %941 = vmax.xlane.f32.xlu0 %v940
  %v942 = vpop.xlane.xlu0 %941
  %v943 = vsel %vm79, %v863, -inf
  %944 = vmax.xlane.f32.xlu0 %v943
  %v945 = vpop.xlane.xlu0 %944
  %v946 = vsel %vm79, %v864, -inf
  %947 = vmax.xlane.f32.xlu0 %v946
  %v948 = vpop.xlane.xlu0 %947
  %v949 = vsel %vm79, %v865, -inf
  %950 = vmax.xlane.f32.xlu0 %v949
  %v951 = vpop.xlane.xlu0 %950
  %v952 = vsel %vm79, %v866, -inf
  %953 = vmax.xlane.f32.xlu0 %v952
  %v954 = vpop.xlane.xlu0 %953
  %v955 = vsel %vm79, %v867, -inf
  %956 = vmax.xlane.f32.xlu0 %v955
  %v957 = vpop.xlane.xlu0 %956
  %v958 = vsel %vm79, %v868, -inf
  %959 = vmax.xlane.f32.xlu0 %v958
  %v960 = vpop.xlane.xlu0 %959
  %v961 = vsel %vm79, %v869, -inf
  %962 = vmax.xlane.f32.xlu0 %v961
  %v963 = vpop.xlane.xlu0 %962
  %v964 = vsel %vm79, %v870, -inf
  %965 = vmax.xlane.f32.xlu0 %v964
  %v966 = vpop.xlane.xlu0 %965
  %v967 = vsub.f32 %v839, %v873
  %v968 = vsub.f32 %v840, %v876
  %v969 = vsub.f32 %v841, %v879
  %v970 = vsub.f32 %v842, %v882
  %v971 = vsub.f32 %v843, %v885
  %v972 = vsub.f32 %v844, %v888
  %v973 = vsub.f32 %v845, %v891
  %v974 = vsub.f32 %v846, %v894
  %v975 = vsub.f32 %v847, %v897
  %v976 = vsub.f32 %v848, %v900
  %v977 = vsub.f32 %v849, %v903
  %v978 = vsub.f32 %v850, %v906
  %v979 = vsub.f32 %v851, %v909
  %v980 = vsub.f32 %v852, %v912
  %v981 = vsub.f32 %v853, %v915
  %v982 = vsub.f32 %v854, %v918
  %v983 = vsub.f32 %v855, %v921
  %v984 = vsub.f32 %v856, %v924
  %v985 = vsub.f32 %v857, %v927
  %v986 = vsub.f32 %v858, %v930
  %v987 = vsub.f32 %v859, %v933
  %v988 = vsub.f32 %v860, %v936
  %v989 = vsub.f32 %v861, %v939
  %v990 = vsub.f32 %v862, %v942
  %v991 = vsub.f32 %v863, %v945
  %v992 = vsub.f32 %v864, %v948
  %v993 = vsub.f32 %v865, %v951
  %v994 = vsub.f32 %v866, %v954
  %v995 = vsub.f32 %v867, %v957
  %v996 = vsub.f32 %v868, %v960
  %v997 = vsub.f32 %v869, %v963
  %v998 = vsub.f32 %v870, %v966
  %v999 = vmul.f32 %v967, 1.442695
  %v1000 = vpow.pop %v999
  %v1001 = vmul.f32 %v968, 1.442695
  %v1002 = vpow.pop %v1001
  %v1003 = vmul.f32 %v969, 1.442695
  %v1004 = vpow.pop %v1003
  %v1005 = vmul.f32 %v970, 1.442695
  %v1006 = vpow.pop %v1005
  %v1007 = vmul.f32 %v971, 1.442695
  %v1008 = vpow.pop %v1007
  %v1009 = vmul.f32 %v972, 1.442695
  %v1010 = vpow.pop %v1009
  %v1011 = vmul.f32 %v973, 1.442695
  %v1012 = vpow.pop %v1011
  %v1013 = vmul.f32 %v974, 1.442695
  %v1014 = vpow.pop %v1013
  %v1015 = vmul.f32 %v975, 1.442695
  %v1016 = vpow.pop %v1015
  %v1017 = vmul.f32 %v976, 1.442695
  %v1018 = vpow.pop %v1017
  %v1019 = vmul.f32 %v977, 1.442695
  %v1020 = vpow.pop %v1019
  %v1021 = vmul.f32 %v978, 1.442695
  %v1022 = vpow.pop %v1021
  %v1023 = vmul.f32 %v979, 1.442695
  %v1024 = vpow.pop %v1023
  %v1025 = vmul.f32 %v980, 1.442695
  %v1026 = vpow.pop %v1025
  %v1027 = vmul.f32 %v981, 1.442695
  %v1028 = vpow.pop %v1027
  %v1029 = vmul.f32 %v982, 1.442695
  %v1030 = vpow.pop %v1029
  %v1031 = vmul.f32 %v983, 1.442695
  %v1032 = vpow.pop %v1031
  %v1033 = vmul.f32 %v984, 1.442695
  %v1034 = vpow.pop %v1033
  %v1035 = vmul.f32 %v985, 1.442695
  %v1036 = vpow.pop %v1035
  %v1037 = vmul.f32 %v986, 1.442695
  %v1038 = vpow.pop %v1037
  %v1039 = vmul.f32 %v987, 1.442695
  %v1040 = vpow.pop %v1039
  %v1041 = vmul.f32 %v988, 1.442695
  %v1042 = vpow.pop %v1041
  %v1043 = vmul.f32 %v989, 1.442695
  %v1044 = vpow.pop %v1043
  %v1045 = vmul.f32 %v990, 1.442695
  %v1046 = vpow.pop %v1045
  %v1047 = vmul.f32 %v991, 1.442695
  %v1048 = vpow.pop %v1047
  %v1049 = vmul.f32 %v992, 1.442695
  %v1050 = vpow.pop %v1049
  %v1051 = vmul.f32 %v993, 1.442695
  %v1052 = vpow.pop %v1051
  %v1053 = vmul.f32 %v994, 1.442695
  %v1054 = vpow.pop %v1053
  %v1055 = vmul.f32 %v995, 1.442695
  %v1056 = vpow.pop %v1055
  %v1057 = vmul.f32 %v996, 1.442695
  %v1058 = vpow.pop %v1057
  %v1059 = vmul.f32 %v997, 1.442695
  %v1060 = vpow.pop %v1059
  %v1061 = vmul.f32 %v998, 1.442695
  %v1062 = vpow.pop %v1061
  %v1063 = vsel %vm79, %v1000, 0.0
  %1064 = vadd.xlane.f32.xlu0 %v1063
  %v1065 = vpop.xlane.xlu0 %1064
  %v1066 = vsel %vm79, %v1002, 0.0
  %1067 = vadd.xlane.f32.xlu0 %v1066
  %v1068 = vpop.xlane.xlu0 %1067
  %v1069 = vsel %vm79, %v1004, 0.0
  %1070 = vadd.xlane.f32.xlu0 %v1069
  %v1071 = vpop.xlane.xlu0 %1070
  %v1072 = vsel %vm79, %v1006, 0.0
  %1073 = vadd.xlane.f32.xlu0 %v1072
  %v1074 = vpop.xlane.xlu0 %1073
  %v1075 = vsel %vm79, %v1008, 0.0
  %1076 = vadd.xlane.f32.xlu0 %v1075
  %v1077 = vpop.xlane.xlu0 %1076
  %v1078 = vsel %vm79, %v1010, 0.0
  %1079 = vadd.xlane.f32.xlu0 %v1078
  %v1080 = vpop.xlane.xlu0 %1079
  %v1081 = vsel %vm79, %v1012, 0.0
  %1082 = vadd.xlane.f32.xlu0 %v1081
  %v1083 = vpop.xlane.xlu0 %1082
  %v1084 = vsel %vm79, %v1014, 0.0
  %1085 = vadd.xlane.f32.xlu0 %v1084
  %v1086 = vpop.xlane.xlu0 %1085
  %v1087 = vsel %vm79, %v1016, 0.0
  %1088 = vadd.xlane.f32.xlu0 %v1087
  %v1089 = vpop.xlane.xlu0 %1088
  %v1090 = vsel %vm79, %v1018, 0.0
  %1091 = vadd.xlane.f32.xlu0 %v1090
  %v1092 = vpop.xlane.xlu0 %1091
  %v1093 = vsel %vm79, %v1020, 0.0
  %1094 = vadd.xlane.f32.xlu0 %v1093
  %v1095 = vpop.xlane.xlu0 %1094
  %v1096 = vsel %vm79, %v1022, 0.0
  %1097 = vadd.xlane.f32.xlu0 %v1096
  %v1098 = vpop.xlane.xlu0 %1097
  %v1099 = vsel %vm79, %v1024, 0.0
  %1100 = vadd.xlane.f32.xlu0 %v1099
  %v1101 = vpop.xlane.xlu0 %1100
  %v1102 = vsel %vm79, %v1026, 0.0
  %1103 = vadd.xlane.f32.xlu0 %v1102
  %v1104 = vpop.xlane.xlu0 %1103
  %v1105 = vsel %vm79, %v1028, 0.0
  %1106 = vadd.xlane.f32.xlu0 %v1105
  %v1107 = vpop.xlane.xlu0 %1106
  %v1108 = vsel %vm79, %v1030, 0.0
  %1109 = vadd.xlane.f32.xlu0 %v1108
  %v1110 = vpop.xlane.xlu0 %1109
  %v1111 = vsel %vm79, %v1032, 0.0
  %1112 = vadd.xlane.f32.xlu0 %v1111
  %v1113 = vpop.xlane.xlu0 %1112
  %v1114 = vsel %vm79, %v1034, 0.0
  %1115 = vadd.xlane.f32.xlu0 %v1114
  %v1116 = vpop.xlane.xlu0 %1115
  %v1117 = vsel %vm79, %v1036, 0.0
  %1118 = vadd.xlane.f32.xlu0 %v1117
  %v1119 = vpop.xlane.xlu0 %1118
  %v1120 = vsel %vm79, %v1038, 0.0
  %1121 = vadd.xlane.f32.xlu0 %v1120
  %v1122 = vpop.xlane.xlu0 %1121
  %v1123 = vsel %vm79, %v1040, 0.0
  %1124 = vadd.xlane.f32.xlu0 %v1123
  %v1125 = vpop.xlane.xlu0 %1124
  %v1126 = vsel %vm79, %v1042, 0.0
  %1127 = vadd.xlane.f32.xlu0 %v1126
  %v1128 = vpop.xlane.xlu0 %1127
  %v1129 = vsel %vm79, %v1044, 0.0
  %1130 = vadd.xlane.f32.xlu0 %v1129
  %v1131 = vpop.xlane.xlu0 %1130
  %v1132 = vsel %vm79, %v1046, 0.0
  %1133 = vadd.xlane.f32.xlu0 %v1132
  %v1134 = vpop.xlane.xlu0 %1133
  %v1135 = vsel %vm79, %v1048, 0.0
  %1136 = vadd.xlane.f32.xlu0 %v1135
  %v1137 = vpop.xlane.xlu0 %1136
  %v1138 = vsel %vm79, %v1050, 0.0
  %1139 = vadd.xlane.f32.xlu0 %v1138
  %v1140 = vpop.xlane.xlu0 %1139
  %v1141 = vsel %vm79, %v1052, 0.0
  %1142 = vadd.xlane.f32.xlu0 %v1141
  %v1143 = vpop.xlane.xlu0 %1142
  %v1144 = vsel %vm79, %v1054, 0.0
  %1145 = vadd.xlane.f32.xlu0 %v1144
  %v1146 = vpop.xlane.xlu0 %1145
  %v1147 = vsel %vm79, %v1056, 0.0
  %1148 = vadd.xlane.f32.xlu0 %v1147
  %v1149 = vpop.xlane.xlu0 %1148
  %v1150 = vsel %vm79, %v1058, 0.0
  %1151 = vadd.xlane.f32.xlu0 %v1150
  %v1152 = vpop.xlane.xlu0 %1151
  %v1153 = vsel %vm79, %v1060, 0.0
  %1154 = vadd.xlane.f32.xlu0 %v1153
  %v1155 = vpop.xlane.xlu0 %1154
  %v1156 = vsel %vm79, %v1062, 0.0
  %1157 = vadd.xlane.f32.xlu0 %v1156
  %v1158 = vpop.xlane.xlu0 %1157
  %v1159 = vrcp.pop %v1065
  %v1160 = vrcp.pop %v1068
  %v1161 = vrcp.pop %v1071
  %v1162 = vrcp.pop %v1074
  %v1163 = vrcp.pop %v1077
  %v1164 = vrcp.pop %v1080
  %v1165 = vrcp.pop %v1083
  %v1166 = vrcp.pop %v1086
  %v1167 = vrcp.pop %v1089
  %v1168 = vrcp.pop %v1092
  %v1169 = vrcp.pop %v1095
  %v1170 = vrcp.pop %v1098
  %v1171 = vrcp.pop %v1101
  %v1172 = vrcp.pop %v1104
  %v1173 = vrcp.pop %v1107
  %v1174 = vrcp.pop %v1110
  %v1175 = vrcp.pop %v1113
  %v1176 = vrcp.pop %v1116
  %v1177 = vrcp.pop %v1119
  %v1178 = vrcp.pop %v1122
  %v1179 = vrcp.pop %v1125
  %v1180 = vrcp.pop %v1128
  %v1181 = vrcp.pop %v1131
  %v1182 = vrcp.pop %v1134
  %v1183 = vrcp.pop %v1137
  %v1184 = vrcp.pop %v1140
  %v1185 = vrcp.pop %v1143
  %v1186 = vrcp.pop %v1146
  %v1187 = vrcp.pop %v1149
  %v1188 = vrcp.pop %v1152
  %v1189 = vrcp.pop %v1155
  %v1190 = vrcp.pop %v1158
  %v1191 = vmul.f32 %v1000, %v1159
  %v1192 = vmul.f32 %v1002, %v1160
  %v1193 = vmul.f32 %v1004, %v1161
  %v1194 = vmul.f32 %v1006, %v1162
  %v1195 = vmul.f32 %v1008, %v1163
  %v1196 = vmul.f32 %v1010, %v1164
  %v1197 = vmul.f32 %v1012, %v1165
  %v1198 = vmul.f32 %v1014, %v1166
  %v1199 = vmul.f32 %v1016, %v1167
  %v1200 = vmul.f32 %v1018, %v1168
  %v1201 = vmul.f32 %v1020, %v1169
  %v1202 = vmul.f32 %v1022, %v1170
  %v1203 = vmul.f32 %v1024, %v1171
  %v1204 = vmul.f32 %v1026, %v1172
  %v1205 = vmul.f32 %v1028, %v1173
  %v1206 = vmul.f32 %v1030, %v1174
  %v1207 = vmul.f32 %v1032, %v1175
  %v1208 = vmul.f32 %v1034, %v1176
  %v1209 = vmul.f32 %v1036, %v1177
  %v1210 = vmul.f32 %v1038, %v1178
  %v1211 = vmul.f32 %v1040, %v1179
  %v1212 = vmul.f32 %v1042, %v1180
  %v1213 = vmul.f32 %v1044, %v1181
  %v1214 = vmul.f32 %v1046, %v1182
  %v1215 = vmul.f32 %v1048, %v1183
  %v1216 = vmul.f32 %v1050, %v1184
  %v1217 = vmul.f32 %v1052, %v1185
  %v1218 = vmul.f32 %v1054, %v1186
  %v1219 = vmul.f32 %v1056, %v1187
  %v1220 = vmul.f32 %v1058, %v1188
  %v1221 = vmul.f32 %v1060, %v1189
  %v1222 = vmul.f32 %v1062, %v1190
  %1223 = vrot.lane.b32.xlu0 %v335, 64
  %v1224 = vpop.permute.xlu0 %1223
  %1225 = vrot.lane.b32.xlu0 %v338, 64
  %v1226 = vpop.permute.xlu0 %1225
  %1227 = vrot.lane.b32.xlu0 %v341, 64
  %v1228 = vpop.permute.xlu0 %1227
  %1229 = vrot.lane.b32.xlu0 %v344, 64
  %v1230 = vpop.permute.xlu0 %1229
  %v1236 = vsel %vm79, %v1191, 0
  %v1239 = vsel %vm79, %v1192, 0
  %v1242 = vsel %vm79, %v1193, 0
  %v1245 = vsel %vm79, %v1194, 0
  %1247 = vmatpush.msra.mxu0 0.0
  %1248 = vmatpush.msra.mxu0 0.0
  %1249 = vmatpush.msra.mxu0 0.0
  %1250 = vmatpush.msra.mxu0 0.0
  %1251 = vmatpush.msra.mxu0 0.0
  %1252 = vmatpush.msra.mxu0 0.0
  %1253 = vmatpush.msra.mxu0 0.0
  %1254 = vmatpush.msra.mxu0 0.0
  %1255 = vmatpush.msra.mxu0 0.0
  %1256 = vmatpush.msra.mxu0 0.0
  %1257 = vmatpush.msra.mxu0 0.0
  %1258 = vmatpush.msra.mxu0 0.0
  %1259 = vmatpush.msra.mxu0 %v1230
  %1260 = vmatpush.msra.mxu0 %v1228
  %1261 = vmatpush.msra.mxu0 %v1226
  %1262 = vmatpush.msra.mxu0 %v1224
  %1263 = vmatmul.f32.gmra.mxu0 %v1236
  %v1264 = vpop.f32.mrf.mxu0
  %v1265 = vadd.f32 0.0, %v1264
  %1266 = vmatmul.f32.gmra.mxu0 %v1239
  %v1267 = vpop.f32.mrf.mxu0
  %v1268 = vadd.f32 0.0, %v1267
  %1269 = vmatmul.f32.gmra.mxu0 %v1242
  %v1270 = vpop.f32.mrf.mxu0
  %v1271 = vadd.f32 0.0, %v1270
  %1272 = vmatmul.f32.gmra.mxu0 %v1245
  %v1273 = vpop.f32.mrf.mxu0
  %v1274 = vadd.f32 0.0, %v1273
  %1275 = vdwg.mxu0
  %1276 = vrot.lane.b32.xlu0 %v347, 64
  %v1277 = vpop.permute.xlu0 %1276
  %1278 = vrot.lane.b32.xlu0 %v350, 64
  %v1279 = vpop.permute.xlu0 %1278
  %1280 = vrot.lane.b32.xlu0 %v353, 64
  %v1281 = vpop.permute.xlu0 %1280
  %1282 = vrot.lane.b32.xlu0 %v356, 64
  %v1283 = vpop.permute.xlu0 %1282
  %v1289 = vsel %vm79, %v1195, 0
  %v1292 = vsel %vm79, %v1196, 0
  %v1295 = vsel %vm79, %v1197, 0
  %v1298 = vsel %vm79, %v1198, 0
  %1300 = vmatpush.msra.mxu0 0.0
  %1301 = vmatpush.msra.mxu0 0.0
  %1302 = vmatpush.msra.mxu0 0.0
  %1303 = vmatpush.msra.mxu0 0.0
  %1304 = vmatpush.msra.mxu0 0.0
  %1305 = vmatpush.msra.mxu0 0.0
  %1306 = vmatpush.msra.mxu0 0.0
  %1307 = vmatpush.msra.mxu0 0.0
  %1308 = vmatpush.msra.mxu0 0.0
  %1309 = vmatpush.msra.mxu0 0.0
  %1310 = vmatpush.msra.mxu0 0.0
  %1311 = vmatpush.msra.mxu0 0.0
  %1312 = vmatpush.msra.mxu0 %v1283
  %1313 = vmatpush.msra.mxu0 %v1281
  %1314 = vmatpush.msra.mxu0 %v1279
  %1315 = vmatpush.msra.mxu0 %v1277
  %1316 = vmatmul.f32.gmra.mxu0 %v1289
  %v1317 = vpop.f32.mrf.mxu0
  %v1318 = vadd.f32 0.0, %v1317
  %1319 = vmatmul.f32.gmra.mxu0 %v1292
  %v1320 = vpop.f32.mrf.mxu0
  %v1321 = vadd.f32 0.0, %v1320
  %1322 = vmatmul.f32.gmra.mxu0 %v1295
  %v1323 = vpop.f32.mrf.mxu0
  %v1324 = vadd.f32 0.0, %v1323
  %1325 = vmatmul.f32.gmra.mxu0 %v1298
  %v1326 = vpop.f32.mrf.mxu0
  %v1327 = vadd.f32 0.0, %v1326
  %1328 = vdwg.mxu0
  %1329 = vrot.lane.b32.xlu0 %v363, 64
  %v1330 = vpop.permute.xlu0 %1329
  %1331 = vrot.lane.b32.xlu0 %v365, 64
  %v1332 = vpop.permute.xlu0 %1331
  %1333 = vrot.lane.b32.xlu0 %v367, 64
  %v1334 = vpop.permute.xlu0 %1333
  %1335 = vrot.lane.b32.xlu0 %v369, 64
  %v1336 = vpop.permute.xlu0 %1335
  %v1342 = vsel %vm79, %v1199, 0
  %v1345 = vsel %vm79, %v1200, 0
  %v1348 = vsel %vm79, %v1201, 0
  %v1351 = vsel %vm79, %v1202, 0
  %1353 = vmatpush.msra.mxu0 0.0
  %1354 = vmatpush.msra.mxu0 0.0
  %1355 = vmatpush.msra.mxu0 0.0
  %1356 = vmatpush.msra.mxu0 0.0
  %1357 = vmatpush.msra.mxu0 0.0
  %1358 = vmatpush.msra.mxu0 0.0
  %1359 = vmatpush.msra.mxu0 0.0
  %1360 = vmatpush.msra.mxu0 0.0
  %1361 = vmatpush.msra.mxu0 0.0
  %1362 = vmatpush.msra.mxu0 0.0
  %1363 = vmatpush.msra.mxu0 0.0
  %1364 = vmatpush.msra.mxu0 0.0
  %1365 = vmatpush.msra.mxu0 %v1336
  %1366 = vmatpush.msra.mxu0 %v1334
  %1367 = vmatpush.msra.mxu0 %v1332
  %1368 = vmatpush.msra.mxu0 %v1330
  %1369 = vmatmul.f32.gmra.mxu0 %v1342
  %v1370 = vpop.f32.mrf.mxu0
  %v1371 = vadd.f32 0.0, %v1370
  %1372 = vmatmul.f32.gmra.mxu0 %v1345
  %v1373 = vpop.f32.mrf.mxu0
  %v1374 = vadd.f32 0.0, %v1373
  %1375 = vmatmul.f32.gmra.mxu0 %v1348
  %v1376 = vpop.f32.mrf.mxu0
  %v1377 = vadd.f32 0.0, %v1376
  %1378 = vmatmul.f32.gmra.mxu0 %v1351
  %v1379 = vpop.f32.mrf.mxu0
  %v1380 = vadd.f32 0.0, %v1379
  %1381 = vdwg.mxu0
  %1382 = vrot.lane.b32.xlu0 %v375, 64
  %v1383 = vpop.permute.xlu0 %1382
  %1384 = vrot.lane.b32.xlu0 %v377, 64
  %v1385 = vpop.permute.xlu0 %1384
  %1386 = vrot.lane.b32.xlu0 %v379, 64
  %v1387 = vpop.permute.xlu0 %1386
  %1388 = vrot.lane.b32.xlu0 %v381, 64
  %v1389 = vpop.permute.xlu0 %1388
  %v1395 = vsel %vm79, %v1203, 0
  %v1398 = vsel %vm79, %v1204, 0
  %v1401 = vsel %vm79, %v1205, 0
  %v1404 = vsel %vm79, %v1206, 0
  %1406 = vmatpush.msra.mxu0 0.0
  %1407 = vmatpush.msra.mxu0 0.0
  %1408 = vmatpush.msra.mxu0 0.0
  %1409 = vmatpush.msra.mxu0 0.0
  %1410 = vmatpush.msra.mxu0 0.0
  %1411 = vmatpush.msra.mxu0 0.0
  %1412 = vmatpush.msra.mxu0 0.0
  %1413 = vmatpush.msra.mxu0 0.0
  %1414 = vmatpush.msra.mxu0 0.0
  %1415 = vmatpush.msra.mxu0 0.0
  %1416 = vmatpush.msra.mxu0 0.0
  %1417 = vmatpush.msra.mxu0 0.0
  %1418 = vmatpush.msra.mxu0 %v1389
  %1419 = vmatpush.msra.mxu0 %v1387
  %1420 = vmatpush.msra.mxu0 %v1385
  %1421 = vmatpush.msra.mxu0 %v1383
  %1422 = vmatmul.f32.gmra.mxu0 %v1395
  %v1423 = vpop.f32.mrf.mxu0
  %v1424 = vadd.f32 0.0, %v1423
  %1425 = vmatmul.f32.gmra.mxu0 %v1398
  %v1426 = vpop.f32.mrf.mxu0
  %v1427 = vadd.f32 0.0, %v1426
  %1428 = vmatmul.f32.gmra.mxu0 %v1401
  %v1429 = vpop.f32.mrf.mxu0
  %v1430 = vadd.f32 0.0, %v1429
  %1431 = vmatmul.f32.gmra.mxu0 %v1404
  %v1432 = vpop.f32.mrf.mxu0
  %v1433 = vadd.f32 0.0, %v1432
  %1434 = vdwg.mxu0
  %1435 = vrot.lane.b32.xlu0 %v383, 64
  %v1436 = vpop.permute.xlu0 %1435
  %1437 = vrot.lane.b32.xlu0 %v385, 64
  %v1438 = vpop.permute.xlu0 %1437
  %1439 = vrot.lane.b32.xlu0 %v387, 64
  %v1440 = vpop.permute.xlu0 %1439
  %1441 = vrot.lane.b32.xlu0 %v389, 64
  %v1442 = vpop.permute.xlu0 %1441
  %v1448 = vsel %vm79, %v1207, 0
  %v1451 = vsel %vm79, %v1208, 0
  %v1454 = vsel %vm79, %v1209, 0
  %v1457 = vsel %vm79, %v1210, 0
  %1459 = vmatpush.msra.mxu0 0.0
  %1460 = vmatpush.msra.mxu0 0.0
  %1461 = vmatpush.msra.mxu0 0.0
  %1462 = vmatpush.msra.mxu0 0.0
  %1463 = vmatpush.msra.mxu0 0.0
  %1464 = vmatpush.msra.mxu0 0.0
  %1465 = vmatpush.msra.mxu0 0.0
  %1466 = vmatpush.msra.mxu0 0.0
  %1467 = vmatpush.msra.mxu0 0.0
  %1468 = vmatpush.msra.mxu0 0.0
  %1469 = vmatpush.msra.mxu0 0.0
  %1470 = vmatpush.msra.mxu0 0.0
  %1471 = vmatpush.msra.mxu0 %v1442
  %1472 = vmatpush.msra.mxu0 %v1440
  %1473 = vmatpush.msra.mxu0 %v1438
  %1474 = vmatpush.msra.mxu0 %v1436
  %1475 = vmatmul.f32.gmra.mxu0 %v1448
  %v1476 = vpop.f32.mrf.mxu0
  %v1477 = vadd.f32 0.0, %v1476
  %1478 = vmatmul.f32.gmra.mxu0 %v1451
  %v1479 = vpop.f32.mrf.mxu0
  %v1480 = vadd.f32 0.0, %v1479
  %1481 = vmatmul.f32.gmra.mxu0 %v1454
  %v1482 = vpop.f32.mrf.mxu0
  %v1483 = vadd.f32 0.0, %v1482
  %1484 = vmatmul.f32.gmra.mxu0 %v1457
  %v1485 = vpop.f32.mrf.mxu0
  %v1486 = vadd.f32 0.0, %v1485
  %1487 = vdwg.mxu0
  %1488 = vrot.lane.b32.xlu0 %v391, 64
  %v1489 = vpop.permute.xlu0 %1488
  %1490 = vrot.lane.b32.xlu0 %v393, 64
  %v1491 = vpop.permute.xlu0 %1490
  %1492 = vrot.lane.b32.xlu0 %v395, 64
  %v1493 = vpop.permute.xlu0 %1492
  %1494 = vrot.lane.b32.xlu0 %v397, 64
  %v1495 = vpop.permute.xlu0 %1494
  %v1501 = vsel %vm79, %v1211, 0
  %v1504 = vsel %vm79, %v1212, 0
  %v1507 = vsel %vm79, %v1213, 0
  %v1510 = vsel %vm79, %v1214, 0
  %1512 = vmatpush.msra.mxu0 0.0
  %1513 = vmatpush.msra.mxu0 0.0
  %1514 = vmatpush.msra.mxu0 0.0
  %1515 = vmatpush.msra.mxu0 0.0
  %1516 = vmatpush.msra.mxu0 0.0
  %1517 = vmatpush.msra.mxu0 0.0
  %1518 = vmatpush.msra.mxu0 0.0
  %1519 = vmatpush.msra.mxu0 0.0
  %1520 = vmatpush.msra.mxu0 0.0
  %1521 = vmatpush.msra.mxu0 0.0
  %1522 = vmatpush.msra.mxu0 0.0
  %1523 = vmatpush.msra.mxu0 0.0
  %1524 = vmatpush.msra.mxu0 %v1495
  %1525 = vmatpush.msra.mxu0 %v1493
  %1526 = vmatpush.msra.mxu0 %v1491
  %1527 = vmatpush.msra.mxu0 %v1489
  %1528 = vmatmul.f32.gmra.mxu0 %v1501
  %v1529 = vpop.f32.mrf.mxu0
  %v1530 = vadd.f32 0.0, %v1529
  %1531 = vmatmul.f32.gmra.mxu0 %v1504
  %v1532 = vpop.f32.mrf.mxu0
  %v1533 = vadd.f32 0.0, %v1532
  %1534 = vmatmul.f32.gmra.mxu0 %v1507
  %v1535 = vpop.f32.mrf.mxu0
  %v1536 = vadd.f32 0.0, %v1535
  %1537 = vmatmul.f32.gmra.mxu0 %v1510
  %v1538 = vpop.f32.mrf.mxu0
  %v1539 = vadd.f32 0.0, %v1538
  %1540 = vdwg.mxu0
  %1541 = vrot.lane.b32.xlu0 %v399, 64
  %v1542 = vpop.permute.xlu0 %1541
  %1543 = vrot.lane.b32.xlu0 %v401, 64
  %v1544 = vpop.permute.xlu0 %1543
  %1545 = vrot.lane.b32.xlu0 %v403, 64
  %v1546 = vpop.permute.xlu0 %1545
  %1547 = vrot.lane.b32.xlu0 %v405, 64
  %v1548 = vpop.permute.xlu0 %1547
  %v1554 = vsel %vm79, %v1215, 0
  %v1557 = vsel %vm79, %v1216, 0
  %v1560 = vsel %vm79, %v1217, 0
  %v1563 = vsel %vm79, %v1218, 0
  %1565 = vmatpush.msra.mxu0 0.0
  %1566 = vmatpush.msra.mxu0 0.0
  %1567 = vmatpush.msra.mxu0 0.0
  %1568 = vmatpush.msra.mxu0 0.0
  %1569 = vmatpush.msra.mxu0 0.0
  %1570 = vmatpush.msra.mxu0 0.0
  %1571 = vmatpush.msra.mxu0 0.0
  %1572 = vmatpush.msra.mxu0 0.0
  %1573 = vmatpush.msra.mxu0 0.0
  %1574 = vmatpush.msra.mxu0 0.0
  %1575 = vmatpush.msra.mxu0 0.0
  %1576 = vmatpush.msra.mxu0 0.0
  %1577 = vmatpush.msra.mxu0 %v1548
  %1578 = vmatpush.msra.mxu0 %v1546
  %1579 = vmatpush.msra.mxu0 %v1544
  %1580 = vmatpush.msra.mxu0 %v1542
  %1581 = vmatmul.f32.gmra.mxu0 %v1554
  %v1582 = vpop.f32.mrf.mxu0
  %v1583 = vadd.f32 0.0, %v1582
  %1584 = vmatmul.f32.gmra.mxu0 %v1557
  %v1585 = vpop.f32.mrf.mxu0
  %v1586 = vadd.f32 0.0, %v1585
  %1587 = vmatmul.f32.gmra.mxu0 %v1560
  %v1588 = vpop.f32.mrf.mxu0
  %v1589 = vadd.f32 0.0, %v1588
  %1590 = vmatmul.f32.gmra.mxu0 %v1563
  %v1591 = vpop.f32.mrf.mxu0
  %v1592 = vadd.f32 0.0, %v1591
  %1593 = vdwg.mxu0
  %1594 = vrot.lane.b32.xlu0 %v407, 64
  %v1595 = vpop.permute.xlu0 %1594
  %1596 = vrot.lane.b32.xlu0 %v409, 64
  %v1597 = vpop.permute.xlu0 %1596
  %1598 = vrot.lane.b32.xlu0 %v411, 64
  %v1599 = vpop.permute.xlu0 %1598
  %1600 = vrot.lane.b32.xlu0 %v413, 64
  %v1601 = vpop.permute.xlu0 %1600
  %v1607 = vsel %vm79, %v1219, 0
  %v1610 = vsel %vm79, %v1220, 0
  %v1613 = vsel %vm79, %v1221, 0
  %v1616 = vsel %vm79, %v1222, 0
  %1618 = vmatpush.msra.mxu0 0.0
  %1619 = vmatpush.msra.mxu0 0.0
  %1620 = vmatpush.msra.mxu0 0.0
  %1621 = vmatpush.msra.mxu0 0.0
  %1622 = vmatpush.msra.mxu0 0.0
  %1623 = vmatpush.msra.mxu0 0.0
  %1624 = vmatpush.msra.mxu0 0.0
  %1625 = vmatpush.msra.mxu0 0.0
  %1626 = vmatpush.msra.mxu0 0.0
  %1627 = vmatpush.msra.mxu0 0.0
  %1628 = vmatpush.msra.mxu0 0.0
  %1629 = vmatpush.msra.mxu0 0.0
  %1630 = vmatpush.msra.mxu0 %v1601
  %1631 = vmatpush.msra.mxu0 %v1599
  %1632 = vmatpush.msra.mxu0 %v1597
  %1633 = vmatpush.msra.mxu0 %v1595
  %1634 = vmatmul.f32.gmra.mxu0 %v1607
  %v1635 = vpop.f32.mrf.mxu0
  %v1636 = vadd.f32 0.0, %v1635
  %1637 = vmatmul.f32.gmra.mxu0 %v1610
  %v1638 = vpop.f32.mrf.mxu0
  %v1639 = vadd.f32 0.0, %v1638
  %1640 = vmatmul.f32.gmra.mxu0 %v1613
  %v1641 = vpop.f32.mrf.mxu0
  %v1642 = vadd.f32 0.0, %v1641
  %1643 = vmatmul.f32.gmra.mxu0 %v1616
  %v1644 = vpop.f32.mrf.mxu0
  %v1645 = vadd.f32 0.0, %v1644
  %1646 = vdwg.mxu0
  %v1647 = vld [vmem:[%s6] sm:$0xff]
  %v1648 = vld [vmem:[%s6 + $0x8] sm:$0xff]
  %v1649 = vld [vmem:[%s6 + $0x10] sm:$0xff]
  %v1650 = vld [vmem:[%s6 + $0x18] sm:$0xff]
  %v1651 = vld [vmem:[%s7] sm:$0x1]
  %v1653 = vsel %vm422, %v1265, 0
  %v1656 = vsel %vm422, %v1268, 0
  %v1659 = vsel %vm422, %v1271, 0
  %v1662 = vsel %vm422, %v1274, 0
  %v1665 = vsel %vm422, %v1318, 0
  %v1668 = vsel %vm422, %v1321, 0
  %v1671 = vsel %vm422, %v1324, 0
  %v1674 = vsel %vm422, %v1327, 0
  %1676 = vmatpush.msra.mxu0 0.0
  %1677 = vmatpush.msra.mxu0 0.0
  %1678 = vmatpush.msra.mxu0 0.0
  %1679 = vmatpush.msra.mxu0 0.0
  %1680 = vmatpush.msra.mxu0 0.0
  %1681 = vmatpush.msra.mxu0 0.0
  %1682 = vmatpush.msra.mxu0 0.0
  %1683 = vmatpush.msra.mxu0 0.0
  %1684 = vmatpush.msra.mxu0 0.0
  %1685 = vmatpush.msra.mxu0 0.0
  %1686 = vmatpush.msra.mxu0 0.0
  %1687 = vmatpush.msra.mxu0 0.0
  %1688 = vmatpush.msra.mxu0 0.0
  %1689 = vmatpush.msra.mxu0 0.0
  %1690 = vmatpush.msra.mxu0 0.0
  %1691 = vmatpush.msra.mxu0 %v1647
  %1692 = vmatmul.f32.gmra.mxu0 %v1653
  %v1693 = vpop.f32.mrf.mxu0
  %v1694 = vadd.f32 0.0, %v1693
  %1695 = vmatmul.f32.gmra.mxu0 %v1656
  %v1696 = vpop.f32.mrf.mxu0
  %v1697 = vadd.f32 0.0, %v1696
  %1698 = vmatmul.f32.gmra.mxu0 %v1659
  %v1699 = vpop.f32.mrf.mxu0
  %v1700 = vadd.f32 0.0, %v1699
  %1701 = vmatmul.f32.gmra.mxu0 %v1662
  %v1702 = vpop.f32.mrf.mxu0
  %v1703 = vadd.f32 0.0, %v1702
  %1704 = vmatmul.f32.gmra.mxu0 %v1665
  %v1705 = vpop.f32.mrf.mxu0
  %v1706 = vadd.f32 0.0, %v1705
  %1707 = vmatmul.f32.gmra.mxu0 %v1668
  %v1708 = vpop.f32.mrf.mxu0
  %v1709 = vadd.f32 0.0, %v1708
  %1710 = vmatmul.f32.gmra.mxu0 %v1671
  %v1711 = vpop.f32.mrf.mxu0
  %v1712 = vadd.f32 0.0, %v1711
  %1713 = vmatmul.f32.gmra.mxu0 %v1674
  %v1714 = vpop.f32.mrf.mxu0
  %v1715 = vadd.f32 0.0, %v1714
  %1716 = vdwg.mxu0
  %v1718 = vperm.slane %v1651, 0
  %v1720 = vadd.f32 %v1718, %v1694
  %v1721 = vadd.f32 %v1718, %v1697
  %v1722 = vadd.f32 %v1718, %v1700
  %v1723 = vadd.f32 %v1718, %v1703
  %v1724 = vadd.f32 %v1718, %v1706
  %v1725 = vadd.f32 %v1718, %v1709
  %v1726 = vadd.f32 %v1718, %v1712
  %v1727 = vadd.f32 %v1718, %v1715
  %v1729 = vsel %vm422, %v1371, 0
  %v1732 = vsel %vm422, %v1374, 0
  %v1735 = vsel %vm422, %v1377, 0
  %v1738 = vsel %vm422, %v1380, 0
  %v1741 = vsel %vm422, %v1424, 0
  %v1744 = vsel %vm422, %v1427, 0
  %v1747 = vsel %vm422, %v1430, 0
  %v1750 = vsel %vm422, %v1433, 0
  %1752 = vmatpush.msra.mxu0 0.0
  %1753 = vmatpush.msra.mxu0 0.0
  %1754 = vmatpush.msra.mxu0 0.0
  %1755 = vmatpush.msra.mxu0 0.0
  %1756 = vmatpush.msra.mxu0 0.0
  %1757 = vmatpush.msra.mxu0 0.0
  %1758 = vmatpush.msra.mxu0 0.0
  %1759 = vmatpush.msra.mxu0 0.0
  %1760 = vmatpush.msra.mxu0 0.0
  %1761 = vmatpush.msra.mxu0 0.0
  %1762 = vmatpush.msra.mxu0 0.0
  %1763 = vmatpush.msra.mxu0 0.0
  %1764 = vmatpush.msra.mxu0 0.0
  %1765 = vmatpush.msra.mxu0 0.0
  %1766 = vmatpush.msra.mxu0 0.0
  %1767 = vmatpush.msra.mxu0 %v1648
  %1768 = vmatmul.f32.gmra.mxu0 %v1729
  %v1769 = vpop.f32.mrf.mxu0
  %v1770 = vadd.f32 0.0, %v1769
  %1771 = vmatmul.f32.gmra.mxu0 %v1732
  %v1772 = vpop.f32.mrf.mxu0
  %v1773 = vadd.f32 0.0, %v1772
  %1774 = vmatmul.f32.gmra.mxu0 %v1735
  %v1775 = vpop.f32.mrf.mxu0
  %v1776 = vadd.f32 0.0, %v1775
  %1777 = vmatmul.f32.gmra.mxu0 %v1738
  %v1778 = vpop.f32.mrf.mxu0
  %v1779 = vadd.f32 0.0, %v1778
  %1780 = vmatmul.f32.gmra.mxu0 %v1741
  %v1781 = vpop.f32.mrf.mxu0
  %v1782 = vadd.f32 0.0, %v1781
  %1783 = vmatmul.f32.gmra.mxu0 %v1744
  %v1784 = vpop.f32.mrf.mxu0
  %v1785 = vadd.f32 0.0, %v1784
  %1786 = vmatmul.f32.gmra.mxu0 %v1747
  %v1787 = vpop.f32.mrf.mxu0
  %v1788 = vadd.f32 0.0, %v1787
  %1789 = vmatmul.f32.gmra.mxu0 %v1750
  %v1790 = vpop.f32.mrf.mxu0
  %v1791 = vadd.f32 0.0, %v1790
  %1792 = vdwg.mxu0
  %v1793 = vadd.f32 %v1720, %v1770
  %v1794 = vadd.f32 %v1721, %v1773
  %v1795 = vadd.f32 %v1722, %v1776
  %v1796 = vadd.f32 %v1723, %v1779
  %v1797 = vadd.f32 %v1724, %v1782
  %v1798 = vadd.f32 %v1725, %v1785
  %v1799 = vadd.f32 %v1726, %v1788
  %v1800 = vadd.f32 %v1727, %v1791
  %v1802 = vsel %vm422, %v1477, 0
  %v1805 = vsel %vm422, %v1480, 0
  %v1808 = vsel %vm422, %v1483, 0
  %v1811 = vsel %vm422, %v1486, 0
  %v1814 = vsel %vm422, %v1530, 0
  %v1817 = vsel %vm422, %v1533, 0
  %v1820 = vsel %vm422, %v1536, 0
  %v1823 = vsel %vm422, %v1539, 0
  %1825 = vmatpush.msra.mxu0 0.0
  %1826 = vmatpush.msra.mxu0 0.0
  %1827 = vmatpush.msra.mxu0 0.0
  %1828 = vmatpush.msra.mxu0 0.0
  %1829 = vmatpush.msra.mxu0 0.0
  %1830 = vmatpush.msra.mxu0 0.0
  %1831 = vmatpush.msra.mxu0 0.0
  %1832 = vmatpush.msra.mxu0 0.0
  %1833 = vmatpush.msra.mxu0 0.0
  %1834 = vmatpush.msra.mxu0 0.0
  %1835 = vmatpush.msra.mxu0 0.0
  %1836 = vmatpush.msra.mxu0 0.0
  %1837 = vmatpush.msra.mxu0 0.0
  %1838 = vmatpush.msra.mxu0 0.0
  %1839 = vmatpush.msra.mxu0 0.0
  %1840 = vmatpush.msra.mxu0 %v1649
  %1841 = vmatmul.f32.gmra.mxu0 %v1802
  %v1842 = vpop.f32.mrf.mxu0
  %v1843 = vadd.f32 0.0, %v1842
  %1844 = vmatmul.f32.gmra.mxu0 %v1805
  %v1845 = vpop.f32.mrf.mxu0
  %v1846 = vadd.f32 0.0, %v1845
  %1847 = vmatmul.f32.gmra.mxu0 %v1808
  %v1848 = vpop.f32.mrf.mxu0
  %v1849 = vadd.f32 0.0, %v1848
  %1850 = vmatmul.f32.gmra.mxu0 %v1811
  %v1851 = vpop.f32.mrf.mxu0
  %v1852 = vadd.f32 0.0, %v1851
  %1853 = vmatmul.f32.gmra.mxu0 %v1814
  %v1854 = vpop.f32.mrf.mxu0
  %v1855 = vadd.f32 0.0, %v1854
  %1856 = vmatmul.f32.gmra.mxu0 %v1817
  %v1857 = vpop.f32.mrf.mxu0
  %v1858 = vadd.f32 0.0, %v1857
  %1859 = vmatmul.f32.gmra.mxu0 %v1820
  %v1860 = vpop.f32.mrf.mxu0
  %v1861 = vadd.f32 0.0, %v1860
  %1862 = vmatmul.f32.gmra.mxu0 %v1823
  %v1863 = vpop.f32.mrf.mxu0
  %v1864 = vadd.f32 0.0, %v1863
  %1865 = vdwg.mxu0
  %v1866 = vadd.f32 %v1793, %v1843
  %v1867 = vadd.f32 %v1794, %v1846
  %v1868 = vadd.f32 %v1795, %v1849
  %v1869 = vadd.f32 %v1796, %v1852
  %v1870 = vadd.f32 %v1797, %v1855
  %v1871 = vadd.f32 %v1798, %v1858
  %v1872 = vadd.f32 %v1799, %v1861
  %v1873 = vadd.f32 %v1800, %v1864
  %v1875 = vsel %vm422, %v1583, 0
  %v1878 = vsel %vm422, %v1586, 0
  %v1881 = vsel %vm422, %v1589, 0
  %v1884 = vsel %vm422, %v1592, 0
  %v1887 = vsel %vm422, %v1636, 0
  %v1890 = vsel %vm422, %v1639, 0
  %v1893 = vsel %vm422, %v1642, 0
  %v1896 = vsel %vm422, %v1645, 0
  %1898 = vmatpush.msra.mxu0 0.0
  %1899 = vmatpush.msra.mxu0 0.0
  %1900 = vmatpush.msra.mxu0 0.0
  %1901 = vmatpush.msra.mxu0 0.0
  %1902 = vmatpush.msra.mxu0 0.0
  %1903 = vmatpush.msra.mxu0 0.0
  %1904 = vmatpush.msra.mxu0 0.0
  %1905 = vmatpush.msra.mxu0 0.0
  %1906 = vmatpush.msra.mxu0 0.0
  %1907 = vmatpush.msra.mxu0 0.0
  %1908 = vmatpush.msra.mxu0 0.0
  %1909 = vmatpush.msra.mxu0 0.0
  %1910 = vmatpush.msra.mxu0 0.0
  %1911 = vmatpush.msra.mxu0 0.0
  %1912 = vmatpush.msra.mxu0 0.0
  %1913 = vmatpush.msra.mxu0 %v1650
  %1914 = vmatmul.f32.gmra.mxu0 %v1875
  %v1915 = vpop.f32.mrf.mxu0
  %v1916 = vadd.f32 0.0, %v1915
  %1917 = vmatmul.f32.gmra.mxu0 %v1878
  %v1918 = vpop.f32.mrf.mxu0
  %v1919 = vadd.f32 0.0, %v1918
  %1920 = vmatmul.f32.gmra.mxu0 %v1881
  %v1921 = vpop.f32.mrf.mxu0
  %v1922 = vadd.f32 0.0, %v1921
  %1923 = vmatmul.f32.gmra.mxu0 %v1884
  %v1924 = vpop.f32.mrf.mxu0
  %v1925 = vadd.f32 0.0, %v1924
  %1926 = vmatmul.f32.gmra.mxu0 %v1887
  %v1927 = vpop.f32.mrf.mxu0
  %v1928 = vadd.f32 0.0, %v1927
  %1929 = vmatmul.f32.gmra.mxu0 %v1890
  %v1930 = vpop.f32.mrf.mxu0
  %v1931 = vadd.f32 0.0, %v1930
  %1932 = vmatmul.f32.gmra.mxu0 %v1893
  %v1933 = vpop.f32.mrf.mxu0
  %v1934 = vadd.f32 0.0, %v1933
  %1935 = vmatmul.f32.gmra.mxu0 %v1896
  %v1936 = vpop.f32.mrf.mxu0
  %v1937 = vadd.f32 0.0, %v1936
  %1938 = vdwg.mxu0
  %v1939 = vadd.f32 %v1866, %v1916
  %v1940 = vadd.f32 %v1867, %v1919
  %v1941 = vadd.f32 %v1868, %v1922
  %v1942 = vadd.f32 %v1869, %v1925
  %v1943 = vadd.f32 %v1870, %v1928
  %v1944 = vadd.f32 %v1871, %v1931
  %v1945 = vadd.f32 %v1872, %v1934
  %v1946 = vadd.f32 %v1873, %v1937
  %v1947 = vadd.f32 %v69, %v1939
  %v1948 = vadd.f32 %v70, %v1940
  %v1949 = vadd.f32 %v71, %v1941
  %v1950 = vadd.f32 %v72, %v1942
  %v1951 = vadd.f32 %v73, %v1943
  %v1952 = vadd.f32 %v74, %v1944
  %v1953 = vadd.f32 %v75, %v1945
  %v1954 = vadd.f32 %v76, %v1946
  %v1955 = vld [vmem:[%s8] sm:$0x1]
  %v1956 = vld [vmem:[%s9] sm:$0x1]
  %v1957 = vsel %vm79, %v1947, 0.0
  %1958 = vadd.xlane.f32.xlu0 %v1957
  %v1959 = vpop.xlane.xlu0 %1958
  %v1960 = vsel %vm79, %v1948, 0.0
  %1961 = vadd.xlane.f32.xlu0 %v1960
  %v1962 = vpop.xlane.xlu0 %1961
  %v1963 = vsel %vm79, %v1949, 0.0
  %1964 = vadd.xlane.f32.xlu0 %v1963
  %v1965 = vpop.xlane.xlu0 %1964
  %v1966 = vsel %vm79, %v1950, 0.0
  %1967 = vadd.xlane.f32.xlu0 %v1966
  %v1968 = vpop.xlane.xlu0 %1967
  %v1969 = vsel %vm79, %v1951, 0.0
  %1970 = vadd.xlane.f32.xlu0 %v1969
  %v1971 = vpop.xlane.xlu0 %1970
  %v1972 = vsel %vm79, %v1952, 0.0
  %1973 = vadd.xlane.f32.xlu0 %v1972
  %v1974 = vpop.xlane.xlu0 %1973
  %v1975 = vsel %vm79, %v1953, 0.0
  %1976 = vadd.xlane.f32.xlu0 %v1975
  %v1977 = vpop.xlane.xlu0 %1976
  %v1978 = vsel %vm79, %v1954, 0.0
  %1979 = vadd.xlane.f32.xlu0 %v1978
  %v1980 = vpop.xlane.xlu0 %1979
  %v1981 = vmul.f32 %v1959, %v110
  %v1982 = vmul.f32 %v1962, %v110
  %v1983 = vmul.f32 %v1965, %v110
  %v1984 = vmul.f32 %v1968, %v110
  %v1985 = vmul.f32 %v1971, %v110
  %v1986 = vmul.f32 %v1974, %v110
  %v1987 = vmul.f32 %v1977, %v110
  %v1988 = vmul.f32 %v1980, %v110
  %v1989 = vsub.f32 %v1947, %v1981
  %v1990 = vsub.f32 %v1948, %v1982
  %v1991 = vsub.f32 %v1949, %v1983
  %v1992 = vsub.f32 %v1950, %v1984
  %v1993 = vsub.f32 %v1951, %v1985
  %v1994 = vsub.f32 %v1952, %v1986
  %v1995 = vsub.f32 %v1953, %v1987
  %v1996 = vsub.f32 %v1954, %v1988
  %v1997 = vmul.f32 %v1989, %v1989
  %v1998 = vmul.f32 %v1990, %v1990
  %v1999 = vmul.f32 %v1991, %v1991
  %v2000 = vmul.f32 %v1992, %v1992
  %v2001 = vmul.f32 %v1993, %v1993
  %v2002 = vmul.f32 %v1994, %v1994
  %v2003 = vmul.f32 %v1995, %v1995
  %v2004 = vmul.f32 %v1996, %v1996
  %v2005 = vsel %vm79, %v1997, 0.0
  %2006 = vadd.xlane.f32.xlu0 %v2005
  %v2007 = vpop.xlane.xlu0 %2006
  %v2008 = vsel %vm79, %v1998, 0.0
  %2009 = vadd.xlane.f32.xlu0 %v2008
  %v2010 = vpop.xlane.xlu0 %2009
  %v2011 = vsel %vm79, %v1999, 0.0
  %2012 = vadd.xlane.f32.xlu0 %v2011
  %v2013 = vpop.xlane.xlu0 %2012
  %v2014 = vsel %vm79, %v2000, 0.0
  %2015 = vadd.xlane.f32.xlu0 %v2014
  %v2016 = vpop.xlane.xlu0 %2015
  %v2017 = vsel %vm79, %v2001, 0.0
  %2018 = vadd.xlane.f32.xlu0 %v2017
  %v2019 = vpop.xlane.xlu0 %2018
  %v2020 = vsel %vm79, %v2002, 0.0
  %2021 = vadd.xlane.f32.xlu0 %v2020
  %v2022 = vpop.xlane.xlu0 %2021
  %v2023 = vsel %vm79, %v2003, 0.0
  %2024 = vadd.xlane.f32.xlu0 %v2023
  %v2025 = vpop.xlane.xlu0 %2024
  %v2026 = vsel %vm79, %v2004, 0.0
  %2027 = vadd.xlane.f32.xlu0 %v2026
  %v2028 = vpop.xlane.xlu0 %2027
  %v2029 = vmul.f32 %v2007, %v110
  %v2030 = vmul.f32 %v2010, %v110
  %v2031 = vmul.f32 %v2013, %v110
  %v2032 = vmul.f32 %v2016, %v110
  %v2033 = vmul.f32 %v2019, %v110
  %v2034 = vmul.f32 %v2022, %v110
  %v2035 = vmul.f32 %v2025, %v110
  %v2036 = vmul.f32 %v2028, %v110
  %v2037 = vadd.f32 %v2029, 1e-05
  %v2038 = vadd.f32 %v2030, 1e-05
  %v2039 = vadd.f32 %v2031, 1e-05
  %v2040 = vadd.f32 %v2032, 1e-05
  %v2041 = vadd.f32 %v2033, 1e-05
  %v2042 = vadd.f32 %v2034, 1e-05
  %v2043 = vadd.f32 %v2035, 1e-05
  %v2044 = vadd.f32 %v2036, 1e-05
  %v2045 = vrsqrt.pop %v2037
  %v2046 = vmul.f32 %v2045, %v2037
  %v2047 = vmul.f32 %v2046, %v2045
  %v2048 = vmul.f32 0.5, %v2047
  %v2049 = vsub.f32 1.5, %v2048
  %v2050 = vmul.f32 %v2045, %v2049
  %vm2051 = vweird.f32 %v2037
  %vm2052 = vweird.f32 %v2045
  %vm2053 = vmor %vm2051, %vm2052
  %v2054 = vsel %vm2053, %v2045, %v2050
  %v2055 = vrsqrt.pop %v2038
  %v2056 = vmul.f32 %v2055, %v2038
  %v2057 = vmul.f32 %v2056, %v2055
  %v2058 = vmul.f32 0.5, %v2057
  %v2059 = vsub.f32 1.5, %v2058
  %v2060 = vmul.f32 %v2055, %v2059
  %vm2061 = vweird.f32 %v2038
  %vm2062 = vweird.f32 %v2055
  %vm2063 = vmor %vm2061, %vm2062
  %v2064 = vsel %vm2063, %v2055, %v2060
  %v2065 = vrsqrt.pop %v2039
  %v2066 = vmul.f32 %v2065, %v2039
  %v2067 = vmul.f32 %v2066, %v2065
  %v2068 = vmul.f32 0.5, %v2067
  %v2069 = vsub.f32 1.5, %v2068
  %v2070 = vmul.f32 %v2065, %v2069
  %vm2071 = vweird.f32 %v2039
  %vm2072 = vweird.f32 %v2065
  %vm2073 = vmor %vm2071, %vm2072
  %v2074 = vsel %vm2073, %v2065, %v2070
  %v2075 = vrsqrt.pop %v2040
  %v2076 = vmul.f32 %v2075, %v2040
  %v2077 = vmul.f32 %v2076, %v2075
  %v2078 = vmul.f32 0.5, %v2077
  %v2079 = vsub.f32 1.5, %v2078
  %v2080 = vmul.f32 %v2075, %v2079
  %vm2081 = vweird.f32 %v2040
  %vm2082 = vweird.f32 %v2075
  %vm2083 = vmor %vm2081, %vm2082
  %v2084 = vsel %vm2083, %v2075, %v2080
  %v2085 = vrsqrt.pop %v2041
  %v2086 = vmul.f32 %v2085, %v2041
  %v2087 = vmul.f32 %v2086, %v2085
  %v2088 = vmul.f32 0.5, %v2087
  %v2089 = vsub.f32 1.5, %v2088
  %v2090 = vmul.f32 %v2085, %v2089
  %vm2091 = vweird.f32 %v2041
  %vm2092 = vweird.f32 %v2085
  %vm2093 = vmor %vm2091, %vm2092
  %v2094 = vsel %vm2093, %v2085, %v2090
  %v2095 = vrsqrt.pop %v2042
  %v2096 = vmul.f32 %v2095, %v2042
  %v2097 = vmul.f32 %v2096, %v2095
  %v2098 = vmul.f32 0.5, %v2097
  %v2099 = vsub.f32 1.5, %v2098
  %v2100 = vmul.f32 %v2095, %v2099
  %vm2101 = vweird.f32 %v2042
  %vm2102 = vweird.f32 %v2095
  %vm2103 = vmor %vm2101, %vm2102
  %v2104 = vsel %vm2103, %v2095, %v2100
  %v2105 = vrsqrt.pop %v2043
  %v2106 = vmul.f32 %v2105, %v2043
  %v2107 = vmul.f32 %v2106, %v2105
  %v2108 = vmul.f32 0.5, %v2107
  %v2109 = vsub.f32 1.5, %v2108
  %v2110 = vmul.f32 %v2105, %v2109
  %vm2111 = vweird.f32 %v2043
  %vm2112 = vweird.f32 %v2105
  %vm2113 = vmor %vm2111, %vm2112
  %v2114 = vsel %vm2113, %v2105, %v2110
  %v2115 = vrsqrt.pop %v2044
  %v2116 = vmul.f32 %v2115, %v2044
  %v2117 = vmul.f32 %v2116, %v2115
  %v2118 = vmul.f32 0.5, %v2117
  %v2119 = vsub.f32 1.5, %v2118
  %v2120 = vmul.f32 %v2115, %v2119
  %vm2121 = vweird.f32 %v2044
  %vm2122 = vweird.f32 %v2115
  %vm2123 = vmor %vm2121, %vm2122
  %v2124 = vsel %vm2123, %v2115, %v2120
  %v2125 = vmul.f32 %v1989, %v2054
  %v2126 = vmul.f32 %v1990, %v2064
  %v2127 = vmul.f32 %v1991, %v2074
  %v2128 = vmul.f32 %v1992, %v2084
  %v2129 = vmul.f32 %v1993, %v2094
  %v2130 = vmul.f32 %v1994, %v2104
  %v2131 = vmul.f32 %v1995, %v2114
  %v2132 = vmul.f32 %v1996, %v2124
  %v2134 = vperm.slane %v1955, 0
  %v2136 = vmul.f32 %v2125, %v2134
  %v2137 = vmul.f32 %v2126, %v2134
  %v2138 = vmul.f32 %v2127, %v2134
  %v2139 = vmul.f32 %v2128, %v2134
  %v2140 = vmul.f32 %v2129, %v2134
  %v2141 = vmul.f32 %v2130, %v2134
  %v2142 = vmul.f32 %v2131, %v2134
  %v2143 = vmul.f32 %v2132, %v2134
  %v2145 = vperm.slane %v1956, 0
  %v2147 = vadd.f32 %v2136, %v2145
  %v2148 = vadd.f32 %v2137, %v2145
  %v2149 = vadd.f32 %v2138, %v2145
  %v2150 = vadd.f32 %v2139, %v2145
  %v2151 = vadd.f32 %v2140, %v2145
  %v2152 = vadd.f32 %v2141, %v2145
  %v2153 = vadd.f32 %v2142, %v2145
  %v2154 = vadd.f32 %v2143, %v2145
  %v2155 = vld [vmem:[%s10] sm:$0xff]
  %v2156 = vld [vmem:[%s10 + $0x8] sm:$0xff]
  %v2157 = vld [vmem:[%s10 + $0x10] sm:$0xff]
  %v2158 = vld [vmem:[%s10 + $0x18] sm:$0xff]
  %v2159 = vld [vmem:[%s11] sm:$0x1]
  %v2161 = vperm.slane %v2159, 0
  %v2164 = vsel %vm79, %v2147, 0
  %v2167 = vsel %vm79, %v2148, 0
  %v2170 = vsel %vm79, %v2149, 0
  %v2173 = vsel %vm79, %v2150, 0
  %v2176 = vsel %vm79, %v2151, 0
  %v2179 = vsel %vm79, %v2152, 0
  %v2182 = vsel %vm79, %v2153, 0
  %v2185 = vsel %vm79, %v2154, 0
  %2187 = vmatpush.msra.mxu0 0.0
  %2188 = vmatpush.msra.mxu0 0.0
  %2189 = vmatpush.msra.mxu0 0.0
  %2190 = vmatpush.msra.mxu0 0.0
  %2191 = vmatpush.msra.mxu0 0.0
  %2192 = vmatpush.msra.mxu0 0.0
  %2193 = vmatpush.msra.mxu0 0.0
  %2194 = vmatpush.msra.mxu0 0.0
  %2195 = vmatpush.msra.mxu0 0.0
  %2196 = vmatpush.msra.mxu0 0.0
  %2197 = vmatpush.msra.mxu0 0.0
  %2198 = vmatpush.msra.mxu0 0.0
  %2199 = vmatpush.msra.mxu0 %v2158
  %2200 = vmatpush.msra.mxu0 %v2157
  %2201 = vmatpush.msra.mxu0 %v2156
  %2202 = vmatpush.msra.mxu0 %v2155
  %2203 = vmatmul.f32.gmra.mxu0 %v2164
  %v2204 = vpop.f32.mrf.mxu0
  %v2205 = vadd.f32 %v2161, %v2204
  %2206 = vmatmul.f32.gmra.mxu0 %v2167
  %v2207 = vpop.f32.mrf.mxu0
  %v2208 = vadd.f32 %v2161, %v2207
  %2209 = vmatmul.f32.gmra.mxu0 %v2170
  %v2210 = vpop.f32.mrf.mxu0
  %v2211 = vadd.f32 %v2161, %v2210
  %2212 = vmatmul.f32.gmra.mxu0 %v2173
  %v2213 = vpop.f32.mrf.mxu0
  %v2214 = vadd.f32 %v2161, %v2213
  %2215 = vmatmul.f32.gmra.mxu0 %v2176
  %v2216 = vpop.f32.mrf.mxu0
  %v2217 = vadd.f32 %v2161, %v2216
  %2218 = vmatmul.f32.gmra.mxu0 %v2179
  %v2219 = vpop.f32.mrf.mxu0
  %v2220 = vadd.f32 %v2161, %v2219
  %2221 = vmatmul.f32.gmra.mxu0 %v2182
  %v2222 = vpop.f32.mrf.mxu0
  %v2223 = vadd.f32 %v2161, %v2222
  %2224 = vmatmul.f32.gmra.mxu0 %v2185
  %v2225 = vpop.f32.mrf.mxu0
  %v2226 = vadd.f32 %v2161, %v2225
  %2227 = vdwg.mxu0
  %v2228 = vmul.f32 %v2205, 0.5
  %v2229 = vmul.f32 %v2208, 0.5
  %v2230 = vmul.f32 %v2211, 0.5
  %v2231 = vmul.f32 %v2214, 0.5
  %v2232 = vmul.f32 %v2217, 0.5
  %v2233 = vmul.f32 %v2220, 0.5
  %v2234 = vmul.f32 %v2223, 0.5
  %v2235 = vmul.f32 %v2226, 0.5
  %v2236 = vmul.f32 %v2205, 0.70710677
  %v2237 = vmul.f32 %v2208, 0.70710677
  %v2238 = vmul.f32 %v2211, 0.70710677
  %v2239 = vmul.f32 %v2214, 0.70710677
  %v2240 = vmul.f32 %v2217, 0.70710677
  %v2241 = vmul.f32 %v2220, 0.70710677
  %v2242 = vmul.f32 %v2223, 0.70710677
  %v2243 = vmul.f32 %v2226, 0.70710677
  %v2244 = vmul.f32 %v2236, %v2236
  %v2245 = vmin.f32 16.0, %v2244
  %v2246 = vmul.f32 %v2245, 2.1237322e-06
  %v2247 = vadd.f32 %v2246, 0.00028619796
  %v2248 = vmul.f32 %v2245, %v2247
  %v2249 = vadd.f32 %v2248, 0.0036580483
  %v2250 = vmul.f32 %v2245, %v2249
  %v2251 = vadd.f32 %v2250, 0.05243302
  %v2252 = vmul.f32 %v2245, %v2251
  %v2253 = vadd.f32 %v2252, 0.18741608
  %v2254 = vmul.f32 %v2245, %v2253
  %v2255 = vadd.f32 %v2254, 1.1283791
  %v2256 = vmul.f32 %v2236, %v2255
  %v2257 = vmul.f32 %v2245, 3.8918573e-05
  %v2258 = vadd.f32 %v2257, 0.001143296
  %v2259 = vmul.f32 %v2245, %v2258
  %v2260 = vadd.f32 %v2259, 0.014752088
  %v2261 = vmul.f32 %v2245, %v2260
  %v2262 = vadd.f32 %v2261, 0.112945676
  %v2263 = vmul.f32 %v2245, %v2262
  %v2264 = vadd.f32 %v2263, 0.4994258
  %v2265 = vmul.f32 %v2245, %v2264
  %v2266 = vadd.f32 %v2265, 1.0
  %v2267 = vrcp.pop %v2266
  %v2268 = vmul.f32 %v2266, %v2267
  %v2269 = vsub.f32 1.0, %v2268
  %v2270 = vmul.f32 %v2267, %v2269
  %v2271 = vadd.f32 %v2267, %v2270
  %vm2272 = vweird.f32 %v2266
  %vm2273 = vweird.f32 %v2267
  %vm2274 = vmor %vm2272, %vm2273
  %v2275 = vsel %vm2274, %v2267, %v2271
  %v2276 = vand.u32 2147483647, %v2266
  %vm2277 = vcmp.eq.f32.partialorder %v2276, 8.507059e+37
  %v2278 = vand.u32 %v2266, 2147483648
  %v2279 = vor.u32 1.1754944e-38, %v2278
  %v2280 = vsel %vm2277, %v2279, %v2275
  %v2281 = vmul.f32 %v2256, %v2280
  %v2282 = vmin.f32 %v2281, 1.0
  %v2283 = vmax.f32 %v2282, -1.0
  %v2284 = vmul.f32 %v2237, %v2237
  %v2285 = vmin.f32 16.0, %v2284
  %v2286 = vmul.f32 %v2285, 2.1237322e-06
  %v2287 = vadd.f32 %v2286, 0.00028619796
  %v2288 = vmul.f32 %v2285, %v2287
  %v2289 = vadd.f32 %v2288, 0.0036580483
  %v2290 = vmul.f32 %v2285, %v2289
  %v2291 = vadd.f32 %v2290, 0.05243302
  %v2292 = vmul.f32 %v2285, %v2291
  %v2293 = vadd.f32 %v2292, 0.18741608
  %v2294 = vmul.f32 %v2285, %v2293
  %v2295 = vadd.f32 %v2294, 1.1283791
  %v2296 = vmul.f32 %v2237, %v2295
  %v2297 = vmul.f32 %v2285, 3.8918573e-05
  %v2298 = vadd.f32 %v2297, 0.001143296
  %v2299 = vmul.f32 %v2285, %v2298
  %v2300 = vadd.f32 %v2299, 0.014752088
  %v2301 = vmul.f32 %v2285, %v2300
  %v2302 = vadd.f32 %v2301, 0.112945676
  %v2303 = vmul.f32 %v2285, %v2302
  %v2304 = vadd.f32 %v2303, 0.4994258
  %v2305 = vmul.f32 %v2285, %v2304
  %v2306 = vadd.f32 %v2305, 1.0
  %v2307 = vrcp.pop %v2306
  %v2308 = vmul.f32 %v2306, %v2307
  %v2309 = vsub.f32 1.0, %v2308
  %v2310 = vmul.f32 %v2307, %v2309
  %v2311 = vadd.f32 %v2307, %v2310
  %vm2312 = vweird.f32 %v2306
  %vm2313 = vweird.f32 %v2307
  %vm2314 = vmor %vm2312, %vm2313
  %v2315 = vsel %vm2314, %v2307, %v2311
  %v2316 = vand.u32 2147483647, %v2306
  %vm2317 = vcmp.eq.f32.partialorder %v2316, 8.507059e+37
  %v2318 = vand.u32 %v2306, 2147483648
  %v2319 = vor.u32 1.1754944e-38, %v2318
  %v2320 = vsel %vm2317, %v2319, %v2315
  %v2321 = vmul.f32 %v2296, %v2320
  %v2322 = vmin.f32 %v2321, 1.0
  %v2323 = vmax.f32 %v2322, -1.0
  %v2324 = vmul.f32 %v2238, %v2238
  %v2325 = vmin.f32 16.0, %v2324
  %v2326 = vmul.f32 %v2325, 2.1237322e-06
  %v2327 = vadd.f32 %v2326, 0.00028619796
  %v2328 = vmul.f32 %v2325, %v2327
  %v2329 = vadd.f32 %v2328, 0.0036580483
  %v2330 = vmul.f32 %v2325, %v2329
  %v2331 = vadd.f32 %v2330, 0.05243302
  %v2332 = vmul.f32 %v2325, %v2331
  %v2333 = vadd.f32 %v2332, 0.18741608
  %v2334 = vmul.f32 %v2325, %v2333
  %v2335 = vadd.f32 %v2334, 1.1283791
  %v2336 = vmul.f32 %v2238, %v2335
  %v2337 = vmul.f32 %v2325, 3.8918573e-05
  %v2338 = vadd.f32 %v2337, 0.001143296
  %v2339 = vmul.f32 %v2325, %v2338
  %v2340 = vadd.f32 %v2339, 0.014752088
  %v2341 = vmul.f32 %v2325, %v2340
  %v2342 = vadd.f32 %v2341, 0.112945676
  %v2343 = vmul.f32 %v2325, %v2342
  %v2344 = vadd.f32 %v2343, 0.4994258
  %v2345 = vmul.f32 %v2325, %v2344
  %v2346 = vadd.f32 %v2345, 1.0
  %v2347 = vrcp.pop %v2346
  %v2348 = vmul.f32 %v2346, %v2347
  %v2349 = vsub.f32 1.0, %v2348
  %v2350 = vmul.f32 %v2347, %v2349
  %v2351 = vadd.f32 %v2347, %v2350
  %vm2352 = vweird.f32 %v2346
  %vm2353 = vweird.f32 %v2347
  %vm2354 = vmor %vm2352, %vm2353
  %v2355 = vsel %vm2354, %v2347, %v2351
  %v2356 = vand.u32 2147483647, %v2346
  %vm2357 = vcmp.eq.f32.partialorder %v2356, 8.507059e+37
  %v2358 = vand.u32 %v2346, 2147483648
  %v2359 = vor.u32 1.1754944e-38, %v2358
  %v2360 = vsel %vm2357, %v2359, %v2355
  %v2361 = vmul.f32 %v2336, %v2360
  %v2362 = vmin.f32 %v2361, 1.0
  %v2363 = vmax.f32 %v2362, -1.0
  %v2364 = vmul.f32 %v2239, %v2239
  %v2365 = vmin.f32 16.0, %v2364
  %v2366 = vmul.f32 %v2365, 2.1237322e-06
  %v2367 = vadd.f32 %v2366, 0.00028619796
  %v2368 = vmul.f32 %v2365, %v2367
  %v2369 = vadd.f32 %v2368, 0.0036580483
  %v2370 = vmul.f32 %v2365, %v2369
  %v2371 = vadd.f32 %v2370, 0.05243302
  %v2372 = vmul.f32 %v2365, %v2371
  %v2373 = vadd.f32 %v2372, 0.18741608
  %v2374 = vmul.f32 %v2365, %v2373
  %v2375 = vadd.f32 %v2374, 1.1283791
  %v2376 = vmul.f32 %v2239, %v2375
  %v2377 = vmul.f32 %v2365, 3.8918573e-05
  %v2378 = vadd.f32 %v2377, 0.001143296
  %v2379 = vmul.f32 %v2365, %v2378
  %v2380 = vadd.f32 %v2379, 0.014752088
  %v2381 = vmul.f32 %v2365, %v2380
  %v2382 = vadd.f32 %v2381, 0.112945676
  %v2383 = vmul.f32 %v2365, %v2382
  %v2384 = vadd.f32 %v2383, 0.4994258
  %v2385 = vmul.f32 %v2365, %v2384
  %v2386 = vadd.f32 %v2385, 1.0
  %v2387 = vrcp.pop %v2386
  %v2388 = vmul.f32 %v2386, %v2387
  %v2389 = vsub.f32 1.0, %v2388
  %v2390 = vmul.f32 %v2387, %v2389
  %v2391 = vadd.f32 %v2387, %v2390
  %vm2392 = vweird.f32 %v2386
  %vm2393 = vweird.f32 %v2387
  %vm2394 = vmor %vm2392, %vm2393
  %v2395 = vsel %vm2394, %v2387, %v2391
  %v2396 = vand.u32 2147483647, %v2386
  %vm2397 = vcmp.eq.f32.partialorder %v2396, 8.507059e+37
  %v2398 = vand.u32 %v2386, 2147483648
  %v2399 = vor.u32 1.1754944e-38, %v2398
  %v2400 = vsel %vm2397, %v2399, %v2395
  %v2401 = vmul.f32 %v2376, %v2400
  %v2402 = vmin.f32 %v2401, 1.0
  %v2403 = vmax.f32 %v2402, -1.0
  %v2404 = vmul.f32 %v2240, %v2240
  %v2405 = vmin.f32 16.0, %v2404
  %v2406 = vmul.f32 %v2405, 2.1237322e-06
  %v2407 = vadd.f32 %v2406, 0.00028619796
  %v2408 = vmul.f32 %v2405, %v2407
  %v2409 = vadd.f32 %v2408, 0.0036580483
  %v2410 = vmul.f32 %v2405, %v2409
  %v2411 = vadd.f32 %v2410, 0.05243302
  %v2412 = vmul.f32 %v2405, %v2411
  %v2413 = vadd.f32 %v2412, 0.18741608
  %v2414 = vmul.f32 %v2405, %v2413
  %v2415 = vadd.f32 %v2414, 1.1283791
  %v2416 = vmul.f32 %v2240, %v2415
  %v2417 = vmul.f32 %v2405, 3.8918573e-05
  %v2418 = vadd.f32 %v2417, 0.001143296
  %v2419 = vmul.f32 %v2405, %v2418
  %v2420 = vadd.f32 %v2419, 0.014752088
  %v2421 = vmul.f32 %v2405, %v2420
  %v2422 = vadd.f32 %v2421, 0.112945676
  %v2423 = vmul.f32 %v2405, %v2422
  %v2424 = vadd.f32 %v2423, 0.4994258
  %v2425 = vmul.f32 %v2405, %v2424
  %v2426 = vadd.f32 %v2425, 1.0
  %v2427 = vrcp.pop %v2426
  %v2428 = vmul.f32 %v2426, %v2427
  %v2429 = vsub.f32 1.0, %v2428
  %v2430 = vmul.f32 %v2427, %v2429
  %v2431 = vadd.f32 %v2427, %v2430
  %vm2432 = vweird.f32 %v2426
  %vm2433 = vweird.f32 %v2427
  %vm2434 = vmor %vm2432, %vm2433
  %v2435 = vsel %vm2434, %v2427, %v2431
  %v2436 = vand.u32 2147483647, %v2426
  %vm2437 = vcmp.eq.f32.partialorder %v2436, 8.507059e+37
  %v2438 = vand.u32 %v2426, 2147483648
  %v2439 = vor.u32 1.1754944e-38, %v2438
  %v2440 = vsel %vm2437, %v2439, %v2435
  %v2441 = vmul.f32 %v2416, %v2440
  %v2442 = vmin.f32 %v2441, 1.0
  %v2443 = vmax.f32 %v2442, -1.0
  %v2444 = vmul.f32 %v2241, %v2241
  %v2445 = vmin.f32 16.0, %v2444
  %v2446 = vmul.f32 %v2445, 2.1237322e-06
  %v2447 = vadd.f32 %v2446, 0.00028619796
  %v2448 = vmul.f32 %v2445, %v2447
  %v2449 = vadd.f32 %v2448, 0.0036580483
  %v2450 = vmul.f32 %v2445, %v2449
  %v2451 = vadd.f32 %v2450, 0.05243302
  %v2452 = vmul.f32 %v2445, %v2451
  %v2453 = vadd.f32 %v2452, 0.18741608
  %v2454 = vmul.f32 %v2445, %v2453
  %v2455 = vadd.f32 %v2454, 1.1283791
  %v2456 = vmul.f32 %v2241, %v2455
  %v2457 = vmul.f32 %v2445, 3.8918573e-05
  %v2458 = vadd.f32 %v2457, 0.001143296
  %v2459 = vmul.f32 %v2445, %v2458
  %v2460 = vadd.f32 %v2459, 0.014752088
  %v2461 = vmul.f32 %v2445, %v2460
  %v2462 = vadd.f32 %v2461, 0.112945676
  %v2463 = vmul.f32 %v2445, %v2462
  %v2464 = vadd.f32 %v2463, 0.4994258
  %v2465 = vmul.f32 %v2445, %v2464
  %v2466 = vadd.f32 %v2465, 1.0
  %v2467 = vrcp.pop %v2466
  %v2468 = vmul.f32 %v2466, %v2467
  %v2469 = vsub.f32 1.0, %v2468
  %v2470 = vmul.f32 %v2467, %v2469
  %v2471 = vadd.f32 %v2467, %v2470
  %vm2472 = vweird.f32 %v2466
  %vm2473 = vweird.f32 %v2467
  %vm2474 = vmor %vm2472, %vm2473
  %v2475 = vsel %vm2474, %v2467, %v2471
  %v2476 = vand.u32 2147483647, %v2466
  %vm2477 = vcmp.eq.f32.partialorder %v2476, 8.507059e+37
  %v2478 = vand.u32 %v2466, 2147483648
  %v2479 = vor.u32 1.1754944e-38, %v2478
  %v2480 = vsel %vm2477, %v2479, %v2475
  %v2481 = vmul.f32 %v2456, %v2480
  %v2482 = vmin.f32 %v2481, 1.0
  %v2483 = vmax.f32 %v2482, -1.0
  %v2484 = vmul.f32 %v2242, %v2242
  %v2485 = vmin.f32 16.0, %v2484
  %v2486 = vmul.f32 %v2485, 2.1237322e-06
  %v2487 = vadd.f32 %v2486, 0.00028619796
  %v2488 = vmul.f32 %v2485, %v2487
  %v2489 = vadd.f32 %v2488, 0.0036580483
  %v2490 = vmul.f32 %v2485, %v2489
  %v2491 = vadd.f32 %v2490, 0.05243302
  %v2492 = vmul.f32 %v2485, %v2491
  %v2493 = vadd.f32 %v2492, 0.18741608
  %v2494 = vmul.f32 %v2485, %v2493
  %v2495 = vadd.f32 %v2494, 1.1283791
  %v2496 = vmul.f32 %v2242, %v2495
  %v2497 = vmul.f32 %v2485, 3.8918573e-05
  %v2498 = vadd.f32 %v2497, 0.001143296
  %v2499 = vmul.f32 %v2485, %v2498
  %v2500 = vadd.f32 %v2499, 0.014752088
  %v2501 = vmul.f32 %v2485, %v2500
  %v2502 = vadd.f32 %v2501, 0.112945676
  %v2503 = vmul.f32 %v2485, %v2502
  %v2504 = vadd.f32 %v2503, 0.4994258
  %v2505 = vmul.f32 %v2485, %v2504
  %v2506 = vadd.f32 %v2505, 1.0
  %v2507 = vrcp.pop %v2506
  %v2508 = vmul.f32 %v2506, %v2507
  %v2509 = vsub.f32 1.0, %v2508
  %v2510 = vmul.f32 %v2507, %v2509
  %v2511 = vadd.f32 %v2507, %v2510
  %vm2512 = vweird.f32 %v2506
  %vm2513 = vweird.f32 %v2507
  %vm2514 = vmor %vm2512, %vm2513
  %v2515 = vsel %vm2514, %v2507, %v2511
  %v2516 = vand.u32 2147483647, %v2506
  %vm2517 = vcmp.eq.f32.partialorder %v2516, 8.507059e+37
  %v2518 = vand.u32 %v2506, 2147483648
  %v2519 = vor.u32 1.1754944e-38, %v2518
  %v2520 = vsel %vm2517, %v2519, %v2515
  %v2521 = vmul.f32 %v2496, %v2520
  %v2522 = vmin.f32 %v2521, 1.0
  %v2523 = vmax.f32 %v2522, -1.0
  %v2524 = vmul.f32 %v2243, %v2243
  %v2525 = vmin.f32 16.0, %v2524
  %v2526 = vmul.f32 %v2525, 2.1237322e-06
  %v2527 = vadd.f32 %v2526, 0.00028619796
  %v2528 = vmul.f32 %v2525, %v2527
  %v2529 = vadd.f32 %v2528, 0.0036580483
  %v2530 = vmul.f32 %v2525, %v2529
  %v2531 = vadd.f32 %v2530, 0.05243302
  %v2532 = vmul.f32 %v2525, %v2531
  %v2533 = vadd.f32 %v2532, 0.18741608
  %v2534 = vmul.f32 %v2525, %v2533
  %v2535 = vadd.f32 %v2534, 1.1283791
  %v2536 = vmul.f32 %v2243, %v2535
  %v2537 = vmul.f32 %v2525, 3.8918573e-05
  %v2538 = vadd.f32 %v2537, 0.001143296
  %v2539 = vmul.f32 %v2525, %v2538
  %v2540 = vadd.f32 %v2539, 0.014752088
  %v2541 = vmul.f32 %v2525, %v2540
  %v2542 = vadd.f32 %v2541, 0.112945676
  %v2543 = vmul.f32 %v2525, %v2542
  %v2544 = vadd.f32 %v2543, 0.4994258
  %v2545 = vmul.f32 %v2525, %v2544
  %v2546 = vadd.f32 %v2545, 1.0
  %v2547 = vrcp.pop %v2546
  %v2548 = vmul.f32 %v2546, %v2547
  %v2549 = vsub.f32 1.0, %v2548
  %v2550 = vmul.f32 %v2547, %v2549
  %v2551 = vadd.f32 %v2547, %v2550
  %vm2552 = vweird.f32 %v2546
  %vm2553 = vweird.f32 %v2547
  %vm2554 = vmor %vm2552, %vm2553
  %v2555 = vsel %vm2554, %v2547, %v2551
  %v2556 = vand.u32 2147483647, %v2546
  %vm2557 = vcmp.eq.f32.partialorder %v2556, 8.507059e+37
  %v2558 = vand.u32 %v2546, 2147483648
  %v2559 = vor.u32 1.1754944e-38, %v2558
  %v2560 = vsel %vm2557, %v2559, %v2555
  %v2561 = vmul.f32 %v2536, %v2560
  %v2562 = vmin.f32 %v2561, 1.0
  %v2563 = vmax.f32 %v2562, -1.0
  %v2564 = vadd.f32 %v2283, 1.0
  %v2565 = vadd.f32 %v2323, 1.0
  %v2566 = vadd.f32 %v2363, 1.0
  %v2567 = vadd.f32 %v2403, 1.0
  %v2568 = vadd.f32 %v2443, 1.0
  %v2569 = vadd.f32 %v2483, 1.0
  %v2570 = vadd.f32 %v2523, 1.0
  %v2571 = vadd.f32 %v2563, 1.0
  %v2572 = vmul.f32 %v2228, %v2564
  %v2573 = vmul.f32 %v2229, %v2565
  %v2574 = vmul.f32 %v2230, %v2566
  %v2575 = vmul.f32 %v2231, %v2567
  %v2576 = vmul.f32 %v2232, %v2568
  %v2577 = vmul.f32 %v2233, %v2569
  %v2578 = vmul.f32 %v2234, %v2570
  %v2579 = vmul.f32 %v2235, %v2571
  %v2580 = vld [vmem:[%s12] sm:$0xff]
  %v2581 = vld [vmem:[%s12 + $0x8] sm:$0xff]
  %v2582 = vld [vmem:[%s12 + $0x10] sm:$0xff]
  %v2583 = vld [vmem:[%s12 + $0x18] sm:$0xff]
  %v2584 = vld [vmem:[%s12 + $0x20] sm:$0xff]
  %v2585 = vld [vmem:[%s12 + $0x28] sm:$0xff]
  %v2586 = vld [vmem:[%s12 + $0x30] sm:$0xff]
  %v2587 = vld [vmem:[%s12 + $0x38] sm:$0xff]
  %v2588 = vld [vmem:[%s13] sm:$0x1]
  %v2590 = vperm.slane %v2588, 0
  %vm2592 = vcmask 523264
  %v2594 = vsel %vm2592, %v2572, 0
  %v2597 = vsel %vm2592, %v2573, 0
  %v2600 = vsel %vm2592, %v2574, 0
  %v2603 = vsel %vm2592, %v2575, 0
  %v2606 = vsel %vm2592, %v2576, 0
  %v2609 = vsel %vm2592, %v2577, 0
  %v2612 = vsel %vm2592, %v2578, 0
  %v2615 = vsel %vm2592, %v2579, 0
  %2617 = vmatpush.msra.mxu0 0.0
  %2618 = vmatpush.msra.mxu0 0.0
  %2619 = vmatpush.msra.mxu0 0.0
  %2620 = vmatpush.msra.mxu0 0.0
  %2621 = vmatpush.msra.mxu0 0.0
  %2622 = vmatpush.msra.mxu0 0.0
  %2623 = vmatpush.msra.mxu0 0.0
  %2624 = vmatpush.msra.mxu0 0.0
  %2625 = vmatpush.msra.mxu0 %v2587
  %2626 = vmatpush.msra.mxu0 %v2586
  %2627 = vmatpush.msra.mxu0 %v2585
  %2628 = vmatpush.msra.mxu0 %v2584
  %2629 = vmatpush.msra.mxu0 %v2583
  %2630 = vmatpush.msra.mxu0 %v2582
  %2631 = vmatpush.msra.mxu0 %v2581
  %2632 = vmatpush.msra.mxu0 %v2580
  %2633 = vmatmul.f32.gmra.mxu0 %v2594
  %v2634 = vpop.f32.mrf.mxu0
  %v2635 = vadd.f32 %v2590, %v2634
  %2636 = vmatmul.f32.gmra.mxu0 %v2597
  %v2637 = vpop.f32.mrf.mxu0
  %v2638 = vadd.f32 %v2590, %v2637
  %2639 = vmatmul.f32.gmra.mxu0 %v2600
  %v2640 = vpop.f32.mrf.mxu0
  %v2641 = vadd.f32 %v2590, %v2640
  %2642 = vmatmul.f32.gmra.mxu0 %v2603
  %v2643 = vpop.f32.mrf.mxu0
  %v2644 = vadd.f32 %v2590, %v2643
  %2645 = vmatmul.f32.gmra.mxu0 %v2606
  %v2646 = vpop.f32.mrf.mxu0
  %v2647 = vadd.f32 %v2590, %v2646
  %2648 = vmatmul.f32.gmra.mxu0 %v2609
  %v2649 = vpop.f32.mrf.mxu0
  %v2650 = vadd.f32 %v2590, %v2649
  %2651 = vmatmul.f32.gmra.mxu0 %v2612
  %v2652 = vpop.f32.mrf.mxu0
  %v2653 = vadd.f32 %v2590, %v2652
  %2654 = vmatmul.f32.gmra.mxu0 %v2615
  %v2655 = vpop.f32.mrf.mxu0
  %v2656 = vadd.f32 %v2590, %v2655
  %2657 = vdwg.mxu0
  %v2658 = vadd.f32 %v1947, %v2635
  %v2659 = vadd.f32 %v1948, %v2638
  %v2660 = vadd.f32 %v1949, %v2641
  %v2661 = vadd.f32 %v1950, %v2644
  %v2662 = vadd.f32 %v1951, %v2647
  %v2663 = vadd.f32 %v1952, %v2650
  %v2664 = vadd.f32 %v1953, %v2653
  %v2665 = vadd.f32 %v1954, %v2656
  %s2666 = scalar_lea.vmem %s2, 1
  %v2667 = vld [vmem:[%s2666] sm:$0x1]
  %s2668 = scalar_lea.vmem %s3, 1
  %v2669 = vld [vmem:[%s2668] sm:$0x1]
  %v2670 = vsel %vm79, %v2658, 0.0
  %2671 = vadd.xlane.f32.xlu0 %v2670
  %v2672 = vpop.xlane.xlu0 %2671
  %v2673 = vsel %vm79, %v2659, 0.0
  %2674 = vadd.xlane.f32.xlu0 %v2673
  %v2675 = vpop.xlane.xlu0 %2674
  %v2676 = vsel %vm79, %v2660, 0.0
  %2677 = vadd.xlane.f32.xlu0 %v2676
  %v2678 = vpop.xlane.xlu0 %2677
  %v2679 = vsel %vm79, %v2661, 0.0
  %2680 = vadd.xlane.f32.xlu0 %v2679
  %v2681 = vpop.xlane.xlu0 %2680
  %v2682 = vsel %vm79, %v2662, 0.0
  %2683 = vadd.xlane.f32.xlu0 %v2682
  %v2684 = vpop.xlane.xlu0 %2683
  %v2685 = vsel %vm79, %v2663, 0.0
  %2686 = vadd.xlane.f32.xlu0 %v2685
  %v2687 = vpop.xlane.xlu0 %2686
  %v2688 = vsel %vm79, %v2664, 0.0
  %2689 = vadd.xlane.f32.xlu0 %v2688
  %v2690 = vpop.xlane.xlu0 %2689
  %v2691 = vsel %vm79, %v2665, 0.0
  %2692 = vadd.xlane.f32.xlu0 %v2691
  %v2693 = vpop.xlane.xlu0 %2692
  %v2694 = vmul.f32 %v2672, %v110
  %v2695 = vmul.f32 %v2675, %v110
  %v2696 = vmul.f32 %v2678, %v110
  %v2697 = vmul.f32 %v2681, %v110
  %v2698 = vmul.f32 %v2684, %v110
  %v2699 = vmul.f32 %v2687, %v110
  %v2700 = vmul.f32 %v2690, %v110
  %v2701 = vmul.f32 %v2693, %v110
  %v2702 = vsub.f32 %v2658, %v2694
  %v2703 = vsub.f32 %v2659, %v2695
  %v2704 = vsub.f32 %v2660, %v2696
  %v2705 = vsub.f32 %v2661, %v2697
  %v2706 = vsub.f32 %v2662, %v2698
  %v2707 = vsub.f32 %v2663, %v2699
  %v2708 = vsub.f32 %v2664, %v2700
  %v2709 = vsub.f32 %v2665, %v2701
  %v2710 = vmul.f32 %v2702, %v2702
  %v2711 = vmul.f32 %v2703, %v2703
  %v2712 = vmul.f32 %v2704, %v2704
  %v2713 = vmul.f32 %v2705, %v2705
  %v2714 = vmul.f32 %v2706, %v2706
  %v2715 = vmul.f32 %v2707, %v2707
  %v2716 = vmul.f32 %v2708, %v2708
  %v2717 = vmul.f32 %v2709, %v2709
  %v2718 = vsel %vm79, %v2710, 0.0
  %2719 = vadd.xlane.f32.xlu0 %v2718
  %v2720 = vpop.xlane.xlu0 %2719
  %v2721 = vsel %vm79, %v2711, 0.0
  %2722 = vadd.xlane.f32.xlu0 %v2721
  %v2723 = vpop.xlane.xlu0 %2722
  %v2724 = vsel %vm79, %v2712, 0.0
  %2725 = vadd.xlane.f32.xlu0 %v2724
  %v2726 = vpop.xlane.xlu0 %2725
  %v2727 = vsel %vm79, %v2713, 0.0
  %2728 = vadd.xlane.f32.xlu0 %v2727
  %v2729 = vpop.xlane.xlu0 %2728
  %v2730 = vsel %vm79, %v2714, 0.0
  %2731 = vadd.xlane.f32.xlu0 %v2730
  %v2732 = vpop.xlane.xlu0 %2731
  %v2733 = vsel %vm79, %v2715, 0.0
  %2734 = vadd.xlane.f32.xlu0 %v2733
  %v2735 = vpop.xlane.xlu0 %2734
  %v2736 = vsel %vm79, %v2716, 0.0
  %2737 = vadd.xlane.f32.xlu0 %v2736
  %v2738 = vpop.xlane.xlu0 %2737
  %v2739 = vsel %vm79, %v2717, 0.0
  %2740 = vadd.xlane.f32.xlu0 %v2739
  %v2741 = vpop.xlane.xlu0 %2740
  %v2742 = vmul.f32 %v2720, %v110
  %v2743 = vmul.f32 %v2723, %v110
  %v2744 = vmul.f32 %v2726, %v110
  %v2745 = vmul.f32 %v2729, %v110
  %v2746 = vmul.f32 %v2732, %v110
  %v2747 = vmul.f32 %v2735, %v110
  %v2748 = vmul.f32 %v2738, %v110
  %v2749 = vmul.f32 %v2741, %v110
  %v2750 = vadd.f32 %v2742, 1e-05
  %v2751 = vadd.f32 %v2743, 1e-05
  %v2752 = vadd.f32 %v2744, 1e-05
  %v2753 = vadd.f32 %v2745, 1e-05
  %v2754 = vadd.f32 %v2746, 1e-05
  %v2755 = vadd.f32 %v2747, 1e-05
  %v2756 = vadd.f32 %v2748, 1e-05
  %v2757 = vadd.f32 %v2749, 1e-05
  %v2758 = vrsqrt.pop %v2750
  %v2759 = vmul.f32 %v2758, %v2750
  %v2760 = vmul.f32 %v2759, %v2758
  %v2761 = vmul.f32 0.5, %v2760
  %v2762 = vsub.f32 1.5, %v2761
  %v2763 = vmul.f32 %v2758, %v2762
  %vm2764 = vweird.f32 %v2750
  %vm2765 = vweird.f32 %v2758
  %vm2766 = vmor %vm2764, %vm2765
  %v2767 = vsel %vm2766, %v2758, %v2763
  %v2768 = vrsqrt.pop %v2751
  %v2769 = vmul.f32 %v2768, %v2751
  %v2770 = vmul.f32 %v2769, %v2768
  %v2771 = vmul.f32 0.5, %v2770
  %v2772 = vsub.f32 1.5, %v2771
  %v2773 = vmul.f32 %v2768, %v2772
  %vm2774 = vweird.f32 %v2751
  %vm2775 = vweird.f32 %v2768
  %vm2776 = vmor %vm2774, %vm2775
  %v2777 = vsel %vm2776, %v2768, %v2773
  %v2778 = vrsqrt.pop %v2752
  %v2779 = vmul.f32 %v2778, %v2752
  %v2780 = vmul.f32 %v2779, %v2778
  %v2781 = vmul.f32 0.5, %v2780
  %v2782 = vsub.f32 1.5, %v2781
  %v2783 = vmul.f32 %v2778, %v2782
  %vm2784 = vweird.f32 %v2752
  %vm2785 = vweird.f32 %v2778
  %vm2786 = vmor %vm2784, %vm2785
  %v2787 = vsel %vm2786, %v2778, %v2783
  %v2788 = vrsqrt.pop %v2753
  %v2789 = vmul.f32 %v2788, %v2753
  %v2790 = vmul.f32 %v2789, %v2788
  %v2791 = vmul.f32 0.5, %v2790
  %v2792 = vsub.f32 1.5, %v2791
  %v2793 = vmul.f32 %v2788, %v2792
  %vm2794 = vweird.f32 %v2753
  %vm2795 = vweird.f32 %v2788
  %vm2796 = vmor %vm2794, %vm2795
  %v2797 = vsel %vm2796, %v2788, %v2793
  %v2798 = vrsqrt.pop %v2754
  %v2799 = vmul.f32 %v2798, %v2754
  %v2800 = vmul.f32 %v2799, %v2798
  %v2801 = vmul.f32 0.5, %v2800
  %v2802 = vsub.f32 1.5, %v2801
  %v2803 = vmul.f32 %v2798, %v2802
  %vm2804 = vweird.f32 %v2754
  %vm2805 = vweird.f32 %v2798
  %vm2806 = vmor %vm2804, %vm2805
  %v2807 = vsel %vm2806, %v2798, %v2803
  %v2808 = vrsqrt.pop %v2755
  %v2809 = vmul.f32 %v2808, %v2755
  %v2810 = vmul.f32 %v2809, %v2808
  %v2811 = vmul.f32 0.5, %v2810
  %v2812 = vsub.f32 1.5, %v2811
  %v2813 = vmul.f32 %v2808, %v2812
  %vm2814 = vweird.f32 %v2755
  %vm2815 = vweird.f32 %v2808
  %vm2816 = vmor %vm2814, %vm2815
  %v2817 = vsel %vm2816, %v2808, %v2813
  %v2818 = vrsqrt.pop %v2756
  %v2819 = vmul.f32 %v2818, %v2756
  %v2820 = vmul.f32 %v2819, %v2818
  %v2821 = vmul.f32 0.5, %v2820
  %v2822 = vsub.f32 1.5, %v2821
  %v2823 = vmul.f32 %v2818, %v2822
  %vm2824 = vweird.f32 %v2756
  %vm2825 = vweird.f32 %v2818
  %vm2826 = vmor %vm2824, %vm2825
  %v2827 = vsel %vm2826, %v2818, %v2823
  %v2828 = vrsqrt.pop %v2757
  %v2829 = vmul.f32 %v2828, %v2757
  %v2830 = vmul.f32 %v2829, %v2828
  %v2831 = vmul.f32 0.5, %v2830
  %v2832 = vsub.f32 1.5, %v2831
  %v2833 = vmul.f32 %v2828, %v2832
  %vm2834 = vweird.f32 %v2757
  %vm2835 = vweird.f32 %v2828
  %vm2836 = vmor %vm2834, %vm2835
  %v2837 = vsel %vm2836, %v2828, %v2833
  %v2838 = vmul.f32 %v2702, %v2767
  %v2839 = vmul.f32 %v2703, %v2777
  %v2840 = vmul.f32 %v2704, %v2787
  %v2841 = vmul.f32 %v2705, %v2797
  %v2842 = vmul.f32 %v2706, %v2807
  %v2843 = vmul.f32 %v2707, %v2817
  %v2844 = vmul.f32 %v2708, %v2827
  %v2845 = vmul.f32 %v2709, %v2837
  %v2847 = vperm.slane %v2667, 0
  %v2849 = vmul.f32 %v2838, %v2847
  %v2850 = vmul.f32 %v2839, %v2847
  %v2851 = vmul.f32 %v2840, %v2847
  %v2852 = vmul.f32 %v2841, %v2847
  %v2853 = vmul.f32 %v2842, %v2847
  %v2854 = vmul.f32 %v2843, %v2847
  %v2855 = vmul.f32 %v2844, %v2847
  %v2856 = vmul.f32 %v2845, %v2847
  %v2858 = vperm.slane %v2669, 0
  %v2860 = vadd.f32 %v2849, %v2858
  %v2861 = vadd.f32 %v2850, %v2858
  %v2862 = vadd.f32 %v2851, %v2858
  %v2863 = vadd.f32 %v2852, %v2858
  %v2864 = vadd.f32 %v2853, %v2858
  %v2865 = vadd.f32 %v2854, %v2858
  %v2866 = vadd.f32 %v2855, %v2858
  %v2867 = vadd.f32 %v2856, %v2858
  %s2868 = scalar_lea.vmem %s4, 32
  %v2869 = vld [vmem:[%s2868] sm:$0xff]
  %v2870 = vld [vmem:[%s2868 + $0x8] sm:$0xff]
  %v2871 = vld [vmem:[%s2868 + $0x10] sm:$0xff]
  %v2872 = vld [vmem:[%s2868 + $0x18] sm:$0xff]
  %s2873 = scalar_lea.vmem %s5, 1
  %v2874 = vld [vmem:[%s2873] sm:$0x1]
  %v2876 = vperm.slane %v2874, 0
  %v2879 = vsel %vm79, %v2860, 0
  %v2882 = vsel %vm79, %v2861, 0
  %v2885 = vsel %vm79, %v2862, 0
  %v2888 = vsel %vm79, %v2863, 0
  %v2891 = vsel %vm79, %v2864, 0
  %v2894 = vsel %vm79, %v2865, 0
  %v2897 = vsel %vm79, %v2866, 0
  %v2900 = vsel %vm79, %v2867, 0
  %2902 = vmatpush.msra.mxu0 0.0
  %2903 = vmatpush.msra.mxu0 0.0
  %2904 = vmatpush.msra.mxu0 0.0
  %2905 = vmatpush.msra.mxu0 0.0
  %2906 = vmatpush.msra.mxu0 0.0
  %2907 = vmatpush.msra.mxu0 0.0
  %2908 = vmatpush.msra.mxu0 0.0
  %2909 = vmatpush.msra.mxu0 0.0
  %2910 = vmatpush.msra.mxu0 0.0
  %2911 = vmatpush.msra.mxu0 0.0
  %2912 = vmatpush.msra.mxu0 0.0
  %2913 = vmatpush.msra.mxu0 0.0
  %2914 = vmatpush.msra.mxu0 %v2872
  %2915 = vmatpush.msra.mxu0 %v2871
  %2916 = vmatpush.msra.mxu0 %v2870
  %2917 = vmatpush.msra.mxu0 %v2869
  %2918 = vmatmul.f32.gmra.mxu0 %v2879
  %v2919 = vpop.f32.mrf.mxu0
  %v2920 = vadd.f32 %v2876, %v2919
  %2921 = vmatmul.f32.gmra.mxu0 %v2882
  %v2922 = vpop.f32.mrf.mxu0
  %v2923 = vadd.f32 %v2876, %v2922
  %2924 = vmatmul.f32.gmra.mxu0 %v2885
  %v2925 = vpop.f32.mrf.mxu0
  %v2926 = vadd.f32 %v2876, %v2925
  %2927 = vmatmul.f32.gmra.mxu0 %v2888
  %v2928 = vpop.f32.mrf.mxu0
  %v2929 = vadd.f32 %v2876, %v2928
  %2930 = vmatmul.f32.gmra.mxu0 %v2891
  %v2931 = vpop.f32.mrf.mxu0
  %v2932 = vadd.f32 %v2876, %v2931
  %2933 = vmatmul.f32.gmra.mxu0 %v2894
  %v2934 = vpop.f32.mrf.mxu0
  %v2935 = vadd.f32 %v2876, %v2934
  %2936 = vmatmul.f32.gmra.mxu0 %v2897
  %v2937 = vpop.f32.mrf.mxu0
  %v2938 = vadd.f32 %v2876, %v2937
  %2939 = vmatmul.f32.gmra.mxu0 %v2900
  %v2940 = vpop.f32.mrf.mxu0
  %v2941 = vadd.f32 %v2876, %v2940
  %2942 = vdwg.mxu0
  %2947 = vrot.lane.b32.xlu0 %v2920, 120
  %v2948 = vpop.permute.xlu0 %2947
  %2949 = vrot.lane.b32.xlu0 %v2923, 120
  %v2950 = vpop.permute.xlu0 %2949
  %2951 = vrot.lane.b32.xlu0 %v2926, 120
  %v2952 = vpop.permute.xlu0 %2951
  %2953 = vrot.lane.b32.xlu0 %v2929, 120
  %v2954 = vpop.permute.xlu0 %2953
  %2959 = vrot.lane.b32.xlu0 %v2932, 120
  %v2960 = vpop.permute.xlu0 %2959
  %2961 = vrot.lane.b32.xlu0 %v2935, 120
  %v2962 = vpop.permute.xlu0 %2961
  %2963 = vrot.lane.b32.xlu0 %v2938, 120
  %v2964 = vpop.permute.xlu0 %2963
  %2965 = vrot.lane.b32.xlu0 %v2941, 120
  %v2966 = vpop.permute.xlu0 %2965
  %2967 = vrot.lane.b32.xlu0 %v2920, 112
  %v2968 = vpop.permute.xlu0 %2967
  %2969 = vrot.lane.b32.xlu0 %v2923, 112
  %v2970 = vpop.permute.xlu0 %2969
  %2971 = vrot.lane.b32.xlu0 %v2926, 112
  %v2972 = vpop.permute.xlu0 %2971
  %2973 = vrot.lane.b32.xlu0 %v2929, 112
  %v2974 = vpop.permute.xlu0 %2973
  %2975 = vrot.lane.b32.xlu0 %v2932, 112
  %v2976 = vpop.permute.xlu0 %2975
  %2977 = vrot.lane.b32.xlu0 %v2935, 112
  %v2978 = vpop.permute.xlu0 %2977
  %2979 = vrot.lane.b32.xlu0 %v2938, 112
  %v2980 = vpop.permute.xlu0 %2979
  %2981 = vrot.lane.b32.xlu0 %v2941, 112
  %v2982 = vpop.permute.xlu0 %2981
  %2983 = vrot.lane.b32.xlu0 %v2920, 104
  %v2984 = vpop.permute.xlu0 %2983
  %2985 = vrot.lane.b32.xlu0 %v2923, 104
  %v2986 = vpop.permute.xlu0 %2985
  %2987 = vrot.lane.b32.xlu0 %v2926, 104
  %v2988 = vpop.permute.xlu0 %2987
  %2989 = vrot.lane.b32.xlu0 %v2929, 104
  %v2990 = vpop.permute.xlu0 %2989
  %2991 = vrot.lane.b32.xlu0 %v2932, 104
  %v2992 = vpop.permute.xlu0 %2991
  %2993 = vrot.lane.b32.xlu0 %v2935, 104
  %v2994 = vpop.permute.xlu0 %2993
  %2995 = vrot.lane.b32.xlu0 %v2938, 104
  %v2996 = vpop.permute.xlu0 %2995
  %2997 = vrot.lane.b32.xlu0 %v2941, 104
  %v2998 = vpop.permute.xlu0 %2997
  %2999 = vrot.lane.b32.xlu0 %v2920, 96
  %v3000 = vpop.permute.xlu0 %2999
  %3001 = vrot.lane.b32.xlu0 %v2923, 96
  %v3002 = vpop.permute.xlu0 %3001
  %3003 = vrot.lane.b32.xlu0 %v2926, 96
  %v3004 = vpop.permute.xlu0 %3003
  %3005 = vrot.lane.b32.xlu0 %v2929, 96
  %v3006 = vpop.permute.xlu0 %3005
  %v3007 = vsel %vm422, %v2920, 0
  %v3009 = vsel %vm422, %v2923, 0
  %v3011 = vsel %vm422, %v2926, 0
  %v3013 = vsel %vm422, %v2929, 0
  %v3015 = vsel %vm422, %v3000, 0
  %v3017 = vsel %vm422, %v3002, 0
  %v3019 = vsel %vm422, %v3004, 0
  %v3021 = vsel %vm422, %v3006, 0
  %3023 = vmatpush.xpose.msra.mxu0 0.0
  %3024 = vmatpush.xpose.msra.mxu0 0.0
  %3025 = vmatpush.xpose.msra.mxu0 0.0
  %3026 = vmatpush.xpose.msra.mxu0 0.0
  %3027 = vmatpush.xpose.msra.mxu0 0.0
  %3028 = vmatpush.xpose.msra.mxu0 0.0
  %3029 = vmatpush.xpose.msra.mxu0 0.0
  %3030 = vmatpush.xpose.msra.mxu0 0.0
  %3031 = vmatpush.xpose.msra.mxu0 0.0
  %3032 = vmatpush.xpose.msra.mxu0 0.0
  %3033 = vmatpush.xpose.msra.mxu0 0.0
  %3034 = vmatpush.xpose.msra.mxu0 0.0
  %3035 = vmatpush.xpose.msra.mxu0 %v3021
  %3036 = vmatpush.xpose.msra.mxu0 %v3019
  %3037 = vmatpush.xpose.msra.mxu0 %v3017
  %3038 = vmatpush.xpose.msra.mxu0 %v3015
  %3039 = vmatmul.f32.gmra.mxu0 %v3007
  %v3040 = vpop.f32.mrf.mxu0
  %v3041 = vadd.f32 0.0, %v3040
  %3042 = vmatmul.f32.gmra.mxu0 %v3009
  %v3043 = vpop.f32.mrf.mxu0
  %v3044 = vadd.f32 0.0, %v3043
  %3045 = vmatmul.f32.gmra.mxu0 %v3011
  %v3046 = vpop.f32.mrf.mxu0
  %v3047 = vadd.f32 0.0, %v3046
  %3048 = vmatmul.f32.gmra.mxu0 %v3013
  %v3049 = vpop.f32.mrf.mxu0
  %v3050 = vadd.f32 0.0, %v3049
  %3051 = vdwg.mxu0
  %3052 = vrot.lane.b32.xlu0 %v2932, 96
  %v3053 = vpop.permute.xlu0 %3052
  %3054 = vrot.lane.b32.xlu0 %v2935, 96
  %v3055 = vpop.permute.xlu0 %3054
  %3056 = vrot.lane.b32.xlu0 %v2938, 96
  %v3057 = vpop.permute.xlu0 %3056
  %3058 = vrot.lane.b32.xlu0 %v2941, 96
  %v3059 = vpop.permute.xlu0 %3058
  %v3060 = vsel %vm422, %v2932, 0
  %v3062 = vsel %vm422, %v2935, 0
  %v3064 = vsel %vm422, %v2938, 0
  %v3066 = vsel %vm422, %v2941, 0
  %v3068 = vsel %vm422, %v3053, 0
  %v3070 = vsel %vm422, %v3055, 0
  %v3072 = vsel %vm422, %v3057, 0
  %v3074 = vsel %vm422, %v3059, 0
  %3076 = vmatpush.xpose.msra.mxu0 0.0
  %3077 = vmatpush.xpose.msra.mxu0 0.0
  %3078 = vmatpush.xpose.msra.mxu0 0.0
  %3079 = vmatpush.xpose.msra.mxu0 0.0
  %3080 = vmatpush.xpose.msra.mxu0 0.0
  %3081 = vmatpush.xpose.msra.mxu0 0.0
  %3082 = vmatpush.xpose.msra.mxu0 0.0
  %3083 = vmatpush.xpose.msra.mxu0 0.0
  %3084 = vmatpush.xpose.msra.mxu0 0.0
  %3085 = vmatpush.xpose.msra.mxu0 0.0
  %3086 = vmatpush.xpose.msra.mxu0 0.0
  %3087 = vmatpush.xpose.msra.mxu0 0.0
  %3088 = vmatpush.xpose.msra.mxu0 %v3074
  %3089 = vmatpush.xpose.msra.mxu0 %v3072
  %3090 = vmatpush.xpose.msra.mxu0 %v3070
  %3091 = vmatpush.xpose.msra.mxu0 %v3068
  %3092 = vmatmul.f32.gmra.mxu0 %v3060
  %v3093 = vpop.f32.mrf.mxu0
  %v3094 = vadd.f32 0.0, %v3093
  %3095 = vmatmul.f32.gmra.mxu0 %v3062
  %v3096 = vpop.f32.mrf.mxu0
  %v3097 = vadd.f32 0.0, %v3096
  %3098 = vmatmul.f32.gmra.mxu0 %v3064
  %v3099 = vpop.f32.mrf.mxu0
  %v3100 = vadd.f32 0.0, %v3099
  %3101 = vmatmul.f32.gmra.mxu0 %v3066
  %v3102 = vpop.f32.mrf.mxu0
  %v3103 = vadd.f32 0.0, %v3102
  %3104 = vdwg.mxu0
  %3105 = vrot.lane.b32.xlu0 %v2948, 96
  %v3106 = vpop.permute.xlu0 %3105
  %3107 = vrot.lane.b32.xlu0 %v2950, 96
  %v3108 = vpop.permute.xlu0 %3107
  %3109 = vrot.lane.b32.xlu0 %v2952, 96
  %v3110 = vpop.permute.xlu0 %3109
  %3111 = vrot.lane.b32.xlu0 %v2954, 96
  %v3112 = vpop.permute.xlu0 %3111
  %v3113 = vsel %vm422, %v2948, 0
  %v3115 = vsel %vm422, %v2950, 0
  %v3117 = vsel %vm422, %v2952, 0
  %v3119 = vsel %vm422, %v2954, 0
  %v3121 = vsel %vm422, %v3106, 0
  %v3123 = vsel %vm422, %v3108, 0
  %v3125 = vsel %vm422, %v3110, 0
  %v3127 = vsel %vm422, %v3112, 0
  %3129 = vmatpush.xpose.msra.mxu0 0.0
  %3130 = vmatpush.xpose.msra.mxu0 0.0
  %3131 = vmatpush.xpose.msra.mxu0 0.0
  %3132 = vmatpush.xpose.msra.mxu0 0.0
  %3133 = vmatpush.xpose.msra.mxu0 0.0
  %3134 = vmatpush.xpose.msra.mxu0 0.0
  %3135 = vmatpush.xpose.msra.mxu0 0.0
  %3136 = vmatpush.xpose.msra.mxu0 0.0
  %3137 = vmatpush.xpose.msra.mxu0 0.0
  %3138 = vmatpush.xpose.msra.mxu0 0.0
  %3139 = vmatpush.xpose.msra.mxu0 0.0
  %3140 = vmatpush.xpose.msra.mxu0 0.0
  %3141 = vmatpush.xpose.msra.mxu0 %v3127
  %3142 = vmatpush.xpose.msra.mxu0 %v3125
  %3143 = vmatpush.xpose.msra.mxu0 %v3123
  %3144 = vmatpush.xpose.msra.mxu0 %v3121
  %3145 = vmatmul.f32.gmra.mxu0 %v3113
  %v3146 = vpop.f32.mrf.mxu0
  %v3147 = vadd.f32 0.0, %v3146
  %3148 = vmatmul.f32.gmra.mxu0 %v3115
  %v3149 = vpop.f32.mrf.mxu0
  %v3150 = vadd.f32 0.0, %v3149
  %3151 = vmatmul.f32.gmra.mxu0 %v3117
  %v3152 = vpop.f32.mrf.mxu0
  %v3153 = vadd.f32 0.0, %v3152
  %3154 = vmatmul.f32.gmra.mxu0 %v3119
  %v3155 = vpop.f32.mrf.mxu0
  %v3156 = vadd.f32 0.0, %v3155
  %3157 = vdwg.mxu0
  %3158 = vrot.lane.b32.xlu0 %v2960, 96
  %v3159 = vpop.permute.xlu0 %3158
  %3160 = vrot.lane.b32.xlu0 %v2962, 96
  %v3161 = vpop.permute.xlu0 %3160
  %3162 = vrot.lane.b32.xlu0 %v2964, 96
  %v3163 = vpop.permute.xlu0 %3162
  %3164 = vrot.lane.b32.xlu0 %v2966, 96
  %v3165 = vpop.permute.xlu0 %3164
  %v3166 = vsel %vm422, %v2960, 0
  %v3168 = vsel %vm422, %v2962, 0
  %v3170 = vsel %vm422, %v2964, 0
  %v3172 = vsel %vm422, %v2966, 0
  %v3174 = vsel %vm422, %v3159, 0
  %v3176 = vsel %vm422, %v3161, 0
  %v3178 = vsel %vm422, %v3163, 0
  %v3180 = vsel %vm422, %v3165, 0
  %3182 = vmatpush.xpose.msra.mxu0 0.0
  %3183 = vmatpush.xpose.msra.mxu0 0.0
  %3184 = vmatpush.xpose.msra.mxu0 0.0
  %3185 = vmatpush.xpose.msra.mxu0 0.0
  %3186 = vmatpush.xpose.msra.mxu0 0.0
  %3187 = vmatpush.xpose.msra.mxu0 0.0
  %3188 = vmatpush.xpose.msra.mxu0 0.0
  %3189 = vmatpush.xpose.msra.mxu0 0.0
  %3190 = vmatpush.xpose.msra.mxu0 0.0
  %3191 = vmatpush.xpose.msra.mxu0 0.0
  %3192 = vmatpush.xpose.msra.mxu0 0.0
  %3193 = vmatpush.xpose.msra.mxu0 0.0
  %3194 = vmatpush.xpose.msra.mxu0 %v3180
  %3195 = vmatpush.xpose.msra.mxu0 %v3178
  %3196 = vmatpush.xpose.msra.mxu0 %v3176
  %3197 = vmatpush.xpose.msra.mxu0 %v3174
  %3198 = vmatmul.f32.gmra.mxu0 %v3166
  %v3199 = vpop.f32.mrf.mxu0
  %v3200 = vadd.f32 0.0, %v3199
  %3201 = vmatmul.f32.gmra.mxu0 %v3168
  %v3202 = vpop.f32.mrf.mxu0
  %v3203 = vadd.f32 0.0, %v3202
  %3204 = vmatmul.f32.gmra.mxu0 %v3170
  %v3205 = vpop.f32.mrf.mxu0
  %v3206 = vadd.f32 0.0, %v3205
  %3207 = vmatmul.f32.gmra.mxu0 %v3172
  %v3208 = vpop.f32.mrf.mxu0
  %v3209 = vadd.f32 0.0, %v3208
  %3210 = vdwg.mxu0
  %3211 = vrot.lane.b32.xlu0 %v2968, 96
  %v3212 = vpop.permute.xlu0 %3211
  %3213 = vrot.lane.b32.xlu0 %v2970, 96
  %v3214 = vpop.permute.xlu0 %3213
  %3215 = vrot.lane.b32.xlu0 %v2972, 96
  %v3216 = vpop.permute.xlu0 %3215
  %3217 = vrot.lane.b32.xlu0 %v2974, 96
  %v3218 = vpop.permute.xlu0 %3217
  %v3219 = vsel %vm422, %v2968, 0
  %v3221 = vsel %vm422, %v2970, 0
  %v3223 = vsel %vm422, %v2972, 0
  %v3225 = vsel %vm422, %v2974, 0
  %v3227 = vsel %vm422, %v3212, 0
  %v3229 = vsel %vm422, %v3214, 0
  %v3231 = vsel %vm422, %v3216, 0
  %v3233 = vsel %vm422, %v3218, 0
  %3235 = vmatpush.xpose.msra.mxu0 0.0
  %3236 = vmatpush.xpose.msra.mxu0 0.0
  %3237 = vmatpush.xpose.msra.mxu0 0.0
  %3238 = vmatpush.xpose.msra.mxu0 0.0
  %3239 = vmatpush.xpose.msra.mxu0 0.0
  %3240 = vmatpush.xpose.msra.mxu0 0.0
  %3241 = vmatpush.xpose.msra.mxu0 0.0
  %3242 = vmatpush.xpose.msra.mxu0 0.0
  %3243 = vmatpush.xpose.msra.mxu0 0.0
  %3244 = vmatpush.xpose.msra.mxu0 0.0
  %3245 = vmatpush.xpose.msra.mxu0 0.0
  %3246 = vmatpush.xpose.msra.mxu0 0.0
  %3247 = vmatpush.xpose.msra.mxu0 %v3233
  %3248 = vmatpush.xpose.msra.mxu0 %v3231
  %3249 = vmatpush.xpose.msra.mxu0 %v3229
  %3250 = vmatpush.xpose.msra.mxu0 %v3227
  %3251 = vmatmul.f32.gmra.mxu0 %v3219
  %v3252 = vpop.f32.mrf.mxu0
  %v3253 = vadd.f32 0.0, %v3252
  %3254 = vmatmul.f32.gmra.mxu0 %v3221
  %v3255 = vpop.f32.mrf.mxu0
  %v3256 = vadd.f32 0.0, %v3255
  %3257 = vmatmul.f32.gmra.mxu0 %v3223
  %v3258 = vpop.f32.mrf.mxu0
  %v3259 = vadd.f32 0.0, %v3258
  %3260 = vmatmul.f32.gmra.mxu0 %v3225
  %v3261 = vpop.f32.mrf.mxu0
  %v3262 = vadd.f32 0.0, %v3261
  %3263 = vdwg.mxu0
  %3264 = vrot.lane.b32.xlu0 %v2976, 96
  %v3265 = vpop.permute.xlu0 %3264
  %3266 = vrot.lane.b32.xlu0 %v2978, 96
  %v3267 = vpop.permute.xlu0 %3266
  %3268 = vrot.lane.b32.xlu0 %v2980, 96
  %v3269 = vpop.permute.xlu0 %3268
  %3270 = vrot.lane.b32.xlu0 %v2982, 96
  %v3271 = vpop.permute.xlu0 %3270
  %v3272 = vsel %vm422, %v2976, 0
  %v3274 = vsel %vm422, %v2978, 0
  %v3276 = vsel %vm422, %v2980, 0
  %v3278 = vsel %vm422, %v2982, 0
  %v3280 = vsel %vm422, %v3265, 0
  %v3282 = vsel %vm422, %v3267, 0
  %v3284 = vsel %vm422, %v3269, 0
  %v3286 = vsel %vm422, %v3271, 0
  %3288 = vmatpush.xpose.msra.mxu0 0.0
  %3289 = vmatpush.xpose.msra.mxu0 0.0
  %3290 = vmatpush.xpose.msra.mxu0 0.0
  %3291 = vmatpush.xpose.msra.mxu0 0.0
  %3292 = vmatpush.xpose.msra.mxu0 0.0
  %3293 = vmatpush.xpose.msra.mxu0 0.0
  %3294 = vmatpush.xpose.msra.mxu0 0.0
  %3295 = vmatpush.xpose.msra.mxu0 0.0
  %3296 = vmatpush.xpose.msra.mxu0 0.0
  %3297 = vmatpush.xpose.msra.mxu0 0.0
  %3298 = vmatpush.xpose.msra.mxu0 0.0
  %3299 = vmatpush.xpose.msra.mxu0 0.0
  %3300 = vmatpush.xpose.msra.mxu0 %v3286
  %3301 = vmatpush.xpose.msra.mxu0 %v3284
  %3302 = vmatpush.xpose.msra.mxu0 %v3282
  %3303 = vmatpush.xpose.msra.mxu0 %v3280
  %3304 = vmatmul.f32.gmra.mxu0 %v3272
  %v3305 = vpop.f32.mrf.mxu0
  %v3306 = vadd.f32 0.0, %v3305
  %3307 = vmatmul.f32.gmra.mxu0 %v3274
  %v3308 = vpop.f32.mrf.mxu0
  %v3309 = vadd.f32 0.0, %v3308
  %3310 = vmatmul.f32.gmra.mxu0 %v3276
  %v3311 = vpop.f32.mrf.mxu0
  %v3312 = vadd.f32 0.0, %v3311
  %3313 = vmatmul.f32.gmra.mxu0 %v3278
  %v3314 = vpop.f32.mrf.mxu0
  %v3315 = vadd.f32 0.0, %v3314
  %3316 = vdwg.mxu0
  %3317 = vrot.lane.b32.xlu0 %v2984, 96
  %v3318 = vpop.permute.xlu0 %3317
  %3319 = vrot.lane.b32.xlu0 %v2986, 96
  %v3320 = vpop.permute.xlu0 %3319
  %3321 = vrot.lane.b32.xlu0 %v2988, 96
  %v3322 = vpop.permute.xlu0 %3321
  %3323 = vrot.lane.b32.xlu0 %v2990, 96
  %v3324 = vpop.permute.xlu0 %3323
  %v3325 = vsel %vm422, %v2984, 0
  %v3327 = vsel %vm422, %v2986, 0
  %v3329 = vsel %vm422, %v2988, 0
  %v3331 = vsel %vm422, %v2990, 0
  %v3333 = vsel %vm422, %v3318, 0
  %v3335 = vsel %vm422, %v3320, 0
  %v3337 = vsel %vm422, %v3322, 0
  %v3339 = vsel %vm422, %v3324, 0
  %3341 = vmatpush.xpose.msra.mxu0 0.0
  %3342 = vmatpush.xpose.msra.mxu0 0.0
  %3343 = vmatpush.xpose.msra.mxu0 0.0
  %3344 = vmatpush.xpose.msra.mxu0 0.0
  %3345 = vmatpush.xpose.msra.mxu0 0.0
  %3346 = vmatpush.xpose.msra.mxu0 0.0
  %3347 = vmatpush.xpose.msra.mxu0 0.0
  %3348 = vmatpush.xpose.msra.mxu0 0.0
  %3349 = vmatpush.xpose.msra.mxu0 0.0
  %3350 = vmatpush.xpose.msra.mxu0 0.0
  %3351 = vmatpush.xpose.msra.mxu0 0.0
  %3352 = vmatpush.xpose.msra.mxu0 0.0
  %3353 = vmatpush.xpose.msra.mxu0 %v3339
  %3354 = vmatpush.xpose.msra.mxu0 %v3337
  %3355 = vmatpush.xpose.msra.mxu0 %v3335
  %3356 = vmatpush.xpose.msra.mxu0 %v3333
  %3357 = vmatmul.f32.gmra.mxu0 %v3325
  %v3358 = vpop.f32.mrf.mxu0
  %v3359 = vadd.f32 0.0, %v3358
  %3360 = vmatmul.f32.gmra.mxu0 %v3327
  %v3361 = vpop.f32.mrf.mxu0
  %v3362 = vadd.f32 0.0, %v3361
  %3363 = vmatmul.f32.gmra.mxu0 %v3329
  %v3364 = vpop.f32.mrf.mxu0
  %v3365 = vadd.f32 0.0, %v3364
  %3366 = vmatmul.f32.gmra.mxu0 %v3331
  %v3367 = vpop.f32.mrf.mxu0
  %v3368 = vadd.f32 0.0, %v3367
  %3369 = vdwg.mxu0
  %3370 = vrot.lane.b32.xlu0 %v2992, 96
  %v3371 = vpop.permute.xlu0 %3370
  %3372 = vrot.lane.b32.xlu0 %v2994, 96
  %v3373 = vpop.permute.xlu0 %3372
  %3374 = vrot.lane.b32.xlu0 %v2996, 96
  %v3375 = vpop.permute.xlu0 %3374
  %3376 = vrot.lane.b32.xlu0 %v2998, 96
  %v3377 = vpop.permute.xlu0 %3376
  %v3378 = vsel %vm422, %v2992, 0
  %v3380 = vsel %vm422, %v2994, 0
  %v3382 = vsel %vm422, %v2996, 0
  %v3384 = vsel %vm422, %v2998, 0
  %v3386 = vsel %vm422, %v3371, 0
  %v3388 = vsel %vm422, %v3373, 0
  %v3390 = vsel %vm422, %v3375, 0
  %v3392 = vsel %vm422, %v3377, 0
  %3394 = vmatpush.xpose.msra.mxu0 0.0
  %3395 = vmatpush.xpose.msra.mxu0 0.0
  %3396 = vmatpush.xpose.msra.mxu0 0.0
  %3397 = vmatpush.xpose.msra.mxu0 0.0
  %3398 = vmatpush.xpose.msra.mxu0 0.0
  %3399 = vmatpush.xpose.msra.mxu0 0.0
  %3400 = vmatpush.xpose.msra.mxu0 0.0
  %3401 = vmatpush.xpose.msra.mxu0 0.0
  %3402 = vmatpush.xpose.msra.mxu0 0.0
  %3403 = vmatpush.xpose.msra.mxu0 0.0
  %3404 = vmatpush.xpose.msra.mxu0 0.0
  %3405 = vmatpush.xpose.msra.mxu0 0.0
  %3406 = vmatpush.xpose.msra.mxu0 %v3392
  %3407 = vmatpush.xpose.msra.mxu0 %v3390
  %3408 = vmatpush.xpose.msra.mxu0 %v3388
  %3409 = vmatpush.xpose.msra.mxu0 %v3386
  %3410 = vmatmul.f32.gmra.mxu0 %v3378
  %v3411 = vpop.f32.mrf.mxu0
  %v3412 = vadd.f32 0.0, %v3411
  %3413 = vmatmul.f32.gmra.mxu0 %v3380
  %v3414 = vpop.f32.mrf.mxu0
  %v3415 = vadd.f32 0.0, %v3414
  %3416 = vmatmul.f32.gmra.mxu0 %v3382
  %v3417 = vpop.f32.mrf.mxu0
  %v3418 = vadd.f32 0.0, %v3417
  %3419 = vmatmul.f32.gmra.mxu0 %v3384
  %v3420 = vpop.f32.mrf.mxu0
  %v3421 = vadd.f32 0.0, %v3420
  %3422 = vdwg.mxu0
  %v3423 = vmul.f32 %v3041, 0.35355338
  %v3424 = vmul.f32 %v3044, 0.35355338
  %v3425 = vmul.f32 %v3047, 0.35355338
  %v3426 = vmul.f32 %v3050, 0.35355338
  %v3427 = vmul.f32 %v3094, 0.35355338
  %v3428 = vmul.f32 %v3097, 0.35355338
  %v3429 = vmul.f32 %v3100, 0.35355338
  %v3430 = vmul.f32 %v3103, 0.35355338
  %v3431 = vmul.f32 %v3147, 0.35355338
  %v3432 = vmul.f32 %v3150, 0.35355338
  %v3433 = vmul.f32 %v3153, 0.35355338
  %v3434 = vmul.f32 %v3156, 0.35355338
  %v3435 = vmul.f32 %v3200, 0.35355338
  %v3436 = vmul.f32 %v3203, 0.35355338
  %v3437 = vmul.f32 %v3206, 0.35355338
  %v3438 = vmul.f32 %v3209, 0.35355338
  %v3439 = vmul.f32 %v3253, 0.35355338
  %v3440 = vmul.f32 %v3256, 0.35355338
  %v3441 = vmul.f32 %v3259, 0.35355338
  %v3442 = vmul.f32 %v3262, 0.35355338
  %v3443 = vmul.f32 %v3306, 0.35355338
  %v3444 = vmul.f32 %v3309, 0.35355338
  %v3445 = vmul.f32 %v3312, 0.35355338
  %v3446 = vmul.f32 %v3315, 0.35355338
  %v3447 = vmul.f32 %v3359, 0.35355338
  %v3448 = vmul.f32 %v3362, 0.35355338
  %v3449 = vmul.f32 %v3365, 0.35355338
  %v3450 = vmul.f32 %v3368, 0.35355338
  %v3451 = vmul.f32 %v3412, 0.35355338
  %v3452 = vmul.f32 %v3415, 0.35355338
  %v3453 = vmul.f32 %v3418, 0.35355338
  %v3454 = vmul.f32 %v3421, 0.35355338
  %v3455 = vsel %vm79, %v3423, -inf
  %3456 = vmax.xlane.f32.xlu0 %v3455
  %v3457 = vpop.xlane.xlu0 %3456
  %v3458 = vsel %vm79, %v3424, -inf
  %3459 = vmax.xlane.f32.xlu0 %v3458
  %v3460 = vpop.xlane.xlu0 %3459
  %v3461 = vsel %vm79, %v3425, -inf
  %3462 = vmax.xlane.f32.xlu0 %v3461
  %v3463 = vpop.xlane.xlu0 %3462
  %v3464 = vsel %vm79, %v3426, -inf
  %3465 = vmax.xlane.f32.xlu0 %v3464
  %v3466 = vpop.xlane.xlu0 %3465
  %v3467 = vsel %vm79, %v3427, -inf
  %3468 = vmax.xlane.f32.xlu0 %v3467
  %v3469 = vpop.xlane.xlu0 %3468
  %v3470 = vsel %vm79, %v3428, -inf
  %3471 = vmax.xlane.f32.xlu0 %v3470
  %v3472 = vpop.xlane.xlu0 %3471
  %v3473 = vsel %vm79, %v3429, -inf
  %3474 = vmax.xlane.f32.xlu0 %v3473
  %v3475 = vpop.xlane.xlu0 %3474
  %v3476 = vsel %vm79, %v3430, -inf
  %3477 = vmax.xlane.f32.xlu0 %v3476
  %v3478 = vpop.xlane.xlu0 %3477
  %v3479 = vsel %vm79, %v3431, -inf
  %3480 = vmax.xlane.f32.xlu0 %v3479
  %v3481 = vpop.xlane.xlu0 %3480
  %v3482 = vsel %vm79, %v3432, -inf
  %3483 = vmax.xlane.f32.xlu0 %v3482
  %v3484 = vpop.xlane.xlu0 %3483
  %v3485 = vsel %vm79, %v3433, -inf
  %3486 = vmax.xlane.f32.xlu0 %v3485
  %v3487 = vpop.xlane.xlu0 %3486
  %v3488 = vsel %vm79, %v3434, -inf
  %3489 = vmax.xlane.f32.xlu0 %v3488
  %v3490 = vpop.xlane.xlu0 %3489
  %v3491 = vsel %vm79, %v3435, -inf
  %3492 = vmax.xlane.f32.xlu0 %v3491
  %v3493 = vpop.xlane.xlu0 %3492
  %v3494 = vsel %vm79, %v3436, -inf
  %3495 = vmax.xlane.f32.xlu0 %v3494
  %v3496 = vpop.xlane.xlu0 %3495
  %v3497 = vsel %vm79, %v3437, -inf
  %3498 = vmax.xlane.f32.xlu0 %v3497
  %v3499 = vpop.xlane.xlu0 %3498
  %v3500 = vsel %vm79, %v3438, -inf
  %3501 = vmax.xlane.f32.xlu0 %v3500
  %v3502 = vpop.xlane.xlu0 %3501
  %v3503 = vsel %vm79, %v3439, -inf
  %3504 = vmax.xlane.f32.xlu0 %v3503
  %v3505 = vpop.xlane.xlu0 %3504
  %v3506 = vsel %vm79, %v3440, -inf
  %3507 = vmax.xlane.f32.xlu0 %v3506
  %v3508 = vpop.xlane.xlu0 %3507
  %v3509 = vsel %vm79, %v3441, -inf
  %3510 = vmax.xlane.f32.xlu0 %v3509
  %v3511 = vpop.xlane.xlu0 %3510
  %v3512 = vsel %vm79, %v3442, -inf
  %3513 = vmax.xlane.f32.xlu0 %v3512
  %v3514 = vpop.xlane.xlu0 %3513
  %v3515 = vsel %vm79, %v3443, -inf
  %3516 = vmax.xlane.f32.xlu0 %v3515
  %v3517 = vpop.xlane.xlu0 %3516
  %v3518 = vsel %vm79, %v3444, -inf
  %3519 = vmax.xlane.f32.xlu0 %v3518
  %v3520 = vpop.xlane.xlu0 %3519
  %v3521 = vsel %vm79, %v3445, -inf
  %3522 = vmax.xlane.f32.xlu0 %v3521
  %v3523 = vpop.xlane.xlu0 %3522
  %v3524 = vsel %vm79, %v3446, -inf
  %3525 = vmax.xlane.f32.xlu0 %v3524
  %v3526 = vpop.xlane.xlu0 %3525
  %v3527 = vsel %vm79, %v3447, -inf
  %3528 = vmax.xlane.f32.xlu0 %v3527
  %v3529 = vpop.xlane.xlu0 %3528
  %v3530 = vsel %vm79, %v3448, -inf
  %3531 = vmax.xlane.f32.xlu0 %v3530
  %v3532 = vpop.xlane.xlu0 %3531
  %v3533 = vsel %vm79, %v3449, -inf
  %3534 = vmax.xlane.f32.xlu0 %v3533
  %v3535 = vpop.xlane.xlu0 %3534
  %v3536 = vsel %vm79, %v3450, -inf
  %3537 = vmax.xlane.f32.xlu0 %v3536
  %v3538 = vpop.xlane.xlu0 %3537
  %v3539 = vsel %vm79, %v3451, -inf
  %3540 = vmax.xlane.f32.xlu0 %v3539
  %v3541 = vpop.xlane.xlu0 %3540
  %v3542 = vsel %vm79, %v3452, -inf
  %3543 = vmax.xlane.f32.xlu0 %v3542
  %v3544 = vpop.xlane.xlu0 %3543
  %v3545 = vsel %vm79, %v3453, -inf
  %3546 = vmax.xlane.f32.xlu0 %v3545
  %v3547 = vpop.xlane.xlu0 %3546
  %v3548 = vsel %vm79, %v3454, -inf
  %3549 = vmax.xlane.f32.xlu0 %v3548
  %v3550 = vpop.xlane.xlu0 %3549
  %v3551 = vsub.f32 %v3423, %v3457
  %v3552 = vsub.f32 %v3424, %v3460
  %v3553 = vsub.f32 %v3425, %v3463
  %v3554 = vsub.f32 %v3426, %v3466
  %v3555 = vsub.f32 %v3427, %v3469
  %v3556 = vsub.f32 %v3428, %v3472
  %v3557 = vsub.f32 %v3429, %v3475
  %v3558 = vsub.f32 %v3430, %v3478
  %v3559 = vsub.f32 %v3431, %v3481
  %v3560 = vsub.f32 %v3432, %v3484
  %v3561 = vsub.f32 %v3433, %v3487
  %v3562 = vsub.f32 %v3434, %v3490
  %v3563 = vsub.f32 %v3435, %v3493
  %v3564 = vsub.f32 %v3436, %v3496
  %v3565 = vsub.f32 %v3437, %v3499
  %v3566 = vsub.f32 %v3438, %v3502
  %v3567 = vsub.f32 %v3439, %v3505
  %v3568 = vsub.f32 %v3440, %v3508
  %v3569 = vsub.f32 %v3441, %v3511
  %v3570 = vsub.f32 %v3442, %v3514
  %v3571 = vsub.f32 %v3443, %v3517
  %v3572 = vsub.f32 %v3444, %v3520
  %v3573 = vsub.f32 %v3445, %v3523
  %v3574 = vsub.f32 %v3446, %v3526
  %v3575 = vsub.f32 %v3447, %v3529
  %v3576 = vsub.f32 %v3448, %v3532
  %v3577 = vsub.f32 %v3449, %v3535
  %v3578 = vsub.f32 %v3450, %v3538
  %v3579 = vsub.f32 %v3451, %v3541
  %v3580 = vsub.f32 %v3452, %v3544
  %v3581 = vsub.f32 %v3453, %v3547
  %v3582 = vsub.f32 %v3454, %v3550
  %v3583 = vmul.f32 %v3551, 1.442695
  %v3584 = vpow.pop %v3583
  %v3585 = vmul.f32 %v3552, 1.442695
  %v3586 = vpow.pop %v3585
  %v3587 = vmul.f32 %v3553, 1.442695
  %v3588 = vpow.pop %v3587
  %v3589 = vmul.f32 %v3554, 1.442695
  %v3590 = vpow.pop %v3589
  %v3591 = vmul.f32 %v3555, 1.442695
  %v3592 = vpow.pop %v3591
  %v3593 = vmul.f32 %v3556, 1.442695
  %v3594 = vpow.pop %v3593
  %v3595 = vmul.f32 %v3557, 1.442695
  %v3596 = vpow.pop %v3595
  %v3597 = vmul.f32 %v3558, 1.442695
  %v3598 = vpow.pop %v3597
  %v3599 = vmul.f32 %v3559, 1.442695
  %v3600 = vpow.pop %v3599
  %v3601 = vmul.f32 %v3560, 1.442695
  %v3602 = vpow.pop %v3601
  %v3603 = vmul.f32 %v3561, 1.442695
  %v3604 = vpow.pop %v3603
  %v3605 = vmul.f32 %v3562, 1.442695
  %v3606 = vpow.pop %v3605
  %v3607 = vmul.f32 %v3563, 1.442695
  %v3608 = vpow.pop %v3607
  %v3609 = vmul.f32 %v3564, 1.442695
  %v3610 = vpow.pop %v3609
  %v3611 = vmul.f32 %v3565, 1.442695
  %v3612 = vpow.pop %v3611
  %v3613 = vmul.f32 %v3566, 1.442695
  %v3614 = vpow.pop %v3613
  %v3615 = vmul.f32 %v3567, 1.442695
  %v3616 = vpow.pop %v3615
  %v3617 = vmul.f32 %v3568, 1.442695
  %v3618 = vpow.pop %v3617
  %v3619 = vmul.f32 %v3569, 1.442695
  %v3620 = vpow.pop %v3619
  %v3621 = vmul.f32 %v3570, 1.442695
  %v3622 = vpow.pop %v3621
  %v3623 = vmul.f32 %v3571, 1.442695
  %v3624 = vpow.pop %v3623
  %v3625 = vmul.f32 %v3572, 1.442695
  %v3626 = vpow.pop %v3625
  %v3627 = vmul.f32 %v3573, 1.442695
  %v3628 = vpow.pop %v3627
  %v3629 = vmul.f32 %v3574, 1.442695
  %v3630 = vpow.pop %v3629
  %v3631 = vmul.f32 %v3575, 1.442695
  %v3632 = vpow.pop %v3631
  %v3633 = vmul.f32 %v3576, 1.442695
  %v3634 = vpow.pop %v3633
  %v3635 = vmul.f32 %v3577, 1.442695
  %v3636 = vpow.pop %v3635
  %v3637 = vmul.f32 %v3578, 1.442695
  %v3638 = vpow.pop %v3637
  %v3639 = vmul.f32 %v3579, 1.442695
  %v3640 = vpow.pop %v3639
  %v3641 = vmul.f32 %v3580, 1.442695
  %v3642 = vpow.pop %v3641
  %v3643 = vmul.f32 %v3581, 1.442695
  %v3644 = vpow.pop %v3643
  %v3645 = vmul.f32 %v3582, 1.442695
  %v3646 = vpow.pop %v3645
  %v3647 = vsel %vm79, %v3584, 0.0
  %3648 = vadd.xlane.f32.xlu0 %v3647
  %v3649 = vpop.xlane.xlu0 %3648
  %v3650 = vsel %vm79, %v3586, 0.0
  %3651 = vadd.xlane.f32.xlu0 %v3650
  %v3652 = vpop.xlane.xlu0 %3651
  %v3653 = vsel %vm79, %v3588, 0.0
  %3654 = vadd.xlane.f32.xlu0 %v3653
  %v3655 = vpop.xlane.xlu0 %3654
  %v3656 = vsel %vm79, %v3590, 0.0
  %3657 = vadd.xlane.f32.xlu0 %v3656
  %v3658 = vpop.xlane.xlu0 %3657
  %v3659 = vsel %vm79, %v3592, 0.0
  %3660 = vadd.xlane.f32.xlu0 %v3659
  %v3661 = vpop.xlane.xlu0 %3660
  %v3662 = vsel %vm79, %v3594, 0.0
  %3663 = vadd.xlane.f32.xlu0 %v3662
  %v3664 = vpop.xlane.xlu0 %3663
  %v3665 = vsel %vm79, %v3596, 0.0
  %3666 = vadd.xlane.f32.xlu0 %v3665
  %v3667 = vpop.xlane.xlu0 %3666
  %v3668 = vsel %vm79, %v3598, 0.0
  %3669 = vadd.xlane.f32.xlu0 %v3668
  %v3670 = vpop.xlane.xlu0 %3669
  %v3671 = vsel %vm79, %v3600, 0.0
  %3672 = vadd.xlane.f32.xlu0 %v3671
  %v3673 = vpop.xlane.xlu0 %3672
  %v3674 = vsel %vm79, %v3602, 0.0
  %3675 = vadd.xlane.f32.xlu0 %v3674
  %v3676 = vpop.xlane.xlu0 %3675
  %v3677 = vsel %vm79, %v3604, 0.0
  %3678 = vadd.xlane.f32.xlu0 %v3677
  %v3679 = vpop.xlane.xlu0 %3678
  %v3680 = vsel %vm79, %v3606, 0.0
  %3681 = vadd.xlane.f32.xlu0 %v3680
  %v3682 = vpop.xlane.xlu0 %3681
  %v3683 = vsel %vm79, %v3608, 0.0
  %3684 = vadd.xlane.f32.xlu0 %v3683
  %v3685 = vpop.xlane.xlu0 %3684
  %v3686 = vsel %vm79, %v3610, 0.0
  %3687 = vadd.xlane.f32.xlu0 %v3686
  %v3688 = vpop.xlane.xlu0 %3687
  %v3689 = vsel %vm79, %v3612, 0.0
  %3690 = vadd.xlane.f32.xlu0 %v3689
  %v3691 = vpop.xlane.xlu0 %3690
  %v3692 = vsel %vm79, %v3614, 0.0
  %3693 = vadd.xlane.f32.xlu0 %v3692
  %v3694 = vpop.xlane.xlu0 %3693
  %v3695 = vsel %vm79, %v3616, 0.0
  %3696 = vadd.xlane.f32.xlu0 %v3695
  %v3697 = vpop.xlane.xlu0 %3696
  %v3698 = vsel %vm79, %v3618, 0.0
  %3699 = vadd.xlane.f32.xlu0 %v3698
  %v3700 = vpop.xlane.xlu0 %3699
  %v3701 = vsel %vm79, %v3620, 0.0
  %3702 = vadd.xlane.f32.xlu0 %v3701
  %v3703 = vpop.xlane.xlu0 %3702
  %v3704 = vsel %vm79, %v3622, 0.0
  %3705 = vadd.xlane.f32.xlu0 %v3704
  %v3706 = vpop.xlane.xlu0 %3705
  %v3707 = vsel %vm79, %v3624, 0.0
  %3708 = vadd.xlane.f32.xlu0 %v3707
  %v3709 = vpop.xlane.xlu0 %3708
  %v3710 = vsel %vm79, %v3626, 0.0
  %3711 = vadd.xlane.f32.xlu0 %v3710
  %v3712 = vpop.xlane.xlu0 %3711
  %v3713 = vsel %vm79, %v3628, 0.0
  %3714 = vadd.xlane.f32.xlu0 %v3713
  %v3715 = vpop.xlane.xlu0 %3714
  %v3716 = vsel %vm79, %v3630, 0.0
  %3717 = vadd.xlane.f32.xlu0 %v3716
  %v3718 = vpop.xlane.xlu0 %3717
  %v3719 = vsel %vm79, %v3632, 0.0
  %3720 = vadd.xlane.f32.xlu0 %v3719
  %v3721 = vpop.xlane.xlu0 %3720
  %v3722 = vsel %vm79, %v3634, 0.0
  %3723 = vadd.xlane.f32.xlu0 %v3722
  %v3724 = vpop.xlane.xlu0 %3723
  %v3725 = vsel %vm79, %v3636, 0.0
  %3726 = vadd.xlane.f32.xlu0 %v3725
  %v3727 = vpop.xlane.xlu0 %3726
  %v3728 = vsel %vm79, %v3638, 0.0
  %3729 = vadd.xlane.f32.xlu0 %v3728
  %v3730 = vpop.xlane.xlu0 %3729
  %v3731 = vsel %vm79, %v3640, 0.0
  %3732 = vadd.xlane.f32.xlu0 %v3731
  %v3733 = vpop.xlane.xlu0 %3732
  %v3734 = vsel %vm79, %v3642, 0.0
  %3735 = vadd.xlane.f32.xlu0 %v3734
  %v3736 = vpop.xlane.xlu0 %3735
  %v3737 = vsel %vm79, %v3644, 0.0
  %3738 = vadd.xlane.f32.xlu0 %v3737
  %v3739 = vpop.xlane.xlu0 %3738
  %v3740 = vsel %vm79, %v3646, 0.0
  %3741 = vadd.xlane.f32.xlu0 %v3740
  %v3742 = vpop.xlane.xlu0 %3741
  %v3743 = vrcp.pop %v3649
  %v3744 = vrcp.pop %v3652
  %v3745 = vrcp.pop %v3655
  %v3746 = vrcp.pop %v3658
  %v3747 = vrcp.pop %v3661
  %v3748 = vrcp.pop %v3664
  %v3749 = vrcp.pop %v3667
  %v3750 = vrcp.pop %v3670
  %v3751 = vrcp.pop %v3673
  %v3752 = vrcp.pop %v3676
  %v3753 = vrcp.pop %v3679
  %v3754 = vrcp.pop %v3682
  %v3755 = vrcp.pop %v3685
  %v3756 = vrcp.pop %v3688
  %v3757 = vrcp.pop %v3691
  %v3758 = vrcp.pop %v3694
  %v3759 = vrcp.pop %v3697
  %v3760 = vrcp.pop %v3700
  %v3761 = vrcp.pop %v3703
  %v3762 = vrcp.pop %v3706
  %v3763 = vrcp.pop %v3709
  %v3764 = vrcp.pop %v3712
  %v3765 = vrcp.pop %v3715
  %v3766 = vrcp.pop %v3718
  %v3767 = vrcp.pop %v3721
  %v3768 = vrcp.pop %v3724
  %v3769 = vrcp.pop %v3727
  %v3770 = vrcp.pop %v3730
  %v3771 = vrcp.pop %v3733
  %v3772 = vrcp.pop %v3736
  %v3773 = vrcp.pop %v3739
  %v3774 = vrcp.pop %v3742
  %v3775 = vmul.f32 %v3584, %v3743
  %v3776 = vmul.f32 %v3586, %v3744
  %v3777 = vmul.f32 %v3588, %v3745
  %v3778 = vmul.f32 %v3590, %v3746
  %v3779 = vmul.f32 %v3592, %v3747
  %v3780 = vmul.f32 %v3594, %v3748
  %v3781 = vmul.f32 %v3596, %v3749
  %v3782 = vmul.f32 %v3598, %v3750
  %v3783 = vmul.f32 %v3600, %v3751
  %v3784 = vmul.f32 %v3602, %v3752
  %v3785 = vmul.f32 %v3604, %v3753
  %v3786 = vmul.f32 %v3606, %v3754
  %v3787 = vmul.f32 %v3608, %v3755
  %v3788 = vmul.f32 %v3610, %v3756
  %v3789 = vmul.f32 %v3612, %v3757
  %v3790 = vmul.f32 %v3614, %v3758
  %v3791 = vmul.f32 %v3616, %v3759
  %v3792 = vmul.f32 %v3618, %v3760
  %v3793 = vmul.f32 %v3620, %v3761
  %v3794 = vmul.f32 %v3622, %v3762
  %v3795 = vmul.f32 %v3624, %v3763
  %v3796 = vmul.f32 %v3626, %v3764
  %v3797 = vmul.f32 %v3628, %v3765
  %v3798 = vmul.f32 %v3630, %v3766
  %v3799 = vmul.f32 %v3632, %v3767
  %v3800 = vmul.f32 %v3634, %v3768
  %v3801 = vmul.f32 %v3636, %v3769
  %v3802 = vmul.f32 %v3638, %v3770
  %v3803 = vmul.f32 %v3640, %v3771
  %v3804 = vmul.f32 %v3642, %v3772
  %v3805 = vmul.f32 %v3644, %v3773
  %v3806 = vmul.f32 %v3646, %v3774
  %3807 = vrot.lane.b32.xlu0 %v2920, 64
  %v3808 = vpop.permute.xlu0 %3807
  %3809 = vrot.lane.b32.xlu0 %v2923, 64
  %v3810 = vpop.permute.xlu0 %3809
  %3811 = vrot.lane.b32.xlu0 %v2926, 64
  %v3812 = vpop.permute.xlu0 %3811
  %3813 = vrot.lane.b32.xlu0 %v2929, 64
  %v3814 = vpop.permute.xlu0 %3813
  %v3820 = vsel %vm79, %v3775, 0
  %v3823 = vsel %vm79, %v3776, 0
  %v3826 = vsel %vm79, %v3777, 0
  %v3829 = vsel %vm79, %v3778, 0
  %3831 = vmatpush.msra.mxu0 0.0
  %3832 = vmatpush.msra.mxu0 0.0
  %3833 = vmatpush.msra.mxu0 0.0
  %3834 = vmatpush.msra.mxu0 0.0
  %3835 = vmatpush.msra.mxu0 0.0
  %3836 = vmatpush.msra.mxu0 0.0
  %3837 = vmatpush.msra.mxu0 0.0
  %3838 = vmatpush.msra.mxu0 0.0
  %3839 = vmatpush.msra.mxu0 0.0
  %3840 = vmatpush.msra.mxu0 0.0
  %3841 = vmatpush.msra.mxu0 0.0
  %3842 = vmatpush.msra.mxu0 0.0
  %3843 = vmatpush.msra.mxu0 %v3814
  %3844 = vmatpush.msra.mxu0 %v3812
  %3845 = vmatpush.msra.mxu0 %v3810
  %3846 = vmatpush.msra.mxu0 %v3808
  %3847 = vmatmul.f32.gmra.mxu0 %v3820
  %v3848 = vpop.f32.mrf.mxu0
  %v3849 = vadd.f32 0.0, %v3848
  %3850 = vmatmul.f32.gmra.mxu0 %v3823
  %v3851 = vpop.f32.mrf.mxu0
  %v3852 = vadd.f32 0.0, %v3851
  %3853 = vmatmul.f32.gmra.mxu0 %v3826
  %v3854 = vpop.f32.mrf.mxu0
  %v3855 = vadd.f32 0.0, %v3854
  %3856 = vmatmul.f32.gmra.mxu0 %v3829
  %v3857 = vpop.f32.mrf.mxu0
  %v3858 = vadd.f32 0.0, %v3857
  %3859 = vdwg.mxu0
  %3860 = vrot.lane.b32.xlu0 %v2932, 64
  %v3861 = vpop.permute.xlu0 %3860
  %3862 = vrot.lane.b32.xlu0 %v2935, 64
  %v3863 = vpop.permute.xlu0 %3862
  %3864 = vrot.lane.b32.xlu0 %v2938, 64
  %v3865 = vpop.permute.xlu0 %3864
  %3866 = vrot.lane.b32.xlu0 %v2941, 64
  %v3867 = vpop.permute.xlu0 %3866
  %v3873 = vsel %vm79, %v3779, 0
  %v3876 = vsel %vm79, %v3780, 0
  %v3879 = vsel %vm79, %v3781, 0
  %v3882 = vsel %vm79, %v3782, 0
  %3884 = vmatpush.msra.mxu0 0.0
  %3885 = vmatpush.msra.mxu0 0.0
  %3886 = vmatpush.msra.mxu0 0.0
  %3887 = vmatpush.msra.mxu0 0.0
  %3888 = vmatpush.msra.mxu0 0.0
  %3889 = vmatpush.msra.mxu0 0.0
  %3890 = vmatpush.msra.mxu0 0.0
  %3891 = vmatpush.msra.mxu0 0.0
  %3892 = vmatpush.msra.mxu0 0.0
  %3893 = vmatpush.msra.mxu0 0.0
  %3894 = vmatpush.msra.mxu0 0.0
  %3895 = vmatpush.msra.mxu0 0.0
  %3896 = vmatpush.msra.mxu0 %v3867
  %3897 = vmatpush.msra.mxu0 %v3865
  %3898 = vmatpush.msra.mxu0 %v3863
  %3899 = vmatpush.msra.mxu0 %v3861
  %3900 = vmatmul.f32.gmra.mxu0 %v3873
  %v3901 = vpop.f32.mrf.mxu0
  %v3902 = vadd.f32 0.0, %v3901
  %3903 = vmatmul.f32.gmra.mxu0 %v3876
  %v3904 = vpop.f32.mrf.mxu0
  %v3905 = vadd.f32 0.0, %v3904
  %3906 = vmatmul.f32.gmra.mxu0 %v3879
  %v3907 = vpop.f32.mrf.mxu0
  %v3908 = vadd.f32 0.0, %v3907
  %3909 = vmatmul.f32.gmra.mxu0 %v3882
  %v3910 = vpop.f32.mrf.mxu0
  %v3911 = vadd.f32 0.0, %v3910
  %3912 = vdwg.mxu0
  %3913 = vrot.lane.b32.xlu0 %v2948, 64
  %v3914 = vpop.permute.xlu0 %3913
  %3915 = vrot.lane.b32.xlu0 %v2950, 64
  %v3916 = vpop.permute.xlu0 %3915
  %3917 = vrot.lane.b32.xlu0 %v2952, 64
  %v3918 = vpop.permute.xlu0 %3917
  %3919 = vrot.lane.b32.xlu0 %v2954, 64
  %v3920 = vpop.permute.xlu0 %3919
  %v3926 = vsel %vm79, %v3783, 0
  %v3929 = vsel %vm79, %v3784, 0
  %v3932 = vsel %vm79, %v3785, 0
  %v3935 = vsel %vm79, %v3786, 0
  %3937 = vmatpush.msra.mxu0 0.0
  %3938 = vmatpush.msra.mxu0 0.0
  %3939 = vmatpush.msra.mxu0 0.0
  %3940 = vmatpush.msra.mxu0 0.0
  %3941 = vmatpush.msra.mxu0 0.0
  %3942 = vmatpush.msra.mxu0 0.0
  %3943 = vmatpush.msra.mxu0 0.0
  %3944 = vmatpush.msra.mxu0 0.0
  %3945 = vmatpush.msra.mxu0 0.0
  %3946 = vmatpush.msra.mxu0 0.0
  %3947 = vmatpush.msra.mxu0 0.0
  %3948 = vmatpush.msra.mxu0 0.0
  %3949 = vmatpush.msra.mxu0 %v3920
  %3950 = vmatpush.msra.mxu0 %v3918
  %3951 = vmatpush.msra.mxu0 %v3916
  %3952 = vmatpush.msra.mxu0 %v3914
  %3953 = vmatmul.f32.gmra.mxu0 %v3926
  %v3954 = vpop.f32.mrf.mxu0
  %v3955 = vadd.f32 0.0, %v3954
  %3956 = vmatmul.f32.gmra.mxu0 %v3929
  %v3957 = vpop.f32.mrf.mxu0
  %v3958 = vadd.f32 0.0, %v3957
  %3959 = vmatmul.f32.gmra.mxu0 %v3932
  %v3960 = vpop.f32.mrf.mxu0
  %v3961 = vadd.f32 0.0, %v3960
  %3962 = vmatmul.f32.gmra.mxu0 %v3935
  %v3963 = vpop.f32.mrf.mxu0
  %v3964 = vadd.f32 0.0, %v3963
  %3965 = vdwg.mxu0
  %3966 = vrot.lane.b32.xlu0 %v2960, 64
  %v3967 = vpop.permute.xlu0 %3966
  %3968 = vrot.lane.b32.xlu0 %v2962, 64
  %v3969 = vpop.permute.xlu0 %3968
  %3970 = vrot.lane.b32.xlu0 %v2964, 64
  %v3971 = vpop.permute.xlu0 %3970
  %3972 = vrot.lane.b32.xlu0 %v2966, 64
  %v3973 = vpop.permute.xlu0 %3972
  %v3979 = vsel %vm79, %v3787, 0
  %v3982 = vsel %vm79, %v3788, 0
  %v3985 = vsel %vm79, %v3789, 0
  %v3988 = vsel %vm79, %v3790, 0
  %3990 = vmatpush.msra.mxu0 0.0
  %3991 = vmatpush.msra.mxu0 0.0
  %3992 = vmatpush.msra.mxu0 0.0
  %3993 = vmatpush.msra.mxu0 0.0
  %3994 = vmatpush.msra.mxu0 0.0
  %3995 = vmatpush.msra.mxu0 0.0
  %3996 = vmatpush.msra.mxu0 0.0
  %3997 = vmatpush.msra.mxu0 0.0
  %3998 = vmatpush.msra.mxu0 0.0
  %3999 = vmatpush.msra.mxu0 0.0
  %4000 = vmatpush.msra.mxu0 0.0
  %4001 = vmatpush.msra.mxu0 0.0
  %4002 = vmatpush.msra.mxu0 %v3973
  %4003 = vmatpush.msra.mxu0 %v3971
  %4004 = vmatpush.msra.mxu0 %v3969
  %4005 = vmatpush.msra.mxu0 %v3967
  %4006 = vmatmul.f32.gmra.mxu0 %v3979
  %v4007 = vpop.f32.mrf.mxu0
  %v4008 = vadd.f32 0.0, %v4007
  %4009 = vmatmul.f32.gmra.mxu0 %v3982
  %v4010 = vpop.f32.mrf.mxu0
  %v4011 = vadd.f32 0.0, %v4010
  %4012 = vmatmul.f32.gmra.mxu0 %v3985
  %v4013 = vpop.f32.mrf.mxu0
  %v4014 = vadd.f32 0.0, %v4013
  %4015 = vmatmul.f32.gmra.mxu0 %v3988
  %v4016 = vpop.f32.mrf.mxu0
  %v4017 = vadd.f32 0.0, %v4016
  %4018 = vdwg.mxu0
  %4019 = vrot.lane.b32.xlu0 %v2968, 64
  %v4020 = vpop.permute.xlu0 %4019
  %4021 = vrot.lane.b32.xlu0 %v2970, 64
  %v4022 = vpop.permute.xlu0 %4021
  %4023 = vrot.lane.b32.xlu0 %v2972, 64
  %v4024 = vpop.permute.xlu0 %4023
  %4025 = vrot.lane.b32.xlu0 %v2974, 64
  %v4026 = vpop.permute.xlu0 %4025
  %v4032 = vsel %vm79, %v3791, 0
  %v4035 = vsel %vm79, %v3792, 0
  %v4038 = vsel %vm79, %v3793, 0
  %v4041 = vsel %vm79, %v3794, 0
  %4043 = vmatpush.msra.mxu0 0.0
  %4044 = vmatpush.msra.mxu0 0.0
  %4045 = vmatpush.msra.mxu0 0.0
  %4046 = vmatpush.msra.mxu0 0.0
  %4047 = vmatpush.msra.mxu0 0.0
  %4048 = vmatpush.msra.mxu0 0.0
  %4049 = vmatpush.msra.mxu0 0.0
  %4050 = vmatpush.msra.mxu0 0.0
  %4051 = vmatpush.msra.mxu0 0.0
  %4052 = vmatpush.msra.mxu0 0.0
  %4053 = vmatpush.msra.mxu0 0.0
  %4054 = vmatpush.msra.mxu0 0.0
  %4055 = vmatpush.msra.mxu0 %v4026
  %4056 = vmatpush.msra.mxu0 %v4024
  %4057 = vmatpush.msra.mxu0 %v4022
  %4058 = vmatpush.msra.mxu0 %v4020
  %4059 = vmatmul.f32.gmra.mxu0 %v4032
  %v4060 = vpop.f32.mrf.mxu0
  %v4061 = vadd.f32 0.0, %v4060
  %4062 = vmatmul.f32.gmra.mxu0 %v4035
  %v4063 = vpop.f32.mrf.mxu0
  %v4064 = vadd.f32 0.0, %v4063
  %4065 = vmatmul.f32.gmra.mxu0 %v4038
  %v4066 = vpop.f32.mrf.mxu0
  %v4067 = vadd.f32 0.0, %v4066
  %4068 = vmatmul.f32.gmra.mxu0 %v4041
  %v4069 = vpop.f32.mrf.mxu0
  %v4070 = vadd.f32 0.0, %v4069
  %4071 = vdwg.mxu0
  %4072 = vrot.lane.b32.xlu0 %v2976, 64
  %v4073 = vpop.permute.xlu0 %4072
  %4074 = vrot.lane.b32.xlu0 %v2978, 64
  %v4075 = vpop.permute.xlu0 %4074
  %4076 = vrot.lane.b32.xlu0 %v2980, 64
  %v4077 = vpop.permute.xlu0 %4076
  %4078 = vrot.lane.b32.xlu0 %v2982, 64
  %v4079 = vpop.permute.xlu0 %4078
  %v4085 = vsel %vm79, %v3795, 0
  %v4088 = vsel %vm79, %v3796, 0
  %v4091 = vsel %vm79, %v3797, 0
  %v4094 = vsel %vm79, %v3798, 0
  %4096 = vmatpush.msra.mxu0 0.0
  %4097 = vmatpush.msra.mxu0 0.0
  %4098 = vmatpush.msra.mxu0 0.0
  %4099 = vmatpush.msra.mxu0 0.0
  %4100 = vmatpush.msra.mxu0 0.0
  %4101 = vmatpush.msra.mxu0 0.0
  %4102 = vmatpush.msra.mxu0 0.0
  %4103 = vmatpush.msra.mxu0 0.0
  %4104 = vmatpush.msra.mxu0 0.0
  %4105 = vmatpush.msra.mxu0 0.0
  %4106 = vmatpush.msra.mxu0 0.0
  %4107 = vmatpush.msra.mxu0 0.0
  %4108 = vmatpush.msra.mxu0 %v4079
  %4109 = vmatpush.msra.mxu0 %v4077
  %4110 = vmatpush.msra.mxu0 %v4075
  %4111 = vmatpush.msra.mxu0 %v4073
  %4112 = vmatmul.f32.gmra.mxu0 %v4085
  %v4113 = vpop.f32.mrf.mxu0
  %v4114 = vadd.f32 0.0, %v4113
  %4115 = vmatmul.f32.gmra.mxu0 %v4088
  %v4116 = vpop.f32.mrf.mxu0
  %v4117 = vadd.f32 0.0, %v4116
  %4118 = vmatmul.f32.gmra.mxu0 %v4091
  %v4119 = vpop.f32.mrf.mxu0
  %v4120 = vadd.f32 0.0, %v4119
  %4121 = vmatmul.f32.gmra.mxu0 %v4094
  %v4122 = vpop.f32.mrf.mxu0
  %v4123 = vadd.f32 0.0, %v4122
  %4124 = vdwg.mxu0
  %4125 = vrot.lane.b32.xlu0 %v2984, 64
  %v4126 = vpop.permute.xlu0 %4125
  %4127 = vrot.lane.b32.xlu0 %v2986, 64
  %v4128 = vpop.permute.xlu0 %4127
  %4129 = vrot.lane.b32.xlu0 %v2988, 64
  %v4130 = vpop.permute.xlu0 %4129
  %4131 = vrot.lane.b32.xlu0 %v2990, 64
  %v4132 = vpop.permute.xlu0 %4131
  %v4138 = vsel %vm79, %v3799, 0
  %v4141 = vsel %vm79, %v3800, 0
  %v4144 = vsel %vm79, %v3801, 0
  %v4147 = vsel %vm79, %v3802, 0
  %4149 = vmatpush.msra.mxu0 0.0
  %4150 = vmatpush.msra.mxu0 0.0
  %4151 = vmatpush.msra.mxu0 0.0
  %4152 = vmatpush.msra.mxu0 0.0
  %4153 = vmatpush.msra.mxu0 0.0
  %4154 = vmatpush.msra.mxu0 0.0
  %4155 = vmatpush.msra.mxu0 0.0
  %4156 = vmatpush.msra.mxu0 0.0
  %4157 = vmatpush.msra.mxu0 0.0
  %4158 = vmatpush.msra.mxu0 0.0
  %4159 = vmatpush.msra.mxu0 0.0
  %4160 = vmatpush.msra.mxu0 0.0
  %4161 = vmatpush.msra.mxu0 %v4132
  %4162 = vmatpush.msra.mxu0 %v4130
  %4163 = vmatpush.msra.mxu0 %v4128
  %4164 = vmatpush.msra.mxu0 %v4126
  %4165 = vmatmul.f32.gmra.mxu0 %v4138
  %v4166 = vpop.f32.mrf.mxu0
  %v4167 = vadd.f32 0.0, %v4166
  %4168 = vmatmul.f32.gmra.mxu0 %v4141
  %v4169 = vpop.f32.mrf.mxu0
  %v4170 = vadd.f32 0.0, %v4169
  %4171 = vmatmul.f32.gmra.mxu0 %v4144
  %v4172 = vpop.f32.mrf.mxu0
  %v4173 = vadd.f32 0.0, %v4172
  %4174 = vmatmul.f32.gmra.mxu0 %v4147
  %v4175 = vpop.f32.mrf.mxu0
  %v4176 = vadd.f32 0.0, %v4175
  %4177 = vdwg.mxu0
  %4178 = vrot.lane.b32.xlu0 %v2992, 64
  %v4179 = vpop.permute.xlu0 %4178
  %4180 = vrot.lane.b32.xlu0 %v2994, 64
  %v4181 = vpop.permute.xlu0 %4180
  %4182 = vrot.lane.b32.xlu0 %v2996, 64
  %v4183 = vpop.permute.xlu0 %4182
  %4184 = vrot.lane.b32.xlu0 %v2998, 64
  %v4185 = vpop.permute.xlu0 %4184
  %v4191 = vsel %vm79, %v3803, 0
  %v4194 = vsel %vm79, %v3804, 0
  %v4197 = vsel %vm79, %v3805, 0
  %v4200 = vsel %vm79, %v3806, 0
  %4202 = vmatpush.msra.mxu0 0.0
  %4203 = vmatpush.msra.mxu0 0.0
  %4204 = vmatpush.msra.mxu0 0.0
  %4205 = vmatpush.msra.mxu0 0.0
  %4206 = vmatpush.msra.mxu0 0.0
  %4207 = vmatpush.msra.mxu0 0.0
  %4208 = vmatpush.msra.mxu0 0.0
  %4209 = vmatpush.msra.mxu0 0.0
  %4210 = vmatpush.msra.mxu0 0.0
  %4211 = vmatpush.msra.mxu0 0.0
  %4212 = vmatpush.msra.mxu0 0.0
  %4213 = vmatpush.msra.mxu0 0.0
  %4214 = vmatpush.msra.mxu0 %v4185
  %4215 = vmatpush.msra.mxu0 %v4183
  %4216 = vmatpush.msra.mxu0 %v4181
  %4217 = vmatpush.msra.mxu0 %v4179
  %4218 = vmatmul.f32.gmra.mxu0 %v4191
  %v4219 = vpop.f32.mrf.mxu0
  %v4220 = vadd.f32 0.0, %v4219
  %4221 = vmatmul.f32.gmra.mxu0 %v4194
  %v4222 = vpop.f32.mrf.mxu0
  %v4223 = vadd.f32 0.0, %v4222
  %4224 = vmatmul.f32.gmra.mxu0 %v4197
  %v4225 = vpop.f32.mrf.mxu0
  %v4226 = vadd.f32 0.0, %v4225
  %4227 = vmatmul.f32.gmra.mxu0 %v4200
  %v4228 = vpop.f32.mrf.mxu0
  %v4229 = vadd.f32 0.0, %v4228
  %4230 = vdwg.mxu0
  %s4231 = scalar_lea.vmem %s6, 32
  %v4232 = vld [vmem:[%s4231] sm:$0xff]
  %v4233 = vld [vmem:[%s4231 + $0x8] sm:$0xff]
  %v4234 = vld [vmem:[%s4231 + $0x10] sm:$0xff]
  %v4235 = vld [vmem:[%s4231 + $0x18] sm:$0xff]
  %s4236 = scalar_lea.vmem %s7, 1
  %v4237 = vld [vmem:[%s4236] sm:$0x1]
  %v4239 = vsel %vm422, %v3849, 0
  %v4242 = vsel %vm422, %v3852, 0
  %v4245 = vsel %vm422, %v3855, 0
  %v4248 = vsel %vm422, %v3858, 0
  %v4251 = vsel %vm422, %v3902, 0
  %v4254 = vsel %vm422, %v3905, 0
  %v4257 = vsel %vm422, %v3908, 0
  %v4260 = vsel %vm422, %v3911, 0
  %4262 = vmatpush.msra.mxu0 0.0
  %4263 = vmatpush.msra.mxu0 0.0
  %4264 = vmatpush.msra.mxu0 0.0
  %4265 = vmatpush.msra.mxu0 0.0
  %4266 = vmatpush.msra.mxu0 0.0
  %4267 = vmatpush.msra.mxu0 0.0
  %4268 = vmatpush.msra.mxu0 0.0
  %4269 = vmatpush.msra.mxu0 0.0
  %4270 = vmatpush.msra.mxu0 0.0
  %4271 = vmatpush.msra.mxu0 0.0
  %4272 = vmatpush.msra.mxu0 0.0
  %4273 = vmatpush.msra.mxu0 0.0
  %4274 = vmatpush.msra.mxu0 0.0
  %4275 = vmatpush.msra.mxu0 0.0
  %4276 = vmatpush.msra.mxu0 0.0
  %4277 = vmatpush.msra.mxu0 %v4232
  %4278 = vmatmul.f32.gmra.mxu0 %v4239
  %v4279 = vpop.f32.mrf.mxu0
  %v4280 = vadd.f32 0.0, %v4279
  %4281 = vmatmul.f32.gmra.mxu0 %v4242
  %v4282 = vpop.f32.mrf.mxu0
  %v4283 = vadd.f32 0.0, %v4282
  %4284 = vmatmul.f32.gmra.mxu0 %v4245
  %v4285 = vpop.f32.mrf.mxu0
  %v4286 = vadd.f32 0.0, %v4285
  %4287 = vmatmul.f32.gmra.mxu0 %v4248
  %v4288 = vpop.f32.mrf.mxu0
  %v4289 = vadd.f32 0.0, %v4288
  %4290 = vmatmul.f32.gmra.mxu0 %v4251
  %v4291 = vpop.f32.mrf.mxu0
  %v4292 = vadd.f32 0.0, %v4291
  %4293 = vmatmul.f32.gmra.mxu0 %v4254
  %v4294 = vpop.f32.mrf.mxu0
  %v4295 = vadd.f32 0.0, %v4294
  %4296 = vmatmul.f32.gmra.mxu0 %v4257
  %v4297 = vpop.f32.mrf.mxu0
  %v4298 = vadd.f32 0.0, %v4297
  %4299 = vmatmul.f32.gmra.mxu0 %v4260
  %v4300 = vpop.f32.mrf.mxu0
  %v4301 = vadd.f32 0.0, %v4300
  %4302 = vdwg.mxu0
  %v4304 = vperm.slane %v4237, 0
  %v4306 = vadd.f32 %v4304, %v4280
  %v4307 = vadd.f32 %v4304, %v4283
  %v4308 = vadd.f32 %v4304, %v4286
  %v4309 = vadd.f32 %v4304, %v4289
  %v4310 = vadd.f32 %v4304, %v4292
  %v4311 = vadd.f32 %v4304, %v4295
  %v4312 = vadd.f32 %v4304, %v4298
  %v4313 = vadd.f32 %v4304, %v4301
  %v4315 = vsel %vm422, %v3955, 0
  %v4318 = vsel %vm422, %v3958, 0
  %v4321 = vsel %vm422, %v3961, 0
  %v4324 = vsel %vm422, %v3964, 0
  %v4327 = vsel %vm422, %v4008, 0
  %v4330 = vsel %vm422, %v4011, 0
  %v4333 = vsel %vm422, %v4014, 0
  %v4336 = vsel %vm422, %v4017, 0
  %4338 = vmatpush.msra.mxu0 0.0
  %4339 = vmatpush.msra.mxu0 0.0
  %4340 = vmatpush.msra.mxu0 0.0
  %4341 = vmatpush.msra.mxu0 0.0
  %4342 = vmatpush.msra.mxu0 0.0
  %4343 = vmatpush.msra.mxu0 0.0
  %4344 = vmatpush.msra.mxu0 0.0
  %4345 = vmatpush.msra.mxu0 0.0
  %4346 = vmatpush.msra.mxu0 0.0
  %4347 = vmatpush.msra.mxu0 0.0
  %4348 = vmatpush.msra.mxu0 0.0
  %4349 = vmatpush.msra.mxu0 0.0
  %4350 = vmatpush.msra.mxu0 0.0
  %4351 = vmatpush.msra.mxu0 0.0
  %4352 = vmatpush.msra.mxu0 0.0
  %4353 = vmatpush.msra.mxu0 %v4233
  %4354 = vmatmul.f32.gmra.mxu0 %v4315
  %v4355 = vpop.f32.mrf.mxu0
  %v4356 = vadd.f32 0.0, %v4355
  %4357 = vmatmul.f32.gmra.mxu0 %v4318
  %v4358 = vpop.f32.mrf.mxu0
  %v4359 = vadd.f32 0.0, %v4358
  %4360 = vmatmul.f32.gmra.mxu0 %v4321
  %v4361 = vpop.f32.mrf.mxu0
  %v4362 = vadd.f32 0.0, %v4361
  %4363 = vmatmul.f32.gmra.mxu0 %v4324
  %v4364 = vpop.f32.mrf.mxu0
  %v4365 = vadd.f32 0.0, %v4364
  %4366 = vmatmul.f32.gmra.mxu0 %v4327
  %v4367 = vpop.f32.mrf.mxu0
  %v4368 = vadd.f32 0.0, %v4367
  %4369 = vmatmul.f32.gmra.mxu0 %v4330
  %v4370 = vpop.f32.mrf.mxu0
  %v4371 = vadd.f32 0.0, %v4370
  %4372 = vmatmul.f32.gmra.mxu0 %v4333
  %v4373 = vpop.f32.mrf.mxu0
  %v4374 = vadd.f32 0.0, %v4373
  %4375 = vmatmul.f32.gmra.mxu0 %v4336
  %v4376 = vpop.f32.mrf.mxu0
  %v4377 = vadd.f32 0.0, %v4376
  %4378 = vdwg.mxu0
  %v4379 = vadd.f32 %v4306, %v4356
  %v4380 = vadd.f32 %v4307, %v4359
  %v4381 = vadd.f32 %v4308, %v4362
  %v4382 = vadd.f32 %v4309, %v4365
  %v4383 = vadd.f32 %v4310, %v4368
  %v4384 = vadd.f32 %v4311, %v4371
  %v4385 = vadd.f32 %v4312, %v4374
  %v4386 = vadd.f32 %v4313, %v4377
  %v4388 = vsel %vm422, %v4061, 0
  %v4391 = vsel %vm422, %v4064, 0
  %v4394 = vsel %vm422, %v4067, 0
  %v4397 = vsel %vm422, %v4070, 0
  %v4400 = vsel %vm422, %v4114, 0
  %v4403 = vsel %vm422, %v4117, 0
  %v4406 = vsel %vm422, %v4120, 0
  %v4409 = vsel %vm422, %v4123, 0
  %4411 = vmatpush.msra.mxu0 0.0
  %4412 = vmatpush.msra.mxu0 0.0
  %4413 = vmatpush.msra.mxu0 0.0
  %4414 = vmatpush.msra.mxu0 0.0
  %4415 = vmatpush.msra.mxu0 0.0
  %4416 = vmatpush.msra.mxu0 0.0
  %4417 = vmatpush.msra.mxu0 0.0
  %4418 = vmatpush.msra.mxu0 0.0
  %4419 = vmatpush.msra.mxu0 0.0
  %4420 = vmatpush.msra.mxu0 0.0
  %4421 = vmatpush.msra.mxu0 0.0
  %4422 = vmatpush.msra.mxu0 0.0
  %4423 = vmatpush.msra.mxu0 0.0
  %4424 = vmatpush.msra.mxu0 0.0
  %4425 = vmatpush.msra.mxu0 0.0
  %4426 = vmatpush.msra.mxu0 %v4234
  %4427 = vmatmul.f32.gmra.mxu0 %v4388
  %v4428 = vpop.f32.mrf.mxu0
  %v4429 = vadd.f32 0.0, %v4428
  %4430 = vmatmul.f32.gmra.mxu0 %v4391
  %v4431 = vpop.f32.mrf.mxu0
  %v4432 = vadd.f32 0.0, %v4431
  %4433 = vmatmul.f32.gmra.mxu0 %v4394
  %v4434 = vpop.f32.mrf.mxu0
  %v4435 = vadd.f32 0.0, %v4434
  %4436 = vmatmul.f32.gmra.mxu0 %v4397
  %v4437 = vpop.f32.mrf.mxu0
  %v4438 = vadd.f32 0.0, %v4437
  %4439 = vmatmul.f32.gmra.mxu0 %v4400
  %v4440 = vpop.f32.mrf.mxu0
  %v4441 = vadd.f32 0.0, %v4440
  %4442 = vmatmul.f32.gmra.mxu0 %v4403
  %v4443 = vpop.f32.mrf.mxu0
  %v4444 = vadd.f32 0.0, %v4443
  %4445 = vmatmul.f32.gmra.mxu0 %v4406
  %v4446 = vpop.f32.mrf.mxu0
  %v4447 = vadd.f32 0.0, %v4446
  %4448 = vmatmul.f32.gmra.mxu0 %v4409
  %v4449 = vpop.f32.mrf.mxu0
  %v4450 = vadd.f32 0.0, %v4449
  %4451 = vdwg.mxu0
  %v4452 = vadd.f32 %v4379, %v4429
  %v4453 = vadd.f32 %v4380, %v4432
  %v4454 = vadd.f32 %v4381, %v4435
  %v4455 = vadd.f32 %v4382, %v4438
  %v4456 = vadd.f32 %v4383, %v4441
  %v4457 = vadd.f32 %v4384, %v4444
  %v4458 = vadd.f32 %v4385, %v4447
  %v4459 = vadd.f32 %v4386, %v4450
  %v4461 = vsel %vm422, %v4167, 0
  %v4464 = vsel %vm422, %v4170, 0
  %v4467 = vsel %vm422, %v4173, 0
  %v4470 = vsel %vm422, %v4176, 0
  %v4473 = vsel %vm422, %v4220, 0
  %v4476 = vsel %vm422, %v4223, 0
  %v4479 = vsel %vm422, %v4226, 0
  %v4482 = vsel %vm422, %v4229, 0
  %4484 = vmatpush.msra.mxu0 0.0
  %4485 = vmatpush.msra.mxu0 0.0
  %4486 = vmatpush.msra.mxu0 0.0
  %4487 = vmatpush.msra.mxu0 0.0
  %4488 = vmatpush.msra.mxu0 0.0
  %4489 = vmatpush.msra.mxu0 0.0
  %4490 = vmatpush.msra.mxu0 0.0
  %4491 = vmatpush.msra.mxu0 0.0
  %4492 = vmatpush.msra.mxu0 0.0
  %4493 = vmatpush.msra.mxu0 0.0
  %4494 = vmatpush.msra.mxu0 0.0
  %4495 = vmatpush.msra.mxu0 0.0
  %4496 = vmatpush.msra.mxu0 0.0
  %4497 = vmatpush.msra.mxu0 0.0
  %4498 = vmatpush.msra.mxu0 0.0
  %4499 = vmatpush.msra.mxu0 %v4235
  %4500 = vmatmul.f32.gmra.mxu0 %v4461
  %v4501 = vpop.f32.mrf.mxu0
  %v4502 = vadd.f32 0.0, %v4501
  %4503 = vmatmul.f32.gmra.mxu0 %v4464
  %v4504 = vpop.f32.mrf.mxu0
  %v4505 = vadd.f32 0.0, %v4504
  %4506 = vmatmul.f32.gmra.mxu0 %v4467
  %v4507 = vpop.f32.mrf.mxu0
  %v4508 = vadd.f32 0.0, %v4507
  %4509 = vmatmul.f32.gmra.mxu0 %v4470
  %v4510 = vpop.f32.mrf.mxu0
  %v4511 = vadd.f32 0.0, %v4510
  %4512 = vmatmul.f32.gmra.mxu0 %v4473
  %v4513 = vpop.f32.mrf.mxu0
  %v4514 = vadd.f32 0.0, %v4513
  %4515 = vmatmul.f32.gmra.mxu0 %v4476
  %v4516 = vpop.f32.mrf.mxu0
  %v4517 = vadd.f32 0.0, %v4516
  %4518 = vmatmul.f32.gmra.mxu0 %v4479
  %v4519 = vpop.f32.mrf.mxu0
  %v4520 = vadd.f32 0.0, %v4519
  %4521 = vmatmul.f32.gmra.mxu0 %v4482
  %v4522 = vpop.f32.mrf.mxu0
  %v4523 = vadd.f32 0.0, %v4522
  %4524 = vdwg.mxu0
  %v4525 = vadd.f32 %v4452, %v4502
  %v4526 = vadd.f32 %v4453, %v4505
  %v4527 = vadd.f32 %v4454, %v4508
  %v4528 = vadd.f32 %v4455, %v4511
  %v4529 = vadd.f32 %v4456, %v4514
  %v4530 = vadd.f32 %v4457, %v4517
  %v4531 = vadd.f32 %v4458, %v4520
  %v4532 = vadd.f32 %v4459, %v4523
  %v4533 = vadd.f32 %v2658, %v4525
  %v4534 = vadd.f32 %v2659, %v4526
  %v4535 = vadd.f32 %v2660, %v4527
  %v4536 = vadd.f32 %v2661, %v4528
  %v4537 = vadd.f32 %v2662, %v4529
  %v4538 = vadd.f32 %v2663, %v4530
  %v4539 = vadd.f32 %v2664, %v4531
  %v4540 = vadd.f32 %v2665, %v4532
  %s4541 = scalar_lea.vmem %s8, 1
  %v4542 = vld [vmem:[%s4541] sm:$0x1]
  %s4543 = scalar_lea.vmem %s9, 1
  %v4544 = vld [vmem:[%s4543] sm:$0x1]
  %v4545 = vsel %vm79, %v4533, 0.0
  %4546 = vadd.xlane.f32.xlu0 %v4545
  %v4547 = vpop.xlane.xlu0 %4546
  %v4548 = vsel %vm79, %v4534, 0.0
  %4549 = vadd.xlane.f32.xlu0 %v4548
  %v4550 = vpop.xlane.xlu0 %4549
  %v4551 = vsel %vm79, %v4535, 0.0
  %4552 = vadd.xlane.f32.xlu0 %v4551
  %v4553 = vpop.xlane.xlu0 %4552
  %v4554 = vsel %vm79, %v4536, 0.0
  %4555 = vadd.xlane.f32.xlu0 %v4554
  %v4556 = vpop.xlane.xlu0 %4555
  %v4557 = vsel %vm79, %v4537, 0.0
  %4558 = vadd.xlane.f32.xlu0 %v4557
  %v4559 = vpop.xlane.xlu0 %4558
  %v4560 = vsel %vm79, %v4538, 0.0
  %4561 = vadd.xlane.f32.xlu0 %v4560
  %v4562 = vpop.xlane.xlu0 %4561
  %v4563 = vsel %vm79, %v4539, 0.0
  %4564 = vadd.xlane.f32.xlu0 %v4563
  %v4565 = vpop.xlane.xlu0 %4564
  %v4566 = vsel %vm79, %v4540, 0.0
  %4567 = vadd.xlane.f32.xlu0 %v4566
  %v4568 = vpop.xlane.xlu0 %4567
  %v4569 = vmul.f32 %v4547, %v110
  %v4570 = vmul.f32 %v4550, %v110
  %v4571 = vmul.f32 %v4553, %v110
  %v4572 = vmul.f32 %v4556, %v110
  %v4573 = vmul.f32 %v4559, %v110
  %v4574 = vmul.f32 %v4562, %v110
  %v4575 = vmul.f32 %v4565, %v110
  %v4576 = vmul.f32 %v4568, %v110
  %v4577 = vsub.f32 %v4533, %v4569
  %v4578 = vsub.f32 %v4534, %v4570
  %v4579 = vsub.f32 %v4535, %v4571
  %v4580 = vsub.f32 %v4536, %v4572
  %v4581 = vsub.f32 %v4537, %v4573
  %v4582 = vsub.f32 %v4538, %v4574
  %v4583 = vsub.f32 %v4539, %v4575
  %v4584 = vsub.f32 %v4540, %v4576
  %v4585 = vmul.f32 %v4577, %v4577
  %v4586 = vmul.f32 %v4578, %v4578
  %v4587 = vmul.f32 %v4579, %v4579
  %v4588 = vmul.f32 %v4580, %v4580
  %v4589 = vmul.f32 %v4581, %v4581
  %v4590 = vmul.f32 %v4582, %v4582
  %v4591 = vmul.f32 %v4583, %v4583
  %v4592 = vmul.f32 %v4584, %v4584
  %v4593 = vsel %vm79, %v4585, 0.0
  %4594 = vadd.xlane.f32.xlu0 %v4593
  %v4595 = vpop.xlane.xlu0 %4594
  %v4596 = vsel %vm79, %v4586, 0.0
  %4597 = vadd.xlane.f32.xlu0 %v4596
  %v4598 = vpop.xlane.xlu0 %4597
  %v4599 = vsel %vm79, %v4587, 0.0
  %4600 = vadd.xlane.f32.xlu0 %v4599
  %v4601 = vpop.xlane.xlu0 %4600
  %v4602 = vsel %vm79, %v4588, 0.0
  %4603 = vadd.xlane.f32.xlu0 %v4602
  %v4604 = vpop.xlane.xlu0 %4603
  %v4605 = vsel %vm79, %v4589, 0.0
  %4606 = vadd.xlane.f32.xlu0 %v4605
  %v4607 = vpop.xlane.xlu0 %4606
  %v4608 = vsel %vm79, %v4590, 0.0
  %4609 = vadd.xlane.f32.xlu0 %v4608
  %v4610 = vpop.xlane.xlu0 %4609
  %v4611 = vsel %vm79, %v4591, 0.0
  %4612 = vadd.xlane.f32.xlu0 %v4611
  %v4613 = vpop.xlane.xlu0 %4612
  %v4614 = vsel %vm79, %v4592, 0.0
  %4615 = vadd.xlane.f32.xlu0 %v4614
  %v4616 = vpop.xlane.xlu0 %4615
  %v4617 = vmul.f32 %v4595, %v110
  %v4618 = vmul.f32 %v4598, %v110
  %v4619 = vmul.f32 %v4601, %v110
  %v4620 = vmul.f32 %v4604, %v110
  %v4621 = vmul.f32 %v4607, %v110
  %v4622 = vmul.f32 %v4610, %v110
  %v4623 = vmul.f32 %v4613, %v110
  %v4624 = vmul.f32 %v4616, %v110
  %v4625 = vadd.f32 %v4617, 1e-05
  %v4626 = vadd.f32 %v4618, 1e-05
  %v4627 = vadd.f32 %v4619, 1e-05
  %v4628 = vadd.f32 %v4620, 1e-05
  %v4629 = vadd.f32 %v4621, 1e-05
  %v4630 = vadd.f32 %v4622, 1e-05
  %v4631 = vadd.f32 %v4623, 1e-05
  %v4632 = vadd.f32 %v4624, 1e-05
  %v4633 = vrsqrt.pop %v4625
  %v4634 = vmul.f32 %v4633, %v4625
  %v4635 = vmul.f32 %v4634, %v4633
  %v4636 = vmul.f32 0.5, %v4635
  %v4637 = vsub.f32 1.5, %v4636
  %v4638 = vmul.f32 %v4633, %v4637
  %vm4639 = vweird.f32 %v4625
  %vm4640 = vweird.f32 %v4633
  %vm4641 = vmor %vm4639, %vm4640
  %v4642 = vsel %vm4641, %v4633, %v4638
  %v4643 = vrsqrt.pop %v4626
  %v4644 = vmul.f32 %v4643, %v4626
  %v4645 = vmul.f32 %v4644, %v4643
  %v4646 = vmul.f32 0.5, %v4645
  %v4647 = vsub.f32 1.5, %v4646
  %v4648 = vmul.f32 %v4643, %v4647
  %vm4649 = vweird.f32 %v4626
  %vm4650 = vweird.f32 %v4643
  %vm4651 = vmor %vm4649, %vm4650
  %v4652 = vsel %vm4651, %v4643, %v4648
  %v4653 = vrsqrt.pop %v4627
  %v4654 = vmul.f32 %v4653, %v4627
  %v4655 = vmul.f32 %v4654, %v4653
  %v4656 = vmul.f32 0.5, %v4655
  %v4657 = vsub.f32 1.5, %v4656
  %v4658 = vmul.f32 %v4653, %v4657
  %vm4659 = vweird.f32 %v4627
  %vm4660 = vweird.f32 %v4653
  %vm4661 = vmor %vm4659, %vm4660
  %v4662 = vsel %vm4661, %v4653, %v4658
  %v4663 = vrsqrt.pop %v4628
  %v4664 = vmul.f32 %v4663, %v4628
  %v4665 = vmul.f32 %v4664, %v4663
  %v4666 = vmul.f32 0.5, %v4665
  %v4667 = vsub.f32 1.5, %v4666
  %v4668 = vmul.f32 %v4663, %v4667
  %vm4669 = vweird.f32 %v4628
  %vm4670 = vweird.f32 %v4663
  %vm4671 = vmor %vm4669, %vm4670
  %v4672 = vsel %vm4671, %v4663, %v4668
  %v4673 = vrsqrt.pop %v4629
  %v4674 = vmul.f32 %v4673, %v4629
  %v4675 = vmul.f32 %v4674, %v4673
  %v4676 = vmul.f32 0.5, %v4675
  %v4677 = vsub.f32 1.5, %v4676
  %v4678 = vmul.f32 %v4673, %v4677
  %vm4679 = vweird.f32 %v4629
  %vm4680 = vweird.f32 %v4673
  %vm4681 = vmor %vm4679, %vm4680
  %v4682 = vsel %vm4681, %v4673, %v4678
  %v4683 = vrsqrt.pop %v4630
  %v4684 = vmul.f32 %v4683, %v4630
  %v4685 = vmul.f32 %v4684, %v4683
  %v4686 = vmul.f32 0.5, %v4685
  %v4687 = vsub.f32 1.5, %v4686
  %v4688 = vmul.f32 %v4683, %v4687
  %vm4689 = vweird.f32 %v4630
  %vm4690 = vweird.f32 %v4683
  %vm4691 = vmor %vm4689, %vm4690
  %v4692 = vsel %vm4691, %v4683, %v4688
  %v4693 = vrsqrt.pop %v4631
  %v4694 = vmul.f32 %v4693, %v4631
  %v4695 = vmul.f32 %v4694, %v4693
  %v4696 = vmul.f32 0.5, %v4695
  %v4697 = vsub.f32 1.5, %v4696
  %v4698 = vmul.f32 %v4693, %v4697
  %vm4699 = vweird.f32 %v4631
  %vm4700 = vweird.f32 %v4693
  %vm4701 = vmor %vm4699, %vm4700
  %v4702 = vsel %vm4701, %v4693, %v4698
  %v4703 = vrsqrt.pop %v4632
  %v4704 = vmul.f32 %v4703, %v4632
  %v4705 = vmul.f32 %v4704, %v4703
  %v4706 = vmul.f32 0.5, %v4705
  %v4707 = vsub.f32 1.5, %v4706
  %v4708 = vmul.f32 %v4703, %v4707
  %vm4709 = vweird.f32 %v4632
  %vm4710 = vweird.f32 %v4703
  %vm4711 = vmor %vm4709, %vm4710
  %v4712 = vsel %vm4711, %v4703, %v4708
  %v4713 = vmul.f32 %v4577, %v4642
  %v4714 = vmul.f32 %v4578, %v4652
  %v4715 = vmul.f32 %v4579, %v4662
  %v4716 = vmul.f32 %v4580, %v4672
  %v4717 = vmul.f32 %v4581, %v4682
  %v4718 = vmul.f32 %v4582, %v4692
  %v4719 = vmul.f32 %v4583, %v4702
  %v4720 = vmul.f32 %v4584, %v4712
  %v4722 = vperm.slane %v4542, 0
  %v4724 = vmul.f32 %v4713, %v4722
  %v4725 = vmul.f32 %v4714, %v4722
  %v4726 = vmul.f32 %v4715, %v4722
  %v4727 = vmul.f32 %v4716, %v4722
  %v4728 = vmul.f32 %v4717, %v4722
  %v4729 = vmul.f32 %v4718, %v4722
  %v4730 = vmul.f32 %v4719, %v4722
  %v4731 = vmul.f32 %v4720, %v4722
  %v4733 = vperm.slane %v4544, 0
  %v4735 = vadd.f32 %v4724, %v4733
  %v4736 = vadd.f32 %v4725, %v4733
  %v4737 = vadd.f32 %v4726, %v4733
  %v4738 = vadd.f32 %v4727, %v4733
  %v4739 = vadd.f32 %v4728, %v4733
  %v4740 = vadd.f32 %v4729, %v4733
  %v4741 = vadd.f32 %v4730, %v4733
  %v4742 = vadd.f32 %v4731, %v4733
  %s4743 = scalar_lea.vmem %s10, 32
  %v4744 = vld [vmem:[%s4743] sm:$0xff]
  %v4745 = vld [vmem:[%s4743 + $0x8] sm:$0xff]
  %v4746 = vld [vmem:[%s4743 + $0x10] sm:$0xff]
  %v4747 = vld [vmem:[%s4743 + $0x18] sm:$0xff]
  %s4748 = scalar_lea.vmem %s11, 1
  %v4749 = vld [vmem:[%s4748] sm:$0x1]
  %v4751 = vperm.slane %v4749, 0
  %v4754 = vsel %vm79, %v4735, 0
  %v4757 = vsel %vm79, %v4736, 0
  %v4760 = vsel %vm79, %v4737, 0
  %v4763 = vsel %vm79, %v4738, 0
  %v4766 = vsel %vm79, %v4739, 0
  %v4769 = vsel %vm79, %v4740, 0
  %v4772 = vsel %vm79, %v4741, 0
  %v4775 = vsel %vm79, %v4742, 0
  %4777 = vmatpush.msra.mxu0 0.0
  %4778 = vmatpush.msra.mxu0 0.0
  %4779 = vmatpush.msra.mxu0 0.0
  %4780 = vmatpush.msra.mxu0 0.0
  %4781 = vmatpush.msra.mxu0 0.0
  %4782 = vmatpush.msra.mxu0 0.0
  %4783 = vmatpush.msra.mxu0 0.0
  %4784 = vmatpush.msra.mxu0 0.0
  %4785 = vmatpush.msra.mxu0 0.0
  %4786 = vmatpush.msra.mxu0 0.0
  %4787 = vmatpush.msra.mxu0 0.0
  %4788 = vmatpush.msra.mxu0 0.0
  %4789 = vmatpush.msra.mxu0 %v4747
  %4790 = vmatpush.msra.mxu0 %v4746
  %4791 = vmatpush.msra.mxu0 %v4745
  %4792 = vmatpush.msra.mxu0 %v4744
  %4793 = vmatmul.f32.gmra.mxu0 %v4754
  %v4794 = vpop.f32.mrf.mxu0
  %v4795 = vadd.f32 %v4751, %v4794
  %4796 = vmatmul.f32.gmra.mxu0 %v4757
  %v4797 = vpop.f32.mrf.mxu0
  %v4798 = vadd.f32 %v4751, %v4797
  %4799 = vmatmul.f32.gmra.mxu0 %v4760
  %v4800 = vpop.f32.mrf.mxu0
  %v4801 = vadd.f32 %v4751, %v4800
  %4802 = vmatmul.f32.gmra.mxu0 %v4763
  %v4803 = vpop.f32.mrf.mxu0
  %v4804 = vadd.f32 %v4751, %v4803
  %4805 = vmatmul.f32.gmra.mxu0 %v4766
  %v4806 = vpop.f32.mrf.mxu0
  %v4807 = vadd.f32 %v4751, %v4806
  %4808 = vmatmul.f32.gmra.mxu0 %v4769
  %v4809 = vpop.f32.mrf.mxu0
  %v4810 = vadd.f32 %v4751, %v4809
  %4811 = vmatmul.f32.gmra.mxu0 %v4772
  %v4812 = vpop.f32.mrf.mxu0
  %v4813 = vadd.f32 %v4751, %v4812
  %4814 = vmatmul.f32.gmra.mxu0 %v4775
  %v4815 = vpop.f32.mrf.mxu0
  %v4816 = vadd.f32 %v4751, %v4815
  %4817 = vdwg.mxu0
  %v4818 = vmul.f32 %v4795, 0.5
  %v4819 = vmul.f32 %v4798, 0.5
  %v4820 = vmul.f32 %v4801, 0.5
  %v4821 = vmul.f32 %v4804, 0.5
  %v4822 = vmul.f32 %v4807, 0.5
  %v4823 = vmul.f32 %v4810, 0.5
  %v4824 = vmul.f32 %v4813, 0.5
  %v4825 = vmul.f32 %v4816, 0.5
  %v4826 = vmul.f32 %v4795, 0.70710677
  %v4827 = vmul.f32 %v4798, 0.70710677
  %v4828 = vmul.f32 %v4801, 0.70710677
  %v4829 = vmul.f32 %v4804, 0.70710677
  %v4830 = vmul.f32 %v4807, 0.70710677
  %v4831 = vmul.f32 %v4810, 0.70710677
  %v4832 = vmul.f32 %v4813, 0.70710677
  %v4833 = vmul.f32 %v4816, 0.70710677
  %v4834 = vmul.f32 %v4826, %v4826
  %v4835 = vmin.f32 16.0, %v4834
  %v4836 = vmul.f32 %v4835, 2.1237322e-06
  %v4837 = vadd.f32 %v4836, 0.00028619796
  %v4838 = vmul.f32 %v4835, %v4837
  %v4839 = vadd.f32 %v4838, 0.0036580483
  %v4840 = vmul.f32 %v4835, %v4839
  %v4841 = vadd.f32 %v4840, 0.05243302
  %v4842 = vmul.f32 %v4835, %v4841
  %v4843 = vadd.f32 %v4842, 0.18741608
  %v4844 = vmul.f32 %v4835, %v4843
  %v4845 = vadd.f32 %v4844, 1.1283791
  %v4846 = vmul.f32 %v4826, %v4845
  %v4847 = vmul.f32 %v4835, 3.8918573e-05
  %v4848 = vadd.f32 %v4847, 0.001143296
  %v4849 = vmul.f32 %v4835, %v4848
  %v4850 = vadd.f32 %v4849, 0.014752088
  %v4851 = vmul.f32 %v4835, %v4850
  %v4852 = vadd.f32 %v4851, 0.112945676
  %v4853 = vmul.f32 %v4835, %v4852
  %v4854 = vadd.f32 %v4853, 0.4994258
  %v4855 = vmul.f32 %v4835, %v4854
  %v4856 = vadd.f32 %v4855, 1.0
  %v4857 = vrcp.pop %v4856
  %v4858 = vmul.f32 %v4856, %v4857
  %v4859 = vsub.f32 1.0, %v4858
  %v4860 = vmul.f32 %v4857, %v4859
  %v4861 = vadd.f32 %v4857, %v4860
  %vm4862 = vweird.f32 %v4856
  %vm4863 = vweird.f32 %v4857
  %vm4864 = vmor %vm4862, %vm4863
  %v4865 = vsel %vm4864, %v4857, %v4861
  %v4866 = vand.u32 2147483647, %v4856
  %vm4867 = vcmp.eq.f32.partialorder %v4866, 8.507059e+37
  %v4868 = vand.u32 %v4856, 2147483648
  %v4869 = vor.u32 1.1754944e-38, %v4868
  %v4870 = vsel %vm4867, %v4869, %v4865
  %v4871 = vmul.f32 %v4846, %v4870
  %v4872 = vmin.f32 %v4871, 1.0
  %v4873 = vmax.f32 %v4872, -1.0
  %v4874 = vmul.f32 %v4827, %v4827
  %v4875 = vmin.f32 16.0, %v4874
  %v4876 = vmul.f32 %v4875, 2.1237322e-06
  %v4877 = vadd.f32 %v4876, 0.00028619796
  %v4878 = vmul.f32 %v4875, %v4877
  %v4879 = vadd.f32 %v4878, 0.0036580483
  %v4880 = vmul.f32 %v4875, %v4879
  %v4881 = vadd.f32 %v4880, 0.05243302
  %v4882 = vmul.f32 %v4875, %v4881
  %v4883 = vadd.f32 %v4882, 0.18741608
  %v4884 = vmul.f32 %v4875, %v4883
  %v4885 = vadd.f32 %v4884, 1.1283791
  %v4886 = vmul.f32 %v4827, %v4885
  %v4887 = vmul.f32 %v4875, 3.8918573e-05
  %v4888 = vadd.f32 %v4887, 0.001143296
  %v4889 = vmul.f32 %v4875, %v4888
  %v4890 = vadd.f32 %v4889, 0.014752088
  %v4891 = vmul.f32 %v4875, %v4890
  %v4892 = vadd.f32 %v4891, 0.112945676
  %v4893 = vmul.f32 %v4875, %v4892
  %v4894 = vadd.f32 %v4893, 0.4994258
  %v4895 = vmul.f32 %v4875, %v4894
  %v4896 = vadd.f32 %v4895, 1.0
  %v4897 = vrcp.pop %v4896
  %v4898 = vmul.f32 %v4896, %v4897
  %v4899 = vsub.f32 1.0, %v4898
  %v4900 = vmul.f32 %v4897, %v4899
  %v4901 = vadd.f32 %v4897, %v4900
  %vm4902 = vweird.f32 %v4896
  %vm4903 = vweird.f32 %v4897
  %vm4904 = vmor %vm4902, %vm4903
  %v4905 = vsel %vm4904, %v4897, %v4901
  %v4906 = vand.u32 2147483647, %v4896
  %vm4907 = vcmp.eq.f32.partialorder %v4906, 8.507059e+37
  %v4908 = vand.u32 %v4896, 2147483648
  %v4909 = vor.u32 1.1754944e-38, %v4908
  %v4910 = vsel %vm4907, %v4909, %v4905
  %v4911 = vmul.f32 %v4886, %v4910
  %v4912 = vmin.f32 %v4911, 1.0
  %v4913 = vmax.f32 %v4912, -1.0
  %v4914 = vmul.f32 %v4828, %v4828
  %v4915 = vmin.f32 16.0, %v4914
  %v4916 = vmul.f32 %v4915, 2.1237322e-06
  %v4917 = vadd.f32 %v4916, 0.00028619796
  %v4918 = vmul.f32 %v4915, %v4917
  %v4919 = vadd.f32 %v4918, 0.0036580483
  %v4920 = vmul.f32 %v4915, %v4919
  %v4921 = vadd.f32 %v4920, 0.05243302
  %v4922 = vmul.f32 %v4915, %v4921
  %v4923 = vadd.f32 %v4922, 0.18741608
  %v4924 = vmul.f32 %v4915, %v4923
  %v4925 = vadd.f32 %v4924, 1.1283791
  %v4926 = vmul.f32 %v4828, %v4925
  %v4927 = vmul.f32 %v4915, 3.8918573e-05
  %v4928 = vadd.f32 %v4927, 0.001143296
  %v4929 = vmul.f32 %v4915, %v4928
  %v4930 = vadd.f32 %v4929, 0.014752088
  %v4931 = vmul.f32 %v4915, %v4930
  %v4932 = vadd.f32 %v4931, 0.112945676
  %v4933 = vmul.f32 %v4915, %v4932
  %v4934 = vadd.f32 %v4933, 0.4994258
  %v4935 = vmul.f32 %v4915, %v4934
  %v4936 = vadd.f32 %v4935, 1.0
  %v4937 = vrcp.pop %v4936
  %v4938 = vmul.f32 %v4936, %v4937
  %v4939 = vsub.f32 1.0, %v4938
  %v4940 = vmul.f32 %v4937, %v4939
  %v4941 = vadd.f32 %v4937, %v4940
  %vm4942 = vweird.f32 %v4936
  %vm4943 = vweird.f32 %v4937
  %vm4944 = vmor %vm4942, %vm4943
  %v4945 = vsel %vm4944, %v4937, %v4941
  %v4946 = vand.u32 2147483647, %v4936
  %vm4947 = vcmp.eq.f32.partialorder %v4946, 8.507059e+37
  %v4948 = vand.u32 %v4936, 2147483648
  %v4949 = vor.u32 1.1754944e-38, %v4948
  %v4950 = vsel %vm4947, %v4949, %v4945
  %v4951 = vmul.f32 %v4926, %v4950
  %v4952 = vmin.f32 %v4951, 1.0
  %v4953 = vmax.f32 %v4952, -1.0
  %v4954 = vmul.f32 %v4829, %v4829
  %v4955 = vmin.f32 16.0, %v4954
  %v4956 = vmul.f32 %v4955, 2.1237322e-06
  %v4957 = vadd.f32 %v4956, 0.00028619796
  %v4958 = vmul.f32 %v4955, %v4957
  %v4959 = vadd.f32 %v4958, 0.0036580483
  %v4960 = vmul.f32 %v4955, %v4959
  %v4961 = vadd.f32 %v4960, 0.05243302
  %v4962 = vmul.f32 %v4955, %v4961
  %v4963 = vadd.f32 %v4962, 0.18741608
  %v4964 = vmul.f32 %v4955, %v4963
  %v4965 = vadd.f32 %v4964, 1.1283791
  %v4966 = vmul.f32 %v4829, %v4965
  %v4967 = vmul.f32 %v4955, 3.8918573e-05
  %v4968 = vadd.f32 %v4967, 0.001143296
  %v4969 = vmul.f32 %v4955, %v4968
  %v4970 = vadd.f32 %v4969, 0.014752088
  %v4971 = vmul.f32 %v4955, %v4970
  %v4972 = vadd.f32 %v4971, 0.112945676
  %v4973 = vmul.f32 %v4955, %v4972
  %v4974 = vadd.f32 %v4973, 0.4994258
  %v4975 = vmul.f32 %v4955, %v4974
  %v4976 = vadd.f32 %v4975, 1.0
  %v4977 = vrcp.pop %v4976
  %v4978 = vmul.f32 %v4976, %v4977
  %v4979 = vsub.f32 1.0, %v4978
  %v4980 = vmul.f32 %v4977, %v4979
  %v4981 = vadd.f32 %v4977, %v4980
  %vm4982 = vweird.f32 %v4976
  %vm4983 = vweird.f32 %v4977
  %vm4984 = vmor %vm4982, %vm4983
  %v4985 = vsel %vm4984, %v4977, %v4981
  %v4986 = vand.u32 2147483647, %v4976
  %vm4987 = vcmp.eq.f32.partialorder %v4986, 8.507059e+37
  %v4988 = vand.u32 %v4976, 2147483648
  %v4989 = vor.u32 1.1754944e-38, %v4988
  %v4990 = vsel %vm4987, %v4989, %v4985
  %v4991 = vmul.f32 %v4966, %v4990
  %v4992 = vmin.f32 %v4991, 1.0
  %v4993 = vmax.f32 %v4992, -1.0
  %v4994 = vmul.f32 %v4830, %v4830
  %v4995 = vmin.f32 16.0, %v4994
  %v4996 = vmul.f32 %v4995, 2.1237322e-06
  %v4997 = vadd.f32 %v4996, 0.00028619796
  %v4998 = vmul.f32 %v4995, %v4997
  %v4999 = vadd.f32 %v4998, 0.0036580483
  %v5000 = vmul.f32 %v4995, %v4999
  %v5001 = vadd.f32 %v5000, 0.05243302
  %v5002 = vmul.f32 %v4995, %v5001
  %v5003 = vadd.f32 %v5002, 0.18741608
  %v5004 = vmul.f32 %v4995, %v5003
  %v5005 = vadd.f32 %v5004, 1.1283791
  %v5006 = vmul.f32 %v4830, %v5005
  %v5007 = vmul.f32 %v4995, 3.8918573e-05
  %v5008 = vadd.f32 %v5007, 0.001143296
  %v5009 = vmul.f32 %v4995, %v5008
  %v5010 = vadd.f32 %v5009, 0.014752088
  %v5011 = vmul.f32 %v4995, %v5010
  %v5012 = vadd.f32 %v5011, 0.112945676
  %v5013 = vmul.f32 %v4995, %v5012
  %v5014 = vadd.f32 %v5013, 0.4994258
  %v5015 = vmul.f32 %v4995, %v5014
  %v5016 = vadd.f32 %v5015, 1.0
  %v5017 = vrcp.pop %v5016
  %v5018 = vmul.f32 %v5016, %v5017
  %v5019 = vsub.f32 1.0, %v5018
  %v5020 = vmul.f32 %v5017, %v5019
  %v5021 = vadd.f32 %v5017, %v5020
  %vm5022 = vweird.f32 %v5016
  %vm5023 = vweird.f32 %v5017
  %vm5024 = vmor %vm5022, %vm5023
  %v5025 = vsel %vm5024, %v5017, %v5021
  %v5026 = vand.u32 2147483647, %v5016
  %vm5027 = vcmp.eq.f32.partialorder %v5026, 8.507059e+37
  %v5028 = vand.u32 %v5016, 2147483648
  %v5029 = vor.u32 1.1754944e-38, %v5028
  %v5030 = vsel %vm5027, %v5029, %v5025
  %v5031 = vmul.f32 %v5006, %v5030
  %v5032 = vmin.f32 %v5031, 1.0
  %v5033 = vmax.f32 %v5032, -1.0
  %v5034 = vmul.f32 %v4831, %v4831
  %v5035 = vmin.f32 16.0, %v5034
  %v5036 = vmul.f32 %v5035, 2.1237322e-06
  %v5037 = vadd.f32 %v5036, 0.00028619796
  %v5038 = vmul.f32 %v5035, %v5037
  %v5039 = vadd.f32 %v5038, 0.0036580483
  %v5040 = vmul.f32 %v5035, %v5039
  %v5041 = vadd.f32 %v5040, 0.05243302
  %v5042 = vmul.f32 %v5035, %v5041
  %v5043 = vadd.f32 %v5042, 0.18741608
  %v5044 = vmul.f32 %v5035, %v5043
  %v5045 = vadd.f32 %v5044, 1.1283791
  %v5046 = vmul.f32 %v4831, %v5045
  %v5047 = vmul.f32 %v5035, 3.8918573e-05
  %v5048 = vadd.f32 %v5047, 0.001143296
  %v5049 = vmul.f32 %v5035, %v5048
  %v5050 = vadd.f32 %v5049, 0.014752088
  %v5051 = vmul.f32 %v5035, %v5050
  %v5052 = vadd.f32 %v5051, 0.112945676
  %v5053 = vmul.f32 %v5035, %v5052
  %v5054 = vadd.f32 %v5053, 0.4994258
  %v5055 = vmul.f32 %v5035, %v5054
  %v5056 = vadd.f32 %v5055, 1.0
  %v5057 = vrcp.pop %v5056
  %v5058 = vmul.f32 %v5056, %v5057
  %v5059 = vsub.f32 1.0, %v5058
  %v5060 = vmul.f32 %v5057, %v5059
  %v5061 = vadd.f32 %v5057, %v5060
  %vm5062 = vweird.f32 %v5056
  %vm5063 = vweird.f32 %v5057
  %vm5064 = vmor %vm5062, %vm5063
  %v5065 = vsel %vm5064, %v5057, %v5061
  %v5066 = vand.u32 2147483647, %v5056
  %vm5067 = vcmp.eq.f32.partialorder %v5066, 8.507059e+37
  %v5068 = vand.u32 %v5056, 2147483648
  %v5069 = vor.u32 1.1754944e-38, %v5068
  %v5070 = vsel %vm5067, %v5069, %v5065
  %v5071 = vmul.f32 %v5046, %v5070
  %v5072 = vmin.f32 %v5071, 1.0
  %v5073 = vmax.f32 %v5072, -1.0
  %v5074 = vmul.f32 %v4832, %v4832
  %v5075 = vmin.f32 16.0, %v5074
  %v5076 = vmul.f32 %v5075, 2.1237322e-06
  %v5077 = vadd.f32 %v5076, 0.00028619796
  %v5078 = vmul.f32 %v5075, %v5077
  %v5079 = vadd.f32 %v5078, 0.0036580483
  %v5080 = vmul.f32 %v5075, %v5079
  %v5081 = vadd.f32 %v5080, 0.05243302
  %v5082 = vmul.f32 %v5075, %v5081
  %v5083 = vadd.f32 %v5082, 0.18741608
  %v5084 = vmul.f32 %v5075, %v5083
  %v5085 = vadd.f32 %v5084, 1.1283791
  %v5086 = vmul.f32 %v4832, %v5085
  %v5087 = vmul.f32 %v5075, 3.8918573e-05
  %v5088 = vadd.f32 %v5087, 0.001143296
  %v5089 = vmul.f32 %v5075, %v5088
  %v5090 = vadd.f32 %v5089, 0.014752088
  %v5091 = vmul.f32 %v5075, %v5090
  %v5092 = vadd.f32 %v5091, 0.112945676
  %v5093 = vmul.f32 %v5075, %v5092
  %v5094 = vadd.f32 %v5093, 0.4994258
  %v5095 = vmul.f32 %v5075, %v5094
  %v5096 = vadd.f32 %v5095, 1.0
  %v5097 = vrcp.pop %v5096
  %v5098 = vmul.f32 %v5096, %v5097
  %v5099 = vsub.f32 1.0, %v5098
  %v5100 = vmul.f32 %v5097, %v5099
  %v5101 = vadd.f32 %v5097, %v5100
  %vm5102 = vweird.f32 %v5096
  %vm5103 = vweird.f32 %v5097
  %vm5104 = vmor %vm5102, %vm5103
  %v5105 = vsel %vm5104, %v5097, %v5101
  %v5106 = vand.u32 2147483647, %v5096
  %vm5107 = vcmp.eq.f32.partialorder %v5106, 8.507059e+37
  %v5108 = vand.u32 %v5096, 2147483648
  %v5109 = vor.u32 1.1754944e-38, %v5108
  %v5110 = vsel %vm5107, %v5109, %v5105
  %v5111 = vmul.f32 %v5086, %v5110
  %v5112 = vmin.f32 %v5111, 1.0
  %v5113 = vmax.f32 %v5112, -1.0
  %v5114 = vmul.f32 %v4833, %v4833
  %v5115 = vmin.f32 16.0, %v5114
  %v5116 = vmul.f32 %v5115, 2.1237322e-06
  %v5117 = vadd.f32 %v5116, 0.00028619796
  %v5118 = vmul.f32 %v5115, %v5117
  %v5119 = vadd.f32 %v5118, 0.0036580483
  %v5120 = vmul.f32 %v5115, %v5119
  %v5121 = vadd.f32 %v5120, 0.05243302
  %v5122 = vmul.f32 %v5115, %v5121
  %v5123 = vadd.f32 %v5122, 0.18741608
  %v5124 = vmul.f32 %v5115, %v5123
  %v5125 = vadd.f32 %v5124, 1.1283791
  %v5126 = vmul.f32 %v4833, %v5125
  %v5127 = vmul.f32 %v5115, 3.8918573e-05
  %v5128 = vadd.f32 %v5127, 0.001143296
  %v5129 = vmul.f32 %v5115, %v5128
  %v5130 = vadd.f32 %v5129, 0.014752088
  %v5131 = vmul.f32 %v5115, %v5130
  %v5132 = vadd.f32 %v5131, 0.112945676
  %v5133 = vmul.f32 %v5115, %v5132
  %v5134 = vadd.f32 %v5133, 0.4994258
  %v5135 = vmul.f32 %v5115, %v5134
  %v5136 = vadd.f32 %v5135, 1.0
  %v5137 = vrcp.pop %v5136
  %v5138 = vmul.f32 %v5136, %v5137
  %v5139 = vsub.f32 1.0, %v5138
  %v5140 = vmul.f32 %v5137, %v5139
  %v5141 = vadd.f32 %v5137, %v5140
  %vm5142 = vweird.f32 %v5136
  %vm5143 = vweird.f32 %v5137
  %vm5144 = vmor %vm5142, %vm5143
  %v5145 = vsel %vm5144, %v5137, %v5141
  %v5146 = vand.u32 2147483647, %v5136
  %vm5147 = vcmp.eq.f32.partialorder %v5146, 8.507059e+37
  %v5148 = vand.u32 %v5136, 2147483648
  %v5149 = vor.u32 1.1754944e-38, %v5148
  %v5150 = vsel %vm5147, %v5149, %v5145
  %v5151 = vmul.f32 %v5126, %v5150
  %v5152 = vmin.f32 %v5151, 1.0
  %v5153 = vmax.f32 %v5152, -1.0
  %v5154 = vadd.f32 %v4873, 1.0
  %v5155 = vadd.f32 %v4913, 1.0
  %v5156 = vadd.f32 %v4953, 1.0
  %v5157 = vadd.f32 %v4993, 1.0
  %v5158 = vadd.f32 %v5033, 1.0
  %v5159 = vadd.f32 %v5073, 1.0
  %v5160 = vadd.f32 %v5113, 1.0
  %v5161 = vadd.f32 %v5153, 1.0
  %v5162 = vmul.f32 %v4818, %v5154
  %v5163 = vmul.f32 %v4819, %v5155
  %v5164 = vmul.f32 %v4820, %v5156
  %v5165 = vmul.f32 %v4821, %v5157
  %v5166 = vmul.f32 %v4822, %v5158
  %v5167 = vmul.f32 %v4823, %v5159
  %v5168 = vmul.f32 %v4824, %v5160
  %v5169 = vmul.f32 %v4825, %v5161
  %s5170 = scalar_lea.vmem %s12, 64
  %v5171 = vld [vmem:[%s5170] sm:$0xff]
  %v5172 = vld [vmem:[%s5170 + $0x8] sm:$0xff]
  %v5173 = vld [vmem:[%s5170 + $0x10] sm:$0xff]
  %v5174 = vld [vmem:[%s5170 + $0x18] sm:$0xff]
  %v5175 = vld [vmem:[%s5170 + $0x20] sm:$0xff]
  %v5176 = vld [vmem:[%s5170 + $0x28] sm:$0xff]
  %v5177 = vld [vmem:[%s5170 + $0x30] sm:$0xff]
  %v5178 = vld [vmem:[%s5170 + $0x38] sm:$0xff]
  %s5179 = scalar_lea.vmem %s13, 1
  %v5180 = vld [vmem:[%s5179] sm:$0x1]
  %v5182 = vperm.slane %v5180, 0
  %v5185 = vsel %vm2592, %v5162, 0
  %v5188 = vsel %vm2592, %v5163, 0
  %v5191 = vsel %vm2592, %v5164, 0
  %v5194 = vsel %vm2592, %v5165, 0
  %v5197 = vsel %vm2592, %v5166, 0
  %v5200 = vsel %vm2592, %v5167, 0
  %v5203 = vsel %vm2592, %v5168, 0
  %v5206 = vsel %vm2592, %v5169, 0
  %5208 = vmatpush.msra.mxu0 0.0
  %5209 = vmatpush.msra.mxu0 0.0
  %5210 = vmatpush.msra.mxu0 0.0
  %5211 = vmatpush.msra.mxu0 0.0
  %5212 = vmatpush.msra.mxu0 0.0
  %5213 = vmatpush.msra.mxu0 0.0
  %5214 = vmatpush.msra.mxu0 0.0
  %5215 = vmatpush.msra.mxu0 0.0
  %5216 = vmatpush.msra.mxu0 %v5178
  %5217 = vmatpush.msra.mxu0 %v5177
  %5218 = vmatpush.msra.mxu0 %v5176
  %5219 = vmatpush.msra.mxu0 %v5175
  %5220 = vmatpush.msra.mxu0 %v5174
  %5221 = vmatpush.msra.mxu0 %v5173
  %5222 = vmatpush.msra.mxu0 %v5172
  %5223 = vmatpush.msra.mxu0 %v5171
  %5224 = vmatmul.f32.gmra.mxu0 %v5185
  %v5225 = vpop.f32.mrf.mxu0
  %v5226 = vadd.f32 %v5182, %v5225
  %5227 = vmatmul.f32.gmra.mxu0 %v5188
  %v5228 = vpop.f32.mrf.mxu0
  %v5229 = vadd.f32 %v5182, %v5228
  %5230 = vmatmul.f32.gmra.mxu0 %v5191
  %v5231 = vpop.f32.mrf.mxu0
  %v5232 = vadd.f32 %v5182, %v5231
  %5233 = vmatmul.f32.gmra.mxu0 %v5194
  %v5234 = vpop.f32.mrf.mxu0
  %v5235 = vadd.f32 %v5182, %v5234
  %5236 = vmatmul.f32.gmra.mxu0 %v5197
  %v5237 = vpop.f32.mrf.mxu0
  %v5238 = vadd.f32 %v5182, %v5237
  %5239 = vmatmul.f32.gmra.mxu0 %v5200
  %v5240 = vpop.f32.mrf.mxu0
  %v5241 = vadd.f32 %v5182, %v5240
  %5242 = vmatmul.f32.gmra.mxu0 %v5203
  %v5243 = vpop.f32.mrf.mxu0
  %v5244 = vadd.f32 %v5182, %v5243
  %5245 = vmatmul.f32.gmra.mxu0 %v5206
  %v5246 = vpop.f32.mrf.mxu0
  %v5247 = vadd.f32 %v5182, %v5246
  %5248 = vdwg.mxu0
  %v5249 = vadd.f32 %v4533, %v5226
  %v5250 = vadd.f32 %v4534, %v5229
  %v5251 = vadd.f32 %v4535, %v5232
  %v5252 = vadd.f32 %v4536, %v5235
  %v5253 = vadd.f32 %v4537, %v5238
  %v5254 = vadd.f32 %v4538, %v5241
  %v5255 = vadd.f32 %v4539, %v5244
  %v5256 = vadd.f32 %v4540, %v5247
  %v5257 = vld [vmem:[%s14] sm:$0x1]
  %v5258 = vld [vmem:[%s15] sm:$0x1]
  %v5259 = vsel %vm79, %v5249, 0.0
  %5260 = vadd.xlane.f32.xlu0 %v5259
  %v5261 = vpop.xlane.xlu0 %5260
  %v5262 = vsel %vm79, %v5250, 0.0
  %5263 = vadd.xlane.f32.xlu0 %v5262
  %v5264 = vpop.xlane.xlu0 %5263
  %v5265 = vsel %vm79, %v5251, 0.0
  %5266 = vadd.xlane.f32.xlu0 %v5265
  %v5267 = vpop.xlane.xlu0 %5266
  %v5268 = vsel %vm79, %v5252, 0.0
  %5269 = vadd.xlane.f32.xlu0 %v5268
  %v5270 = vpop.xlane.xlu0 %5269
  %v5271 = vsel %vm79, %v5253, 0.0
  %5272 = vadd.xlane.f32.xlu0 %v5271
  %v5273 = vpop.xlane.xlu0 %5272
  %v5274 = vsel %vm79, %v5254, 0.0
  %5275 = vadd.xlane.f32.xlu0 %v5274
  %v5276 = vpop.xlane.xlu0 %5275
  %v5277 = vsel %vm79, %v5255, 0.0
  %5278 = vadd.xlane.f32.xlu0 %v5277
  %v5279 = vpop.xlane.xlu0 %5278
  %v5280 = vsel %vm79, %v5256, 0.0
  %5281 = vadd.xlane.f32.xlu0 %v5280
  %v5282 = vpop.xlane.xlu0 %5281
  %v5283 = vmul.f32 %v5261, %v110
  %v5284 = vmul.f32 %v5264, %v110
  %v5285 = vmul.f32 %v5267, %v110
  %v5286 = vmul.f32 %v5270, %v110
  %v5287 = vmul.f32 %v5273, %v110
  %v5288 = vmul.f32 %v5276, %v110
  %v5289 = vmul.f32 %v5279, %v110
  %v5290 = vmul.f32 %v5282, %v110
  %v5291 = vsub.f32 %v5249, %v5283
  %v5292 = vsub.f32 %v5250, %v5284
  %v5293 = vsub.f32 %v5251, %v5285
  %v5294 = vsub.f32 %v5252, %v5286
  %v5295 = vsub.f32 %v5253, %v5287
  %v5296 = vsub.f32 %v5254, %v5288
  %v5297 = vsub.f32 %v5255, %v5289
  %v5298 = vsub.f32 %v5256, %v5290
  %v5299 = vmul.f32 %v5291, %v5291
  %v5300 = vmul.f32 %v5292, %v5292
  %v5301 = vmul.f32 %v5293, %v5293
  %v5302 = vmul.f32 %v5294, %v5294
  %v5303 = vmul.f32 %v5295, %v5295
  %v5304 = vmul.f32 %v5296, %v5296
  %v5305 = vmul.f32 %v5297, %v5297
  %v5306 = vmul.f32 %v5298, %v5298
  %v5307 = vsel %vm79, %v5299, 0.0
  %5308 = vadd.xlane.f32.xlu0 %v5307
  %v5309 = vpop.xlane.xlu0 %5308
  %v5310 = vsel %vm79, %v5300, 0.0
  %5311 = vadd.xlane.f32.xlu0 %v5310
  %v5312 = vpop.xlane.xlu0 %5311
  %v5313 = vsel %vm79, %v5301, 0.0
  %5314 = vadd.xlane.f32.xlu0 %v5313
  %v5315 = vpop.xlane.xlu0 %5314
  %v5316 = vsel %vm79, %v5302, 0.0
  %5317 = vadd.xlane.f32.xlu0 %v5316
  %v5318 = vpop.xlane.xlu0 %5317
  %v5319 = vsel %vm79, %v5303, 0.0
  %5320 = vadd.xlane.f32.xlu0 %v5319
  %v5321 = vpop.xlane.xlu0 %5320
  %v5322 = vsel %vm79, %v5304, 0.0
  %5323 = vadd.xlane.f32.xlu0 %v5322
  %v5324 = vpop.xlane.xlu0 %5323
  %v5325 = vsel %vm79, %v5305, 0.0
  %5326 = vadd.xlane.f32.xlu0 %v5325
  %v5327 = vpop.xlane.xlu0 %5326
  %v5328 = vsel %vm79, %v5306, 0.0
  %5329 = vadd.xlane.f32.xlu0 %v5328
  %v5330 = vpop.xlane.xlu0 %5329
  %v5331 = vmul.f32 %v5309, %v110
  %v5332 = vmul.f32 %v5312, %v110
  %v5333 = vmul.f32 %v5315, %v110
  %v5334 = vmul.f32 %v5318, %v110
  %v5335 = vmul.f32 %v5321, %v110
  %v5336 = vmul.f32 %v5324, %v110
  %v5337 = vmul.f32 %v5327, %v110
  %v5338 = vmul.f32 %v5330, %v110
  %v5339 = vadd.f32 %v5331, 1e-05
  %v5340 = vadd.f32 %v5332, 1e-05
  %v5341 = vadd.f32 %v5333, 1e-05
  %v5342 = vadd.f32 %v5334, 1e-05
  %v5343 = vadd.f32 %v5335, 1e-05
  %v5344 = vadd.f32 %v5336, 1e-05
  %v5345 = vadd.f32 %v5337, 1e-05
  %v5346 = vadd.f32 %v5338, 1e-05
  %v5347 = vrsqrt.pop %v5339
  %v5348 = vmul.f32 %v5347, %v5339
  %v5349 = vmul.f32 %v5348, %v5347
  %v5350 = vmul.f32 0.5, %v5349
  %v5351 = vsub.f32 1.5, %v5350
  %v5352 = vmul.f32 %v5347, %v5351
  %vm5353 = vweird.f32 %v5339
  %vm5354 = vweird.f32 %v5347
  %vm5355 = vmor %vm5353, %vm5354
  %v5356 = vsel %vm5355, %v5347, %v5352
  %v5357 = vrsqrt.pop %v5340
  %v5358 = vmul.f32 %v5357, %v5340
  %v5359 = vmul.f32 %v5358, %v5357
  %v5360 = vmul.f32 0.5, %v5359
  %v5361 = vsub.f32 1.5, %v5360
  %v5362 = vmul.f32 %v5357, %v5361
  %vm5363 = vweird.f32 %v5340
  %vm5364 = vweird.f32 %v5357
  %vm5365 = vmor %vm5363, %vm5364
  %v5366 = vsel %vm5365, %v5357, %v5362
  %v5367 = vrsqrt.pop %v5341
  %v5368 = vmul.f32 %v5367, %v5341
  %v5369 = vmul.f32 %v5368, %v5367
  %v5370 = vmul.f32 0.5, %v5369
  %v5371 = vsub.f32 1.5, %v5370
  %v5372 = vmul.f32 %v5367, %v5371
  %vm5373 = vweird.f32 %v5341
  %vm5374 = vweird.f32 %v5367
  %vm5375 = vmor %vm5373, %vm5374
  %v5376 = vsel %vm5375, %v5367, %v5372
  %v5377 = vrsqrt.pop %v5342
  %v5378 = vmul.f32 %v5377, %v5342
  %v5379 = vmul.f32 %v5378, %v5377
  %v5380 = vmul.f32 0.5, %v5379
  %v5381 = vsub.f32 1.5, %v5380
  %v5382 = vmul.f32 %v5377, %v5381
  %vm5383 = vweird.f32 %v5342
  %vm5384 = vweird.f32 %v5377
  %vm5385 = vmor %vm5383, %vm5384
  %v5386 = vsel %vm5385, %v5377, %v5382
  %v5387 = vrsqrt.pop %v5343
  %v5388 = vmul.f32 %v5387, %v5343
  %v5389 = vmul.f32 %v5388, %v5387
  %v5390 = vmul.f32 0.5, %v5389
  %v5391 = vsub.f32 1.5, %v5390
  %v5392 = vmul.f32 %v5387, %v5391
  %vm5393 = vweird.f32 %v5343
  %vm5394 = vweird.f32 %v5387
  %vm5395 = vmor %vm5393, %vm5394
  %v5396 = vsel %vm5395, %v5387, %v5392
  %v5397 = vrsqrt.pop %v5344
  %v5398 = vmul.f32 %v5397, %v5344
  %v5399 = vmul.f32 %v5398, %v5397
  %v5400 = vmul.f32 0.5, %v5399
  %v5401 = vsub.f32 1.5, %v5400
  %v5402 = vmul.f32 %v5397, %v5401
  %vm5403 = vweird.f32 %v5344
  %vm5404 = vweird.f32 %v5397
  %vm5405 = vmor %vm5403, %vm5404
  %v5406 = vsel %vm5405, %v5397, %v5402
  %v5407 = vrsqrt.pop %v5345
  %v5408 = vmul.f32 %v5407, %v5345
  %v5409 = vmul.f32 %v5408, %v5407
  %v5410 = vmul.f32 0.5, %v5409
  %v5411 = vsub.f32 1.5, %v5410
  %v5412 = vmul.f32 %v5407, %v5411
  %vm5413 = vweird.f32 %v5345
  %vm5414 = vweird.f32 %v5407
  %vm5415 = vmor %vm5413, %vm5414
  %v5416 = vsel %vm5415, %v5407, %v5412
  %v5417 = vrsqrt.pop %v5346
  %v5418 = vmul.f32 %v5417, %v5346
  %v5419 = vmul.f32 %v5418, %v5417
  %v5420 = vmul.f32 0.5, %v5419
  %v5421 = vsub.f32 1.5, %v5420
  %v5422 = vmul.f32 %v5417, %v5421
  %vm5423 = vweird.f32 %v5346
  %vm5424 = vweird.f32 %v5417
  %vm5425 = vmor %vm5423, %vm5424
  %v5426 = vsel %vm5425, %v5417, %v5422
  %v5427 = vmul.f32 %v5291, %v5356
  %v5428 = vmul.f32 %v5292, %v5366
  %v5429 = vmul.f32 %v5293, %v5376
  %v5430 = vmul.f32 %v5294, %v5386
  %v5431 = vmul.f32 %v5295, %v5396
  %v5432 = vmul.f32 %v5296, %v5406
  %v5433 = vmul.f32 %v5297, %v5416
  %v5434 = vmul.f32 %v5298, %v5426
  %v5436 = vperm.slane %v5257, 0
  %v5438 = vmul.f32 %v5427, %v5436
  %v5439 = vmul.f32 %v5428, %v5436
  %v5440 = vmul.f32 %v5429, %v5436
  %v5441 = vmul.f32 %v5430, %v5436
  %v5442 = vmul.f32 %v5431, %v5436
  %v5443 = vmul.f32 %v5432, %v5436
  %v5444 = vmul.f32 %v5433, %v5436
  %v5445 = vmul.f32 %v5434, %v5436
  %v5447 = vperm.slane %v5258, 0
  %v5449 = vadd.f32 %v5438, %v5447
  %v5450 = vadd.f32 %v5439, %v5447
  %v5451 = vadd.f32 %v5440, %v5447
  %v5452 = vadd.f32 %v5441, %v5447
  %v5453 = vadd.f32 %v5442, %v5447
  %v5454 = vadd.f32 %v5443, %v5447
  %v5455 = vadd.f32 %v5444, %v5447
  %v5456 = vadd.f32 %v5445, %v5447
  %5457 = vst.msk [vmem:[%s16] sm:$0xff] %vm79, %v5449
  %5458 = vst.msk [vmem:[%s16 + $0x8] sm:$0xff] %vm79, %v5450
  %5459 = vst.msk [vmem:[%s16 + $0x10] sm:$0xff] %vm79, %v5451
  %5460 = vst.msk [vmem:[%s16 + $0x18] sm:$0xff] %vm79, %v5452
  %5461 = vst.msk [vmem:[%s16 + $0x20] sm:$0xff] %vm79, %v5453
  %5462 = vst.msk [vmem:[%s16 + $0x28] sm:$0xff] %vm79, %v5454
  %5463 = vst.msk [vmem:[%s16 + $0x30] sm:$0xff] %vm79, %v5455
  %5464 = vst.msk [vmem:[%s16 + $0x38] sm:$0xff] %vm79, %v5456
  // Predicated region
  $region66: #{vit_forward.1} parent=0 // pred_check
    _
  $region67: #{vit_forward.1} parent=0 // pred_check_branch
    %5466 = sbr.rel (0) target = $region69
  $region68: #{vit_forward.1} parent=0 // pred_region
    _
  $region69: #{vit_forward.1} parent=0 // pred_fallthru
    _
  // Predicated region
  $region70: #{vit_forward.1} parent=0 // pred_check
    _
  $region71: #{vit_forward.1} parent=0 // pred_check_branch
    %5468 = sbr.rel (0) target = $region73
  $region72: #{vit_forward.1} parent=0 // pred_region
    _
  $region73: #{vit_forward.1} parent=0 // pred_fallthru
    _

</llo_original>
